<compile_context>
chip_gen: v7x
topology: tpu7x:2x2x1
jax: 0.10.0
libtpu: 0.0.40
codegen_flags: <defaults>
</compile_context>

<pallas_src>
import functools

import jax
import jax.numpy as jnp
import numpy as np
from jax import lax
from jax.experimental import pallas as pl
from jax.experimental.pallas import tpu as pltpu

EPS = 1e-5  # PyTorch BatchNorm default eps


def _vmem_capacity_bytes():
    """Physical VMEM per TensorCore; conservative fallback if the query fails."""
    try:
        info = pltpu.get_tpu_info()
        for name in ("vmem_capacity_bytes", "vmem_size_bytes", "vmem_bytes"):
            v = getattr(info, name, None)
            if isinstance(v, (int, np.integer)) and int(v) > 0:
                return int(v)
    except Exception:
        pass
    return 64 * 1024 * 1024  # v7x per-TC capacity (safe lower bound)


def _pick_cout_tile(Cp, vmem_cap, lhs_bytes, Cin, HW, H2W2):
    """Largest lane-aligned Cout tile whose per-grid-step footprint fits VMEM.

    The resident LHS is counted twice (conservative: default input double
    buffering); weight/param/output tiles are double-buffered by the pipeline.
    """
    choice = (128, 0)
    for tc in (512, 256, 128):
        if Cp % tc:
            continue
        w_tile = 9 * Cin * tc * 2               # bf16 conv-weight tile (3 kh taps)
        par_tiles = 5 * tc * 4                  # conv bias + 2x BN gamma/beta
        out_tiles = 4 * H2W2 * tc * 4           # four f32 output tiles
        work = (HW + 2 * H2W2) * tc * 4         # conv acc + BN/pool temporaries
        need = 2 * lhs_bytes + 2 * (w_tile + par_tiles + out_tiles) + 2 * work
        choice = (tc, need)
        if need <= vmem_cap - 8 * 1024 * 1024:
            return choice
    return choice


def _fused_kernel(patches_ref, w_ref, cb_ref, g1_ref, b1_ref, g2_ref, b2_ref,
                  fc_ref, logp0_ref, logp1_ref, prob0_ref, prob1_ref, *, H, W):
    """Per-Cout-tile fused forward.

    patches_ref : ((H+2)*W, 3*Cin) bf16 kw-only im2col slab, rows (hp, w),
                  features (kw, cin).  Constant index_map -> VMEM resident.
    w_ref       : (3, 3*Cin, TC) bf16 conv weight (kh-indexed, rows (kw, cin)).
    cb/g1/b1/g2/b2 : (1, TC) f32 per-channel parameters for this tile.
    fc_ref      : (4,) f32 in SMEM = [w0, w1, b0, b1] of Linear(1, 2).
    outputs     : four lane-dense (H2*W2, TC) f32 slabs (logp c0/c1, prob c0/c1).
    """
    H2, W2 = H // 2, W // 2
    He, We = 2 * H2, 2 * W2
    TC = cb_ref.shape[-1]
    HW = H * W
    inv_n1 = 1.0 / float(HW)
    inv_n2 = 1.0 / float(H2 * W2)

    # --- Conv2d(3x3): 3 kh taps, each a contiguous H*W-row window of the slab
    #     at static offset kh*W; bf16 MXU matmuls with f32 accumulation. ---
    acc = jnp.dot(patches_ref[pl.ds(0, HW), :], w_ref[0],
                  preferred_element_type=jnp.float32)
    for kh in (1, 2):
        acc = acc + jnp.dot(patches_ref[pl.ds(kh * W, HW), :], w_ref[kh],
                            preferred_element_type=jnp.float32)
    acc = jnp.maximum(acc + cb_ref[...], 0.0)            # conv bias + ReLU

    # --- BatchNorm2d (training batch stats), two-pass centered variance ---
    mu1 = jnp.sum(acc, axis=0, keepdims=True) * inv_n1
    xc = acc - mu1
    var1 = jnp.sum(xc * xc, axis=0, keepdims=True) * inv_n1
    xh = xc * lax.rsqrt(var1 + EPS) * g1_ref[...] + b1_ref[...]

    # --- MaxPool2d(2) with floor semantics (trailing odd row/col ignored) ---
    t = xh
    if He != H:                      # odd H: drop trailing row (contiguous slice)
        t = t[:He * W, :]
    if We != W:                      # odd W: drop trailing column of every row
        t = t.reshape(He, W, TC)[:, :We, :].reshape(He * We, TC)
    t = t.reshape(He * W2, 2, TC)
    t = jnp.maximum(t[:, 0, :], t[:, 1, :])              # w-pair max
    t = t.reshape(H2, 2, W2, TC)
    pooled = jnp.maximum(t[:, 0], t[:, 1]).reshape(H2 * W2, TC)   # h-pair max

    # --- bn_2 (F.batch_norm per-channel batch stats), two-pass variance ---
    mu2 = jnp.sum(pooled, axis=0, keepdims=True) * inv_n2
    pc = pooled - mu2
    var2 = jnp.sum(pc * pc, axis=0, keepdims=True) * inv_n2
    y = pc * lax.rsqrt(var2 + EPS) * g2_ref[...] + b2_ref[...]

    # --- Fused head: Linear(1,2) + softmax / log-softmax over the 2 classes,
    #     elementwise per feature on the lane-dense quarter-size slab. ---
    fw0 = fc_ref[0]
    fw1 = fc_ref[1]
    fb0 = fc_ref[2]
    fb1 = fc_ref[3]
    l0 = y * fw0 + fb0
    l1 = y * fw1 + fb1
    m = jnp.maximum(l0, l1)
    e0 = jnp.exp(l0 - m)
    e1 = jnp.exp(l1 - m)
    ssum = e0 + e1
    inv = 1.0 / ssum                 # exact divide: prob0 + prob1 == 1
    prob0_ref[...] = e0 * inv
    prob1_ref[...] = e1 * inv
    logs = jnp.log(ssum)
    logp0_ref[...] = (l0 - m) - logs
    logp1_ref[...] = (l1 - m) - logs


def d_cls_image_forward(x_nchw, params, *, beta=1.0):
    """Forward pass of d_cls_image. `beta` only affects the backward of
    GradReverse (identity forward), so it is unused here."""
    del beta
    N, Cin, H, W = x_nchw.shape
    assert N == 1, "module requires batch size 1 (Linear(1,2) after transpose)"
    Cout = params["conv_w"].shape[0]
    H2, W2 = H // 2, W // 2           # MaxPool2d floor semantics

    # ---- pad Cout to a lane-aligned multiple of 128 (unmasked output stores,
    #      full MXU columns); padded channels are sliced off at the end. ----
    Cp = max(128, ((Cout + 127) // 128) * 128)
    pad_c = Cp - Cout

    # ---- kw-only im2col (3x inflation instead of 9x), built in bf16 ----
    x_hwc = jnp.transpose(x_nchw[0], (1, 2, 0)).astype(jnp.bfloat16)   # bf16 early
    xpad = jnp.pad(x_hwc, ((1, 1), (1, 1), (0, 0)))                    # (H+2, W+2, Cin)
    patches = jnp.concatenate([xpad[:, kw:kw + W, :] for kw in range(3)],
                              axis=-1).reshape((H + 2) * W, 3 * Cin)

    # ---- conv weight: (Cout,Cin,3,3) -> (3, 3*Cin, Cp); rows (kw, cin) per kh ----
    w_k = jnp.transpose(params["conv_w"].astype(jnp.float32), (2, 3, 1, 0))
    w_k = w_k.reshape(3, 3 * Cin, Cout)
    w_k = jnp.pad(w_k, ((0, 0), (0, 0), (0, pad_c))).astype(jnp.bfloat16)

    def row(v):
        v = v.astype(jnp.float32).reshape(1, -1)
        return jnp.pad(v, ((0, 0), (0, pad_c)))

    # Linear(1, 2) scalars, read from SMEM in-kernel: [w0, w1, b0, b1]
    fc = jnp.concatenate([params["fc_w"].astype(jnp.float32).reshape(-1),
                          params["fc_b"].astype(jnp.float32).reshape(-1)])

    # ---- per-chip Cout tile + VMEM budget (clamped to physical capacity) ----
    vmem_cap = _vmem_capacity_bytes()
    lhs_bytes = patches.size * 2
    TC, need = _pick_cout_tile(Cp, vmem_cap, lhs_bytes, Cin, H * W, H2 * W2)
    grid = (Cp // TC,)
    vmem_limit = int(min(max(need, 32 * 1024 * 1024), vmem_cap - 2 * 1024 * 1024))

    cp = pltpu.CompilerParams(
        dimension_semantics=("parallel",),        # Cout tiles independent (v7x 2x TC)
        vmem_limit_bytes=vmem_limit)

    slab = jax.ShapeDtypeStruct((H2 * W2, Cp), jnp.float32)
    out_spec = pl.BlockSpec((H2 * W2, TC), lambda j: (0, j))
    par_spec = pl.BlockSpec((1, TC), lambda j: (0, j))

    logp0, logp1, prob0, prob1 = pl.pallas_call(
        functools.partial(_fused_kernel, H=H, W=W),
        out_shape=(slab, slab, slab, slab),
        grid=grid,
        in_specs=[
            # resident LHS: constant block index across the Cout grid
            pl.BlockSpec(((H + 2) * W, 3 * Cin), lambda j: (0, 0)),
            pl.BlockSpec((3, 3 * Cin, TC), lambda j: (0, 0, j)),
            par_spec, par_spec, par_spec, par_spec, par_spec,
            pl.BlockSpec(memory_space=pltpu.MemorySpace.SMEM),
        ],
        out_specs=(out_spec, out_spec, out_spec, out_spec),
        compiler_params=cp,
    )(patches, w_k, row(params["conv_b"]), row(params["bn1_g"]),
      row(params["bn1_b"]), row(params["bn2_g"]), row(params["bn2_b"]), fc)

    # ---- glue: PyTorch flatten of NCHW is channel-major (c, h, w); class dim
    #      last.  d = c*H2*W2 + h*W2 + w  ->  slice padded channels, transpose.
    # TODO(synk): if the consumer is a reduction (NLL loss), fold this transpose
    # into the loss and emit only the slab(s) it needs, in bf16.
    to_col = lambda s: jnp.transpose(s[:, :Cout], (1, 0)).reshape(-1)
    logp = jnp.stack([to_col(logp0), to_col(logp1)], axis=1)   # (D, 2)
    prob = jnp.stack([to_col(prob0), to_col(prob1)], axis=1)   # (D, 2)
    # module returns (logsoftmax(x), softmax(x))
    return logp, prob


def reference_forward(x_nchw, params):
    """Pure-JAX mirror of the PyTorch forward (for validation, full f32)."""
    conv = lax.conv_general_dilated(
        x_nchw.astype(jnp.float32), params["conv_w"].astype(jnp.float32),
        window_strides=(1, 1), padding=((1, 1), (1, 1)),
        dimension_numbers=("NCHW", "OIHW", "NCHW"),
        precision=lax.Precision.HIGHEST)
    conv = conv + params["conv_b"].reshape(1, -1, 1, 1)
    t = jnp.maximum(conv, 0.0)

    def bn(t, g, bta):
        mu = jnp.mean(t, axis=(0, 2, 3), keepdims=True)
        var = jnp.mean((t - mu) ** 2, axis=(0, 2, 3), keepdims=True)
        return ((t - mu) / jnp.sqrt(var + EPS) * g.reshape(1, -1, 1, 1)
                + bta.reshape(1, -1, 1, 1))

    t = bn(t, params["bn1_g"], params["bn1_b"])
    N, C, Hc, Wc = t.shape
    H2, W2 = Hc // 2, Wc // 2
    t = t[:, :, :2 * H2, :2 * W2].reshape(N, C, H2, 2, W2, 2).max(axis=(3, 5))
    t = bn(t, params["bn2_g"], params["bn2_b"])
    flat = t.reshape(N, -1).T                              # (D, 1)
    logits = flat @ params["fc_w"].astype(jnp.float32).T + params["fc_b"]
    return jax.nn.log_softmax(logits, axis=1), jax.nn.softmax(logits, axis=1)


if __name__ == "__main__":
    key = jax.random.PRNGKey(0)

    def make_case(k, Cin, Cout, H, W):
        ks = jax.random.split(k, 8)
        x = jax.random.normal(ks[0], (1, Cin, H, W), jnp.float32)
        params = dict(
            conv_w=0.2 * jax.random.normal(ks[1], (Cout, Cin, 3, 3), jnp.float32),
            conv_b=0.1 * jax.random.normal(ks[2], (Cout,), jnp.float32),
            bn1_g=1.0 + 0.1 * jax.random.normal(ks[3], (Cout,), jnp.float32),
            bn1_b=0.1 * jax.random.normal(ks[4], (Cout,), jnp.float32),
            bn2_g=1.0 + 0.1 * jax.random.normal(ks[5], (Cout,), jnp.float32),
            bn2_b=0.1 * jax.random.normal(ks[6], (Cout,), jnp.float32),
            fc_w=0.5 * jax.random.normal(ks[7], (2, 1), jnp.float32),
            fc_b=jnp.array([0.05, -0.05], jnp.float32),
        )
        return x, params

    k1, k2 = jax.random.split(key)
    # Case A: tiny Cout=8 padded to a single 128-wide tile (grid = 1).
    # Case B: Cout=300 padded to 384 -> three 128-wide tiles (grid = 3) and an
    #         odd H (floor maxpool), exercising the resident-LHS Cout pipeline.
    cases = ((k1, (4, 8, 16, 16)), (k2, (4, 300, 15, 16)))
    for kk, (Cin, Cout, H, W) in cases:
        x, params = make_case(kk, Cin, Cout, H, W)
        logp, prob = jax.block_until_ready(d_cls_image_forward(x, params, beta=1.0))
        ref_logp, ref_prob = reference_forward(x, params)
        # tolerance accounts for bf16 MXU inputs (f32 accumulation) vs. the f32
        # HIGHEST-precision reference; structural errors would be O(0.1 - 1).
        np.testing.assert_allclose(np.asarray(logp), np.asarray(ref_logp),
                                   rtol=2e-2, atol=2e-2)
        np.testing.assert_allclose(np.asarray(prob), np.asarray(ref_prob),
                                   rtol=2e-2, atol=2e-2)
    print("KERNEL_OK")
</pallas_src>

<mosaic_0001>
module attributes {stable_mosaic.version = 11 : i64} {
  func.func @_fused_kernel(%arg0: i32, %arg1: memref<288x12xbf16, #tpu.memory_space<vmem>>, %arg2: memref<3x12x128xbf16, #tpu.memory_space<vmem>>, %arg3: memref<1x128xf32, #tpu.memory_space<vmem>>, %arg4: memref<1x128xf32, #tpu.memory_space<vmem>>, %arg5: memref<1x128xf32, #tpu.memory_space<vmem>>, %arg6: memref<1x128xf32, #tpu.memory_space<vmem>>, %arg7: memref<1x128xf32, #tpu.memory_space<vmem>>, %arg8: memref<4xf32, #tpu.memory_space<smem>>, %arg9: memref<64x128xf32, #tpu.memory_space<vmem>>, %arg10: memref<64x128xf32, #tpu.memory_space<vmem>>, %arg11: memref<64x128xf32, #tpu.memory_space<vmem>>, %arg12: memref<64x128xf32, #tpu.memory_space<vmem>>) attributes {dimension_semantics = [#tpu.dimension_semantics<parallel>], iteration_bounds = array<i64: 1>, scalar_prefetch = 0 : i64, scratch_operands = 0 : i64, tpu.core_type = #tpu.core_type<tc>, window_params = [{pipeline_mode = #tpu.pipeline_mode<synchronous>, transform_indices = @transform_0, window_bounds = array<i64: 288, 12>}, {transform_indices = @transform_1, window_bounds = array<i64: 3, 12, 128>}, {transform_indices = @transform_2, window_bounds = array<i64: 1, 128>}, {transform_indices = @transform_3, window_bounds = array<i64: 1, 128>}, {transform_indices = @transform_4, window_bounds = array<i64: 1, 128>}, {transform_indices = @transform_5, window_bounds = array<i64: 1, 128>}, {transform_indices = @transform_6, window_bounds = array<i64: 1, 128>}, {transform_indices = @transform_7, window_bounds = array<i64: 4>}, {transform_indices = @transform_8, window_bounds = array<i64: 64, 128>}, {transform_indices = @transform_9, window_bounds = array<i64: 64, 128>}, {transform_indices = @transform_10, window_bounds = array<i64: 64, 128>}, {transform_indices = @transform_11, window_bounds = array<i64: 64, 128>}]} {
    %c0 = arith.constant 0 : index
    %c0_0 = arith.constant 0 : index
    %0 = vector.load %arg1[%c0, %c0_0] : memref<288x12xbf16, #tpu.memory_space<vmem>>, vector<256x12xbf16>
    %c0_1 = arith.constant 0 : index
    %c0_2 = arith.constant 0 : index
    %c0_3 = arith.constant 0 : index
    %1 = vector.load %arg2[%c0_1, %c0_2, %c0_3] : memref<3x12x128xbf16, #tpu.memory_space<vmem>>, vector<1x12x128xbf16>
    %2 = vector.shape_cast %1 : vector<1x12x128xbf16> to vector<12x128xbf16>
    %cst = arith.constant dense<0.000000e+00> : vector<256x128xf32>
    %3 = tpu.matmul %0, %2, %cst {dimension_numbers = #tpu.dot_dimension_numbers<[1], [0], [0], [1], [0, 0, 1, 1], [], []>} : vector<256x12xbf16>, vector<12x128xbf16>, vector<256x128xf32> -> vector<256x128xf32>
    %c16 = arith.constant 16 : index
    %c0_4 = arith.constant 0 : index
    %4 = vector.load %arg1[%c16, %c0_4] : memref<288x12xbf16, #tpu.memory_space<vmem>>, vector<256x12xbf16>
    %c1 = arith.constant 1 : index
    %c0_5 = arith.constant 0 : index
    %c0_6 = arith.constant 0 : index
    %5 = vector.load %arg2[%c1, %c0_5, %c0_6] : memref<3x12x128xbf16, #tpu.memory_space<vmem>>, vector<1x12x128xbf16>
    %6 = vector.shape_cast %5 : vector<1x12x128xbf16> to vector<12x128xbf16>
    %cst_7 = arith.constant dense<0.000000e+00> : vector<256x128xf32>
    %7 = tpu.matmul %4, %6, %cst_7 {dimension_numbers = #tpu.dot_dimension_numbers<[1], [0], [0], [1], [0, 0, 1, 1], [], []>} : vector<256x12xbf16>, vector<12x128xbf16>, vector<256x128xf32> -> vector<256x128xf32>
    %8 = arith.addf %3, %7 : vector<256x128xf32>
    %c32 = arith.constant 32 : index
    %c0_8 = arith.constant 0 : index
    %9 = vector.load %arg1[%c32, %c0_8] : memref<288x12xbf16, #tpu.memory_space<vmem>>, vector<256x12xbf16>
    %c2 = arith.constant 2 : index
    %c0_9 = arith.constant 0 : index
    %c0_10 = arith.constant 0 : index
    %10 = vector.load %arg2[%c2, %c0_9, %c0_10] : memref<3x12x128xbf16, #tpu.memory_space<vmem>>, vector<1x12x128xbf16>
    %11 = vector.shape_cast %10 : vector<1x12x128xbf16> to vector<12x128xbf16>
    %cst_11 = arith.constant dense<0.000000e+00> : vector<256x128xf32>
    %12 = tpu.matmul %9, %11, %cst_11 {dimension_numbers = #tpu.dot_dimension_numbers<[1], [0], [0], [1], [0, 0, 1, 1], [], []>} : vector<256x12xbf16>, vector<12x128xbf16>, vector<256x128xf32> -> vector<256x128xf32>
    %13 = arith.addf %8, %12 : vector<256x128xf32>
    %c0_12 = arith.constant 0 : index
    %c0_13 = arith.constant 0 : index
    %14 = vector.load %arg3[%c0_12, %c0_13] : memref<1x128xf32, #tpu.memory_space<vmem>>, vector<1x128xf32>
    %15 = vector.broadcast %14 : vector<1x128xf32> to vector<256x128xf32>
    %16 = arith.addf %13, %15 : vector<256x128xf32>
    %cst_14 = arith.constant 0.000000e+00 : f32
    %17 = vector.broadcast %cst_14 : f32 to vector<256x128xf32>
    %18 = arith.maximumf %16, %17 : vector<256x128xf32>
    %cst_15 = arith.constant dense<0.000000e+00> : vector<128xf32>
    %19 = vector.multi_reduction <add>, %18, %cst_15 [0] : vector<256x128xf32> to vector<128xf32>
    %20 = vector.shape_cast %19 : vector<128xf32> to vector<1x128xf32>
    %cst_16 = arith.constant 3.906250e-03 : f32
    %21 = vector.broadcast %cst_16 : f32 to vector<1x128xf32>
    %22 = arith.mulf %20, %21 : vector<1x128xf32>
    %23 = vector.broadcast %22 : vector<1x128xf32> to vector<256x128xf32>
    %24 = arith.subf %18, %23 : vector<256x128xf32>
    %25 = arith.mulf %24, %24 : vector<256x128xf32>
    %cst_17 = arith.constant dense<0.000000e+00> : vector<128xf32>
    %26 = vector.multi_reduction <add>, %25, %cst_17 [0] : vector<256x128xf32> to vector<128xf32>
    %27 = vector.shape_cast %26 : vector<128xf32> to vector<1x128xf32>
    %cst_18 = arith.constant 3.906250e-03 : f32
    %28 = vector.broadcast %cst_18 : f32 to vector<1x128xf32>
    %29 = arith.mulf %27, %28 : vector<1x128xf32>
    %cst_19 = arith.constant 9.99999974E-6 : f32
    %30 = vector.broadcast %cst_19 : f32 to vector<1x128xf32>
    %31 = arith.addf %29, %30 : vector<1x128xf32>
    %32 = math.rsqrt %31 : vector<1x128xf32>
    %33 = vector.broadcast %32 : vector<1x128xf32> to vector<256x128xf32>
    %34 = arith.mulf %24, %33 : vector<256x128xf32>
    %c0_20 = arith.constant 0 : index
    %c0_21 = arith.constant 0 : index
    %35 = vector.load %arg4[%c0_20, %c0_21] : memref<1x128xf32, #tpu.memory_space<vmem>>, vector<1x128xf32>
    %36 = vector.broadcast %35 : vector<1x128xf32> to vector<256x128xf32>
    %37 = arith.mulf %34, %36 : vector<256x128xf32>
    %c0_22 = arith.constant 0 : index
    %c0_23 = arith.constant 0 : index
    %38 = vector.load %arg5[%c0_22, %c0_23] : memref<1x128xf32, #tpu.memory_space<vmem>>, vector<1x128xf32>
    %39 = vector.broadcast %38 : vector<1x128xf32> to vector<256x128xf32>
    %40 = arith.addf %37, %39 : vector<256x128xf32>
    %41 = vector.shape_cast %40 : vector<256x128xf32> to vector<128x2x128xf32>
    %42 = vector.extract_strided_slice %41 {offsets = [0, 0, 0], sizes = [128, 1, 128], strides = [1, 1, 1]} : vector<128x2x128xf32> to vector<128x1x128xf32>
    %43 = vector.shape_cast %42 : vector<128x1x128xf32> to vector<128x128xf32>
    %44 = vector.extract_strided_slice %41 {offsets = [0, 1, 0], sizes = [128, 1, 128], strides = [1, 1, 1]} : vector<128x2x128xf32> to vector<128x1x128xf32>
    %45 = vector.shape_cast %44 : vector<128x1x128xf32> to vector<128x128xf32>
    %46 = arith.maximumf %43, %45 : vector<128x128xf32>
    %47 = vector.shape_cast %46 : vector<128x128xf32> to vector<8x2x8x128xf32>
    %48 = vector.extract_strided_slice %47 {offsets = [0, 0, 0, 0], sizes = [8, 1, 8, 128], strides = [1, 1, 1, 1]} : vector<8x2x8x128xf32> to vector<8x1x8x128xf32>
    %49 = vector.shape_cast %48 : vector<8x1x8x128xf32> to vector<8x8x128xf32>
    %50 = vector.extract_strided_slice %47 {offsets = [0, 1, 0, 0], sizes = [8, 1, 8, 128], strides = [1, 1, 1, 1]} : vector<8x2x8x128xf32> to vector<8x1x8x128xf32>
    %51 = vector.shape_cast %50 : vector<8x1x8x128xf32> to vector<8x8x128xf32>
    %52 = arith.maximumf %49, %51 : vector<8x8x128xf32>
    %53 = vector.shape_cast %52 : vector<8x8x128xf32> to vector<64x128xf32>
    %cst_24 = arith.constant dense<0.000000e+00> : vector<128xf32>
    %54 = vector.multi_reduction <add>, %53, %cst_24 [0] : vector<64x128xf32> to vector<128xf32>
    %55 = vector.shape_cast %54 : vector<128xf32> to vector<1x128xf32>
    %cst_25 = arith.constant 1.562500e-02 : f32
    %56 = vector.broadcast %cst_25 : f32 to vector<1x128xf32>
    %57 = arith.mulf %55, %56 : vector<1x128xf32>
    %58 = vector.broadcast %57 : vector<1x128xf32> to vector<64x128xf32>
    %59 = arith.subf %53, %58 : vector<64x128xf32>
    %60 = arith.mulf %59, %59 : vector<64x128xf32>
    %cst_26 = arith.constant dense<0.000000e+00> : vector<128xf32>
    %61 = vector.multi_reduction <add>, %60, %cst_26 [0] : vector<64x128xf32> to vector<128xf32>
    %62 = vector.shape_cast %61 : vector<128xf32> to vector<1x128xf32>
    %cst_27 = arith.constant 1.562500e-02 : f32
    %63 = vector.broadcast %cst_27 : f32 to vector<1x128xf32>
    %64 = arith.mulf %62, %63 : vector<1x128xf32>
    %cst_28 = arith.constant 9.99999974E-6 : f32
    %65 = vector.broadcast %cst_28 : f32 to vector<1x128xf32>
    %66 = arith.addf %64, %65 : vector<1x128xf32>
    %67 = math.rsqrt %66 : vector<1x128xf32>
    %68 = vector.broadcast %67 : vector<1x128xf32> to vector<64x128xf32>
    %69 = arith.mulf %59, %68 : vector<64x128xf32>
    %c0_29 = arith.constant 0 : index
    %c0_30 = arith.constant 0 : index
    %70 = vector.load %arg6[%c0_29, %c0_30] : memref<1x128xf32, #tpu.memory_space<vmem>>, vector<1x128xf32>
    %71 = vector.broadcast %70 : vector<1x128xf32> to vector<64x128xf32>
    %72 = arith.mulf %69, %71 : vector<64x128xf32>
    %c0_31 = arith.constant 0 : index
    %c0_32 = arith.constant 0 : index
    %73 = vector.load %arg7[%c0_31, %c0_32] : memref<1x128xf32, #tpu.memory_space<vmem>>, vector<1x128xf32>
    %74 = vector.broadcast %73 : vector<1x128xf32> to vector<64x128xf32>
    %75 = arith.addf %72, %74 : vector<64x128xf32>
    %c0_33 = arith.constant 0 : index
    %76 = memref.load %arg8[%c0_33] : memref<4xf32, #tpu.memory_space<smem>>
    %c1_34 = arith.constant 1 : index
    %77 = memref.load %arg8[%c1_34] : memref<4xf32, #tpu.memory_space<smem>>
    %c2_35 = arith.constant 2 : index
    %78 = memref.load %arg8[%c2_35] : memref<4xf32, #tpu.memory_space<smem>>
    %c3 = arith.constant 3 : index
    %79 = memref.load %arg8[%c3] : memref<4xf32, #tpu.memory_space<smem>>
    %80 = vector.broadcast %76 : f32 to vector<64x128xf32>
    %81 = arith.mulf %75, %80 : vector<64x128xf32>
    %82 = vector.broadcast %78 : f32 to vector<64x128xf32>
    %83 = arith.addf %81, %82 : vector<64x128xf32>
    %84 = vector.broadcast %77 : f32 to vector<64x128xf32>
    %85 = arith.mulf %75, %84 : vector<64x128xf32>
    %86 = vector.broadcast %79 : f32 to vector<64x128xf32>
    %87 = arith.addf %85, %86 : vector<64x128xf32>
    %88 = arith.maximumf %83, %87 : vector<64x128xf32>
    %89 = arith.subf %83, %88 : vector<64x128xf32>
    %90 = math.exp %89 : vector<64x128xf32>
    %91 = arith.subf %87, %88 : vector<64x128xf32>
    %92 = math.exp %91 : vector<64x128xf32>
    %93 = arith.addf %90, %92 : vector<64x128xf32>
    %cst_36 = arith.constant 1.000000e+00 : f32
    %94 = vector.broadcast %cst_36 : f32 to vector<64x128xf32>
    %95 = arith.divf %94, %93 : vector<64x128xf32>
    %96 = arith.mulf %90, %95 : vector<64x128xf32>
    %c0_37 = arith.constant 0 : index
    %c0_38 = arith.constant 0 : index
    %97 = vector.load %arg11[%c0_37, %c0_38] : memref<64x128xf32, #tpu.memory_space<vmem>>, vector<64x128xf32>
    tpu.vector_store %arg11[%c0_37, %c0_38], %96 {strides = array<i32>} : memref<64x128xf32, #tpu.memory_space<vmem>>, vector<64x128xf32>,
    %98 = arith.mulf %92, %95 : vector<64x128xf32>
    %c0_39 = arith.constant 0 : index
    %c0_40 = arith.constant 0 : index
    %99 = vector.load %arg12[%c0_39, %c0_40] : memref<64x128xf32, #tpu.memory_space<vmem>>, vector<64x128xf32>
    tpu.vector_store %arg12[%c0_39, %c0_40], %98 {strides = array<i32>} : memref<64x128xf32, #tpu.memory_space<vmem>>, vector<64x128xf32>,
    %100 = math.log %93 : vector<64x128xf32>
    %101 = arith.subf %83, %88 : vector<64x128xf32>
    %102 = arith.subf %101, %100 : vector<64x128xf32>
    %c0_41 = arith.constant 0 : index
    %c0_42 = arith.constant 0 : index
    %103 = vector.load %arg9[%c0_41, %c0_42] : memref<64x128xf32, #tpu.memory_space<vmem>>, vector<64x128xf32>
    tpu.vector_store %arg9[%c0_41, %c0_42], %102 {strides = array<i32>} : memref<64x128xf32, #tpu.memory_space<vmem>>, vector<64x128xf32>,
    %104 = arith.subf %87, %88 : vector<64x128xf32>
    %105 = arith.subf %104, %100 : vector<64x128xf32>
    %c0_43 = arith.constant 0 : index
    %c0_44 = arith.constant 0 : index
    %106 = vector.load %arg10[%c0_43, %c0_44] : memref<64x128xf32, #tpu.memory_space<vmem>>, vector<64x128xf32>
    tpu.vector_store %arg10[%c0_43, %c0_44], %105 {strides = array<i32>} : memref<64x128xf32, #tpu.memory_space<vmem>>, vector<64x128xf32>,
    return
  }
  func.func @transform_0(%arg0: i32) -> (i32, i32) {
    %c0_i32 = arith.constant 0 : i32
    %c0_i32_0 = arith.constant 0 : i32
    %c0_i32_1 = arith.constant 0 : i32
    return %c0_i32, %c0_i32_0 : i32, i32
  }
  func.func @transform_1(%arg0: i32) -> (i32, i32, i32) {
    %c0_i32 = arith.constant 0 : i32
    %c0_i32_0 = arith.constant 0 : i32
    %c0_i32_1 = arith.constant 0 : i32
    return %c0_i32, %c0_i32_0, %arg0 : i32, i32, i32
  }
  func.func @transform_2(%arg0: i32) -> (i32, i32) {
    %c0_i32 = arith.constant 0 : i32
    %c0_i32_0 = arith.constant 0 : i32
    return %c0_i32, %arg0 : i32, i32
  }
  func.func @transform_3(%arg0: i32) -> (i32, i32) {
    %c0_i32 = arith.constant 0 : i32
    %c0_i32_0 = arith.constant 0 : i32
    return %c0_i32, %arg0 : i32, i32
  }
  func.func @transform_4(%arg0: i32) -> (i32, i32) {
    %c0_i32 = arith.constant 0 : i32
    %c0_i32_0 = arith.constant 0 : i32
    return %c0_i32, %arg0 : i32, i32
  }
  func.func @transform_5(%arg0: i32) -> (i32, i32) {
    %c0_i32 = arith.constant 0 : i32
    %c0_i32_0 = arith.constant 0 : i32
    return %c0_i32, %arg0 : i32, i32
  }
  func.func @transform_6(%arg0: i32) -> (i32, i32) {
    %c0_i32 = arith.constant 0 : i32
    %c0_i32_0 = arith.constant 0 : i32
    return %c0_i32, %arg0 : i32, i32
  }
  func.func @transform_7(%arg0: i32) -> i32 {
    %c0_i32 = arith.constant 0 : i32
    %c0_i32_0 = arith.constant 0 : i32
    return %c0_i32 : i32
  }
  func.func @transform_8(%arg0: i32) -> (i32, i32) {
    %c0_i32 = arith.constant 0 : i32
    %c0_i32_0 = arith.constant 0 : i32
    return %c0_i32, %arg0 : i32, i32
  }
  func.func @transform_9(%arg0: i32) -> (i32, i32) {
    %c0_i32 = arith.constant 0 : i32
    %c0_i32_0 = arith.constant 0 : i32
    return %c0_i32, %arg0 : i32, i32
  }
  func.func @transform_10(%arg0: i32) -> (i32, i32) {
    %c0_i32 = arith.constant 0 : i32
    %c0_i32_0 = arith.constant 0 : i32
    return %c0_i32, %arg0 : i32, i32
  }
  func.func @transform_11(%arg0: i32) -> (i32, i32) {
    %c0_i32 = arith.constant 0 : i32
    %c0_i32_0 = arith.constant 0 : i32
    return %c0_i32, %arg0 : i32, i32
  }
}

</mosaic_0001>

<llo_original>
// kernel: tpu_custom_call.1
$region0: #{tpu_custom_call.1}
  #allocation0 [shape = 'u32[]', space=smem, size = 0x4, offset = 0x4, fixed_abs, tag = 'smem constant byte address 0x4 - core index']
  #allocation1 [shape = 'u32[144,128]{1,0:T(1,128)}', space=vmem, size = 0x12000, scoped, tag = 'internal scratch']
  %s0 = inlined_call_operand.vmem [shape: bf16[288,12], index: 0, kind: input, shape index: {}]
  %s1 = inlined_call_operand.vmem [shape: bf16[3,12,128], index: 1, kind: input, shape index: {}]
  %s2 = inlined_call_operand.vmem [shape: f32[1,128], index: 2, kind: input, shape index: {}]
  %s3 = inlined_call_operand.vmem [shape: f32[1,128], index: 3, kind: input, shape index: {}]
  %s4 = inlined_call_operand.vmem [shape: f32[1,128], index: 4, kind: input, shape index: {}]
  %s5 = inlined_call_operand.vmem [shape: f32[1,128], index: 5, kind: input, shape index: {}]
  %s6 = inlined_call_operand.vmem [shape: f32[1,128], index: 6, kind: input, shape index: {}]
  %s7 = inlined_call_operand.vmem [shape: f32[4], index: 7, kind: input, shape index: {}]
  %s8 = inlined_call_operand.hbm [shape: f32[64,128], index: 8, kind: output, shape index: {0}]
  %s9 = inlined_call_operand.hbm [shape: f32[64,128], index: 9, kind: output, shape index: {1}]
  %s10 = inlined_call_operand.hbm [shape: f32[64,128], index: 10, kind: output, shape index: {2}]
  %s11 = inlined_call_operand.hbm [shape: f32[64,128], index: 11, kind: output, shape index: {3}]
  %12 = xla_tuple %s8, %s9, %s10, %s11
  %s13 = sld [smem:[#allocation0]]
  $region70: #{tpu_custom_call.1} parent=0
    _
  %s15 = ssub.s32 1, %s13
  %s16 = scalar_select 0, %s15, %s13
  $region1: #{tpu_custom_call.1} parent=0
    #allocation2 [shape = 'u8[512]{0}', space=smem, size = 0x200, scoped, tag = 'input window, operand 7, single buffered']
    #allocation3 [shape = 's32[1]{0}', space=sflag, size = 0x4, scoped, tag = 'scoped memory for tpu_custom_call.1']
    #allocation4 [shape = 's32[1]{0}', space=sflag, size = 0x4, scoped, tag = 'scoped memory for tpu_custom_call.1']
    #allocation5 [shape = 'u8[32768]{0}', space=vmem, size = 0x8000, scoped, tag = 'output window, operand 0, single buffered']
    #allocation6 [shape = 'u8[32768]{0}', space=vmem, size = 0x8000, scoped, tag = 'output window, operand 1, single buffered']
    #allocation7 [shape = 's32[1]{0}', space=sflag, size = 0x4, scoped, tag = 'scoped memory for tpu_custom_call.1']
    #allocation8 [shape = 'u8[32768]{0}', space=vmem, size = 0x8000, scoped, tag = 'output window, operand 2, single buffered']
    #allocation9 [shape = 'u8[32768]{0}', space=vmem, size = 0x8000, scoped, tag = 'output window, operand 3, single buffered']
    #allocation10 [shape = 's32[1]{0}', space=sflag, size = 0x4, scoped, tag = 'scoped memory for tpu_custom_call.1']
    %17 = vsyncpa [#allocation4], 0
    %18 = vsyncpa [#allocation3], 0
    %19 = vsyncpa [#allocation7], 0
    %20 = vsyncpa [#allocation10], 0
    // Predicated region
    $region2: #{tpu_custom_call.1} parent=1 // pred_check
      _
    $region3: #{tpu_custom_call.1} parent=1 // pred_check_branch
      %22 = sbr.rel (0) target = $region5
    $region4: #{tpu_custom_call.1} parent=1 // pred_region
      _
    $region5: #{tpu_custom_call.1} parent=1 // pred_fallthru
      _
    // Predicated region
    $region6: #{tpu_custom_call.1} parent=1 // pred_check
      _
    $region7: #{tpu_custom_call.1} parent=1 // pred_check_branch
      %24 = sbr.rel (0) target = $region9
    $region8: #{tpu_custom_call.1} parent=1 // pred_region
      _
    $region9: #{tpu_custom_call.1} parent=1 // pred_fallthru
      _
    // Predicated region
    $region10: #{tpu_custom_call.1} parent=1 // pred_check
      _
    $region11: #{tpu_custom_call.1} parent=1 // pred_check_branch
      %26 = sbr.rel (0) target = $region13
    $region12: #{tpu_custom_call.1} parent=1 // pred_region
      _
    $region13: #{tpu_custom_call.1} parent=1 // pred_fallthru
      _
    // Predicated region
    $region14: #{tpu_custom_call.1} parent=1 // pred_check
      _
    $region15: #{tpu_custom_call.1} parent=1 // pred_check_branch
      %28 = sbr.rel (0) target = $region17
    $region16: #{tpu_custom_call.1} parent=1 // pred_region
      _
    $region17: #{tpu_custom_call.1} parent=1 // pred_fallthru
      _
    // Predicated region
    $region18: #{tpu_custom_call.1} parent=1 // pred_check
      _
    $region19: #{tpu_custom_call.1} parent=1 // pred_check_branch
      %30 = sbr.rel (0) target = $region21
    $region20: #{tpu_custom_call.1} parent=1 // pred_region
      _
    $region21: #{tpu_custom_call.1} parent=1 // pred_fallthru
      _
    // Predicated region
    $region22: #{tpu_custom_call.1} parent=1 // pred_check
      _
    $region23: #{tpu_custom_call.1} parent=1 // pred_check_branch
      %32 = sbr.rel (0) target = $region25
    $region24: #{tpu_custom_call.1} parent=1 // pred_region
      _
    $region25: #{tpu_custom_call.1} parent=1 // pred_fallthru
      _
    // Predicated region
    $region26: #{tpu_custom_call.1} parent=1 // pred_check
      _
    $region27: #{tpu_custom_call.1} parent=1 // pred_check_branch
      %34 = sbr.rel (0) target = $region29
    $region28: #{tpu_custom_call.1} parent=1 // pred_region
      _
    $region29: #{tpu_custom_call.1} parent=1 // pred_fallthru
      _
    // Predicated region
    $region30: #{tpu_custom_call.1} parent=1 // pred_check
      _
    $region31: #{tpu_custom_call.1} parent=1 // pred_check_branch
      %36 = sbr.rel (0) target = $region33
    $region32: #{tpu_custom_call.1} parent=1 // pred_region
      %s38 = ssub.s32 16, 16
      %39 = vsyncadd [#allocation4], %s38
      %s41 = sshll.u32 %s7, 4
      %s42 = int_to_ptr.vmem [resolvable:$true] %s41
      %44 = dma.vmem_to_smem %s42, 16, [#allocation2], [#allocation4]
    $region33: #{tpu_custom_call.1} parent=1 // pred_fallthru
      _
    // Predicated region
    $region34: #{tpu_custom_call.1} parent=1 // pred_check
      _
    $region35: #{tpu_custom_call.1} parent=1 // pred_check_branch
      %46 = sbr.rel (0) target = $region37
    $region36: #{tpu_custom_call.1} parent=1 // pred_region
      %47 = dma.done [#allocation4], 16
    $region37: #{tpu_custom_call.1} parent=1 // pred_fallthru
      _
    %48 = sfence
    %v50 = vld [vmem:[%s0] sm:$0xf]
    %v51 = vld [vmem:[%s0 + $0x4] sm:$0xf]
    %v52 = vld [vmem:[%s0 + $0x8] sm:$0xf]
    %v53 = vld [vmem:[%s0 + $0xc] sm:$0xf]
    %v54 = vld [vmem:[%s0 + $0x10] sm:$0xf]
    %v55 = vld [vmem:[%s0 + $0x14] sm:$0xf]
    %v56 = vld [vmem:[%s0 + $0x18] sm:$0xf]
    %v57 = vld [vmem:[%s0 + $0x1c] sm:$0xf]
    %v58 = vld [vmem:[%s0 + $0x20] sm:$0xf]
    %v59 = vld [vmem:[%s0 + $0x24] sm:$0xf]
    %v60 = vld [vmem:[%s0 + $0x28] sm:$0xf]
    %v61 = vld [vmem:[%s0 + $0x2c] sm:$0xf]
    %v62 = vld [vmem:[%s0 + $0x30] sm:$0xf]
    %v63 = vld [vmem:[%s0 + $0x34] sm:$0xf]
    %v64 = vld [vmem:[%s0 + $0x38] sm:$0xf]
    %v65 = vld [vmem:[%s0 + $0x3c] sm:$0xf]
    %v66 = vld [vmem:[%s0 + $0x40] sm:$0xf]
    %v67 = vld [vmem:[%s0 + $0x44] sm:$0xf]
    %v68 = vld [vmem:[%s0 + $0x48] sm:$0xf]
    %v69 = vld [vmem:[%s0 + $0x4c] sm:$0xf]
    %v70 = vld [vmem:[%s0 + $0x50] sm:$0xf]
    %v71 = vld [vmem:[%s0 + $0x54] sm:$0xf]
    %v72 = vld [vmem:[%s0 + $0x58] sm:$0xf]
    %v73 = vld [vmem:[%s0 + $0x5c] sm:$0xf]
    %v74 = vld [vmem:[%s0 + $0x60] sm:$0xf]
    %v75 = vld [vmem:[%s0 + $0x64] sm:$0xf]
    %v76 = vld [vmem:[%s0 + $0x68] sm:$0xf]
    %v77 = vld [vmem:[%s0 + $0x6c] sm:$0xf]
    %v78 = vld [vmem:[%s0 + $0x70] sm:$0xf]
    %v79 = vld [vmem:[%s0 + $0x74] sm:$0xf]
    %v80 = vld [vmem:[%s0 + $0x78] sm:$0xf]
    %v81 = vld [vmem:[%s0 + $0x7c] sm:$0xf]
    %v82 = vld [vmem:[%s1] sm:$0xf]
    %v83 = vld [vmem:[%s1 + $0x4] sm:$0x3]
    %v84 = vld [vmem:[%s0 + $0x80] sm:$0xf]
    %v85 = vld [vmem:[%s0 + $0x84] sm:$0xf]
    %s86 = scalar_lea.vmem %s1, 8
    %v87 = vld [vmem:[%s86] sm:$0xf]
    %v88 = vld [vmem:[%s86 + $0x4] sm:$0x3]
    %v121 = vunpack.c.l.b16 %v52
    %v122 = vunpack.c.l.b16 %v53
    %v123 = vunpack.c.l.b16 %v54
    %v124 = vunpack.c.l.b16 %v55
    %v125 = vunpack.c.l.b16 %v56
    %v126 = vunpack.c.l.b16 %v57
    %v127 = vunpack.c.l.b16 %v58
    %v128 = vunpack.c.l.b16 %v59
    %v129 = vunpack.c.l.b16 %v60
    %v130 = vunpack.c.l.b16 %v61
    %v131 = vunpack.c.l.b16 %v62
    %v132 = vunpack.c.l.b16 %v63
    %v133 = vunpack.c.l.b16 %v64
    %v134 = vunpack.c.l.b16 %v65
    %v135 = vunpack.c.l.b16 %v66
    %v136 = vunpack.c.l.b16 %v67
    %v137 = vunpack.c.l.b16 %v68
    %v138 = vunpack.c.l.b16 %v69
    %v139 = vunpack.c.l.b16 %v70
    %v140 = vunpack.c.l.b16 %v71
    %v141 = vunpack.c.l.b16 %v72
    %v142 = vunpack.c.l.b16 %v73
    %v143 = vunpack.c.l.b16 %v74
    %v144 = vunpack.c.l.b16 %v75
    %v145 = vunpack.c.l.b16 %v76
    %v146 = vunpack.c.l.b16 %v77
    %v147 = vunpack.c.l.b16 %v78
    %v148 = vunpack.c.l.b16 %v79
    %v149 = vunpack.c.l.b16 %v80
    %v150 = vunpack.c.l.b16 %v81
    %v151 = vunpack.c.l.b16 %v84
    %v152 = vunpack.c.l.b16 %v85
    %v153 = vpack.c.b16 %v122, %v121
    %v154 = vpack.c.b16 %v124, %v123
    %v155 = vpack.c.b16 %v126, %v125
    %v156 = vpack.c.b16 %v128, %v127
    %v157 = vpack.c.b16 %v130, %v129
    %v158 = vpack.c.b16 %v132, %v131
    %v159 = vpack.c.b16 %v134, %v133
    %v160 = vpack.c.b16 %v136, %v135
    %v161 = vpack.c.b16 %v138, %v137
    %v162 = vpack.c.b16 %v140, %v139
    %v163 = vpack.c.b16 %v142, %v141
    %v164 = vpack.c.b16 %v144, %v143
    %v165 = vpack.c.b16 %v146, %v145
    %v166 = vpack.c.b16 %v148, %v147
    %v167 = vpack.c.b16 %v150, %v149
    %v168 = vpack.c.b16 %v152, %v151
    %v171 = vunpack.c.l.b16 %v87
    %v172 = vunpack.c.l.b16 %v88
    %v173 = vpack.c.b16 %v172, %v171
    %vm174 = vcmask 97280
    %v176 = vsel %vm174, %v153, 0
    %v179 = vsel %vm174, %v154, 0
    %v182 = vsel %vm174, %v155, 0
    %v185 = vsel %vm174, %v156, 0
    %v188 = vsel %vm174, %v157, 0
    %v191 = vsel %vm174, %v158, 0
    %v194 = vsel %vm174, %v159, 0
    %v197 = vsel %vm174, %v160, 0
    %v200 = vsel %vm174, %v161, 0
    %v203 = vsel %vm174, %v162, 0
    %v206 = vsel %vm174, %v163, 0
    %v209 = vsel %vm174, %v164, 0
    %v212 = vsel %vm174, %v165, 0
    %v215 = vsel %vm174, %v166, 0
    %v218 = vsel %vm174, %v167, 0
    %v221 = vsel %vm174, %v168, 0
    %vm223 = vcmask 1045504
    %v225 = vsel %vm223, %v173, 0
    %227 = vmatprep.subr.bf16.mxu0 0
    %228 = vmatpush1.bf16.msra.mxu0 %v225
    %229 = vmatprep.subr.bf16.mxu0 0
    %230 = vmatpush1.bf16.msra.mxu0 0
    %231 = vmatprep.subr.bf16.mxu0 0
    %232 = vmatpush1.bf16.msra.mxu0 0
    %233 = vmatprep.subr.bf16.mxu0 0
    %234 = vmatpush1.bf16.msra.mxu0 0
    %235 = vmatprep.subr.bf16.mxu0 0
    %236 = vmatpush1.bf16.msra.mxu0 0
    %237 = vmatprep.subr.bf16.mxu0 0
    %238 = vmatpush1.bf16.msra.mxu0 0
    %239 = vmatprep.subr.bf16.mxu0 0
    %240 = vmatpush1.bf16.msra.mxu0 0
    %241 = vmatprep.subr.bf16.mxu0 0
    %242 = vmatpush1.bf16.msra.mxu0 0
    %243 = vmatprep.subr.bf16.mxu0 0
    %244 = vmatpush1.bf16.msra.mxu0 0
    %245 = vmatprep.subr.bf16.mxu0 0
    %246 = vmatpush1.bf16.msra.mxu0 0
    %247 = vmatprep.subr.bf16.mxu0 0
    %248 = vmatpush1.bf16.msra.mxu0 0
    %249 = vmatprep.subr.bf16.mxu0 0
    %250 = vmatpush1.bf16.msra.mxu0 0
    %251 = vmatprep.subr.bf16.mxu0 0
    %252 = vmatpush1.bf16.msra.mxu0 0
    %253 = vmatprep.subr.bf16.mxu0 0
    %254 = vmatpush1.bf16.msra.mxu0 0
    %255 = vmatprep.subr.bf16.mxu0 0
    %256 = vmatpush1.bf16.msra.mxu0 0
    %257 = vmatprep.subr.bf16.mxu0 0
    %258 = vmatpush1.bf16.msra.mxu0 0
    %259 = vmatprep.mubr.bf16.mxu0 0
    %260 = vmatmul.mubr.bf16.gmra.mrb[0].mxu0 %v176
    %v261 = vpop.f32.mrb[0].mxu0
    %v262 = vadd.f32 0.0, %v261
    %v263 = vpop.f32.mrb[0].mxu0
    %v264 = vpop.f32.mrb[0].mxu0
    %v265 = vadd.f32 0.0, %v264
    %v266 = vpop.f32.mrb[0].mxu0
    %267 = vmatprep.mubr.bf16.mxu0 0
    %268 = vmatmul.mubr.bf16.gmra.mrb[0].mxu0 %v179
    %v269 = vpop.f32.mrb[0].mxu0
    %v270 = vadd.f32 0.0, %v269
    %v271 = vpop.f32.mrb[0].mxu0
    %v272 = vpop.f32.mrb[0].mxu0
    %v273 = vadd.f32 0.0, %v272
    %v274 = vpop.f32.mrb[0].mxu0
    %275 = vmatprep.mubr.bf16.mxu0 0
    %276 = vmatmul.mubr.bf16.gmra.mrb[0].mxu0 %v182
    %v277 = vpop.f32.mrb[0].mxu0
    %v278 = vadd.f32 0.0, %v277
    %v279 = vpop.f32.mrb[0].mxu0
    %v280 = vpop.f32.mrb[0].mxu0
    %v281 = vadd.f32 0.0, %v280
    %v282 = vpop.f32.mrb[0].mxu0
    %283 = vmatprep.mubr.bf16.mxu0 0
    %284 = vmatmul.mubr.bf16.gmra.mrb[0].mxu0 %v185
    %v285 = vpop.f32.mrb[0].mxu0
    %v286 = vadd.f32 0.0, %v285
    %v287 = vpop.f32.mrb[0].mxu0
    %v288 = vpop.f32.mrb[0].mxu0
    %v289 = vadd.f32 0.0, %v288
    %v290 = vpop.f32.mrb[0].mxu0
    %291 = vmatprep.mubr.bf16.mxu0 0
    %292 = vmatmul.mubr.bf16.gmra.mrb[0].mxu0 %v188
    %v293 = vpop.f32.mrb[0].mxu0
    %v294 = vadd.f32 0.0, %v293
    %v295 = vpop.f32.mrb[0].mxu0
    %v296 = vpop.f32.mrb[0].mxu0
    %v297 = vadd.f32 0.0, %v296
    %v298 = vpop.f32.mrb[0].mxu0
    %299 = vmatprep.mubr.bf16.mxu0 0
    %300 = vmatmul.mubr.bf16.gmra.mrb[0].mxu0 %v191
    %v301 = vpop.f32.mrb[0].mxu0
    %v302 = vadd.f32 0.0, %v301
    %v303 = vpop.f32.mrb[0].mxu0
    %v304 = vpop.f32.mrb[0].mxu0
    %v305 = vadd.f32 0.0, %v304
    %v306 = vpop.f32.mrb[0].mxu0
    %307 = vmatprep.mubr.bf16.mxu0 0
    %308 = vmatmul.mubr.bf16.gmra.mrb[0].mxu0 %v194
    %v309 = vpop.f32.mrb[0].mxu0
    %v310 = vadd.f32 0.0, %v309
    %v311 = vpop.f32.mrb[0].mxu0
    %v312 = vpop.f32.mrb[0].mxu0
    %v313 = vadd.f32 0.0, %v312
    %v314 = vpop.f32.mrb[0].mxu0
    %315 = vmatprep.mubr.bf16.mxu0 0
    %316 = vmatmul.mubr.bf16.gmra.mrb[0].mxu0 %v197
    %v317 = vpop.f32.mrb[0].mxu0
    %v318 = vadd.f32 0.0, %v317
    %v319 = vpop.f32.mrb[0].mxu0
    %v320 = vpop.f32.mrb[0].mxu0
    %v321 = vadd.f32 0.0, %v320
    %v322 = vpop.f32.mrb[0].mxu0
    %323 = vmatprep.mubr.bf16.mxu0 0
    %324 = vmatmul.mubr.bf16.gmra.mrb[0].mxu0 %v200
    %v325 = vpop.f32.mrb[0].mxu0
    %v326 = vadd.f32 0.0, %v325
    %v327 = vpop.f32.mrb[0].mxu0
    %v328 = vpop.f32.mrb[0].mxu0
    %v329 = vadd.f32 0.0, %v328
    %v330 = vpop.f32.mrb[0].mxu0
    %331 = vmatprep.mubr.bf16.mxu0 0
    %332 = vmatmul.mubr.bf16.gmra.mrb[0].mxu0 %v203
    %v333 = vpop.f32.mrb[0].mxu0
    %v334 = vadd.f32 0.0, %v333
    %v335 = vpop.f32.mrb[0].mxu0
    %v336 = vpop.f32.mrb[0].mxu0
    %v337 = vadd.f32 0.0, %v336
    %v338 = vpop.f32.mrb[0].mxu0
    %339 = vmatprep.mubr.bf16.mxu0 0
    %340 = vmatmul.mubr.bf16.gmra.mrb[0].mxu0 %v206
    %v341 = vpop.f32.mrb[0].mxu0
    %v342 = vadd.f32 0.0, %v341
    %v343 = vpop.f32.mrb[0].mxu0
    %v344 = vpop.f32.mrb[0].mxu0
    %v345 = vadd.f32 0.0, %v344
    %v346 = vpop.f32.mrb[0].mxu0
    %347 = vmatprep.mubr.bf16.mxu0 0
    %348 = vmatmul.mubr.bf16.gmra.mrb[0].mxu0 %v209
    %v349 = vpop.f32.mrb[0].mxu0
    %v350 = vadd.f32 0.0, %v349
    %v351 = vpop.f32.mrb[0].mxu0
    %v352 = vpop.f32.mrb[0].mxu0
    %v353 = vadd.f32 0.0, %v352
    %v354 = vpop.f32.mrb[0].mxu0
    %355 = vmatprep.mubr.bf16.mxu0 0
    %356 = vmatmul.mubr.bf16.gmra.mrb[0].mxu0 %v212
    %v357 = vpop.f32.mrb[0].mxu0
    %v358 = vadd.f32 0.0, %v357
    %v359 = vpop.f32.mrb[0].mxu0
    %v360 = vpop.f32.mrb[0].mxu0
    %v361 = vadd.f32 0.0, %v360
    %v362 = vpop.f32.mrb[0].mxu0
    %363 = vmatprep.mubr.bf16.mxu0 0
    %364 = vmatmul.mubr.bf16.gmra.mrb[0].mxu0 %v215
    %v365 = vpop.f32.mrb[0].mxu0
    %v366 = vadd.f32 0.0, %v365
    %v367 = vpop.f32.mrb[0].mxu0
    %v368 = vpop.f32.mrb[0].mxu0
    %v369 = vadd.f32 0.0, %v368
    %v370 = vpop.f32.mrb[0].mxu0
    %371 = vmatprep.mubr.bf16.mxu0 0
    %372 = vmatmul.mubr.bf16.gmra.mrb[0].mxu0 %v218
    %v373 = vpop.f32.mrb[0].mxu0
    %v374 = vadd.f32 0.0, %v373
    %v375 = vpop.f32.mrb[0].mxu0
    %v376 = vpop.f32.mrb[0].mxu0
    %v377 = vadd.f32 0.0, %v376
    %v378 = vpop.f32.mrb[0].mxu0
    %379 = vmatprep.mubr.bf16.mxu0 0
    %380 = vmatmul.mubr.bf16.gmra.mrb[0].mxu0 %v221
    %v381 = vpop.f32.mrb[0].mxu0
    %v382 = vadd.f32 0.0, %v381
    %v383 = vpop.f32.mrb[0].mxu0
    %v384 = vpop.f32.mrb[0].mxu0
    %v385 = vadd.f32 0.0, %v384
    %v386 = vpop.f32.mrb[0].mxu0
    %387 = vdwg.mxu0
    %v390 = vunpack.c.l.b16 %v50
    %v391 = vunpack.c.l.b16 %v51
    %v392 = vpack.c.b16 %v391, %v390
    %v395 = vunpack.c.l.b16 %v82
    %v396 = vunpack.c.l.b16 %v83
    %v397 = vpack.c.b16 %v396, %v395
    %v399 = vsel %vm174, %v392, 0
    %v402 = vsel %vm223, %v397, 0
    %404 = vmatprep.subr.bf16.mxu0 0
    %405 = vmatpush1.bf16.msra.mxu0 %v402
    %406 = vmatprep.subr.bf16.mxu0 0
    %407 = vmatpush1.bf16.msra.mxu0 0
    %408 = vmatprep.subr.bf16.mxu0 0
    %409 = vmatpush1.bf16.msra.mxu0 0
    %410 = vmatprep.subr.bf16.mxu0 0
    %411 = vmatpush1.bf16.msra.mxu0 0
    %412 = vmatprep.subr.bf16.mxu0 0
    %413 = vmatpush1.bf16.msra.mxu0 0
    %414 = vmatprep.subr.bf16.mxu0 0
    %415 = vmatpush1.bf16.msra.mxu0 0
    %416 = vmatprep.subr.bf16.mxu0 0
    %417 = vmatpush1.bf16.msra.mxu0 0
    %418 = vmatprep.subr.bf16.mxu0 0
    %419 = vmatpush1.bf16.msra.mxu0 0
    %420 = vmatprep.subr.bf16.mxu0 0
    %421 = vmatpush1.bf16.msra.mxu0 0
    %422 = vmatprep.subr.bf16.mxu0 0
    %423 = vmatpush1.bf16.msra.mxu0 0
    %424 = vmatprep.subr.bf16.mxu0 0
    %425 = vmatpush1.bf16.msra.mxu0 0
    %426 = vmatprep.subr.bf16.mxu0 0
    %427 = vmatpush1.bf16.msra.mxu0 0
    %428 = vmatprep.subr.bf16.mxu0 0
    %429 = vmatpush1.bf16.msra.mxu0 0
    %430 = vmatprep.subr.bf16.mxu0 0
    %431 = vmatpush1.bf16.msra.mxu0 0
    %432 = vmatprep.subr.bf16.mxu0 0
    %433 = vmatpush1.bf16.msra.mxu0 0
    %434 = vmatprep.subr.bf16.mxu0 0
    %435 = vmatpush1.bf16.msra.mxu0 0
    %436 = vmatprep.mubr.bf16.mxu0 0
    %437 = vmatmul.mubr.bf16.gmra.mrb[0].mxu0 %v399
    %v438 = vpop.f32.mrb[0].mxu0
    %v439 = vadd.f32 %v262, %v438
    %v440 = vpop.f32.mrb[0].mxu0
    %v441 = vpop.f32.mrb[0].mxu0
    %v442 = vadd.f32 %v265, %v441
    %v443 = vpop.f32.mrb[0].mxu0
    %444 = vmatprep.mubr.bf16.mxu0 0
    %445 = vmatmul.mubr.bf16.gmra.mrb[0].mxu0 %v176
    %v446 = vpop.f32.mrb[0].mxu0
    %v447 = vadd.f32 %v270, %v446
    %v448 = vpop.f32.mrb[0].mxu0
    %v449 = vpop.f32.mrb[0].mxu0
    %v450 = vadd.f32 %v273, %v449
    %v451 = vpop.f32.mrb[0].mxu0
    %452 = vmatprep.mubr.bf16.mxu0 0
    %453 = vmatmul.mubr.bf16.gmra.mrb[0].mxu0 %v179
    %v454 = vpop.f32.mrb[0].mxu0
    %v455 = vadd.f32 %v278, %v454
    %v456 = vpop.f32.mrb[0].mxu0
    %v457 = vpop.f32.mrb[0].mxu0
    %v458 = vadd.f32 %v281, %v457
    %v459 = vpop.f32.mrb[0].mxu0
    %460 = vmatprep.mubr.bf16.mxu0 0
    %461 = vmatmul.mubr.bf16.gmra.mrb[0].mxu0 %v182
    %v462 = vpop.f32.mrb[0].mxu0
    %v463 = vadd.f32 %v286, %v462
    %v464 = vpop.f32.mrb[0].mxu0
    %v465 = vpop.f32.mrb[0].mxu0
    %v466 = vadd.f32 %v289, %v465
    %v467 = vpop.f32.mrb[0].mxu0
    %468 = vmatprep.mubr.bf16.mxu0 0
    %469 = vmatmul.mubr.bf16.gmra.mrb[0].mxu0 %v185
    %v470 = vpop.f32.mrb[0].mxu0
    %v471 = vadd.f32 %v294, %v470
    %v472 = vpop.f32.mrb[0].mxu0
    %v473 = vpop.f32.mrb[0].mxu0
    %v474 = vadd.f32 %v297, %v473
    %v475 = vpop.f32.mrb[0].mxu0
    %476 = vmatprep.mubr.bf16.mxu0 0
    %477 = vmatmul.mubr.bf16.gmra.mrb[0].mxu0 %v188
    %v478 = vpop.f32.mrb[0].mxu0
    %v479 = vadd.f32 %v302, %v478
    %v480 = vpop.f32.mrb[0].mxu0
    %v481 = vpop.f32.mrb[0].mxu0
    %v482 = vadd.f32 %v305, %v481
    %v483 = vpop.f32.mrb[0].mxu0
    %484 = vmatprep.mubr.bf16.mxu0 0
    %485 = vmatmul.mubr.bf16.gmra.mrb[0].mxu0 %v191
    %v486 = vpop.f32.mrb[0].mxu0
    %v487 = vadd.f32 %v310, %v486
    %v488 = vpop.f32.mrb[0].mxu0
    %v489 = vpop.f32.mrb[0].mxu0
    %v490 = vadd.f32 %v313, %v489
    %v491 = vpop.f32.mrb[0].mxu0
    %492 = vmatprep.mubr.bf16.mxu0 0
    %493 = vmatmul.mubr.bf16.gmra.mrb[0].mxu0 %v194
    %v494 = vpop.f32.mrb[0].mxu0
    %v495 = vadd.f32 %v318, %v494
    %v496 = vpop.f32.mrb[0].mxu0
    %v497 = vpop.f32.mrb[0].mxu0
    %v498 = vadd.f32 %v321, %v497
    %v499 = vpop.f32.mrb[0].mxu0
    %500 = vmatprep.mubr.bf16.mxu0 0
    %501 = vmatmul.mubr.bf16.gmra.mrb[0].mxu0 %v197
    %v502 = vpop.f32.mrb[0].mxu0
    %v503 = vadd.f32 %v326, %v502
    %v504 = vpop.f32.mrb[0].mxu0
    %v505 = vpop.f32.mrb[0].mxu0
    %v506 = vadd.f32 %v329, %v505
    %v507 = vpop.f32.mrb[0].mxu0
    %508 = vmatprep.mubr.bf16.mxu0 0
    %509 = vmatmul.mubr.bf16.gmra.mrb[0].mxu0 %v200
    %v510 = vpop.f32.mrb[0].mxu0
    %v511 = vadd.f32 %v334, %v510
    %v512 = vpop.f32.mrb[0].mxu0
    %v513 = vpop.f32.mrb[0].mxu0
    %v514 = vadd.f32 %v337, %v513
    %v515 = vpop.f32.mrb[0].mxu0
    %516 = vmatprep.mubr.bf16.mxu0 0
    %517 = vmatmul.mubr.bf16.gmra.mrb[0].mxu0 %v203
    %v518 = vpop.f32.mrb[0].mxu0
    %v519 = vadd.f32 %v342, %v518
    %v520 = vpop.f32.mrb[0].mxu0
    %v521 = vpop.f32.mrb[0].mxu0
    %v522 = vadd.f32 %v345, %v521
    %v523 = vpop.f32.mrb[0].mxu0
    %524 = vmatprep.mubr.bf16.mxu0 0
    %525 = vmatmul.mubr.bf16.gmra.mrb[0].mxu0 %v206
    %v526 = vpop.f32.mrb[0].mxu0
    %v527 = vadd.f32 %v350, %v526
    %v528 = vpop.f32.mrb[0].mxu0
    %v529 = vpop.f32.mrb[0].mxu0
    %v530 = vadd.f32 %v353, %v529
    %v531 = vpop.f32.mrb[0].mxu0
    %532 = vmatprep.mubr.bf16.mxu0 0
    %533 = vmatmul.mubr.bf16.gmra.mrb[0].mxu0 %v209
    %v534 = vpop.f32.mrb[0].mxu0
    %v535 = vadd.f32 %v358, %v534
    %v536 = vpop.f32.mrb[0].mxu0
    %v537 = vpop.f32.mrb[0].mxu0
    %v538 = vadd.f32 %v361, %v537
    %v539 = vpop.f32.mrb[0].mxu0
    %540 = vmatprep.mubr.bf16.mxu0 0
    %541 = vmatmul.mubr.bf16.gmra.mrb[0].mxu0 %v212
    %v542 = vpop.f32.mrb[0].mxu0
    %v543 = vadd.f32 %v366, %v542
    %v544 = vpop.f32.mrb[0].mxu0
    %v545 = vpop.f32.mrb[0].mxu0
    %v546 = vadd.f32 %v369, %v545
    %v547 = vpop.f32.mrb[0].mxu0
    %548 = vmatprep.mubr.bf16.mxu0 0
    %549 = vmatmul.mubr.bf16.gmra.mrb[0].mxu0 %v215
    %v550 = vpop.f32.mrb[0].mxu0
    %v551 = vadd.f32 %v374, %v550
    %v552 = vpop.f32.mrb[0].mxu0
    %v553 = vpop.f32.mrb[0].mxu0
    %v554 = vadd.f32 %v377, %v553
    %v555 = vpop.f32.mrb[0].mxu0
    %556 = vmatprep.mubr.bf16.mxu0 0
    %557 = vmatmul.mubr.bf16.gmra.mrb[0].mxu0 %v218
    %v558 = vpop.f32.mrb[0].mxu0
    %v559 = vadd.f32 %v382, %v558
    %v560 = vpop.f32.mrb[0].mxu0
    %v561 = vpop.f32.mrb[0].mxu0
    %v562 = vadd.f32 %v385, %v561
    %v563 = vpop.f32.mrb[0].mxu0
    %564 = vdwg.mxu0
    %v565 = vld [vmem:[%s0 + $0x10] sm:$0xf]
    %v566 = vld [vmem:[%s0 + $0x14] sm:$0xf]
    %v567 = vld [vmem:[%s0 + $0x18] sm:$0xf]
    %v568 = vld [vmem:[%s0 + $0x1c] sm:$0xf]
    %v569 = vld [vmem:[%s0 + $0x20] sm:$0xf]
    %v570 = vld [vmem:[%s0 + $0x24] sm:$0xf]
    %v571 = vld [vmem:[%s0 + $0x28] sm:$0xf]
    %v572 = vld [vmem:[%s0 + $0x2c] sm:$0xf]
    %v573 = vld [vmem:[%s0 + $0x30] sm:$0xf]
    %v574 = vld [vmem:[%s0 + $0x34] sm:$0xf]
    %v575 = vld [vmem:[%s0 + $0x38] sm:$0xf]
    %v576 = vld [vmem:[%s0 + $0x3c] sm:$0xf]
    %v577 = vld [vmem:[%s0 + $0x40] sm:$0xf]
    %v578 = vld [vmem:[%s0 + $0x44] sm:$0xf]
    %v579 = vld [vmem:[%s0 + $0x48] sm:$0xf]
    %v580 = vld [vmem:[%s0 + $0x4c] sm:$0xf]
    %v581 = vld [vmem:[%s0 + $0x50] sm:$0xf]
    %v582 = vld [vmem:[%s0 + $0x54] sm:$0xf]
    %v583 = vld [vmem:[%s0 + $0x58] sm:$0xf]
    %v584 = vld [vmem:[%s0 + $0x5c] sm:$0xf]
    %v585 = vld [vmem:[%s0 + $0x60] sm:$0xf]
    %v586 = vld [vmem:[%s0 + $0x64] sm:$0xf]
    %v587 = vld [vmem:[%s0 + $0x68] sm:$0xf]
    %v588 = vld [vmem:[%s0 + $0x6c] sm:$0xf]
    %v589 = vld [vmem:[%s0 + $0x70] sm:$0xf]
    %v590 = vld [vmem:[%s0 + $0x74] sm:$0xf]
    %v591 = vld [vmem:[%s0 + $0x78] sm:$0xf]
    %v592 = vld [vmem:[%s0 + $0x7c] sm:$0xf]
    %v593 = vld [vmem:[%s0 + $0x80] sm:$0xf]
    %v594 = vld [vmem:[%s0 + $0x84] sm:$0xf]
    %v595 = vld [vmem:[%s0 + $0x88] sm:$0xf]
    %v596 = vld [vmem:[%s0 + $0x8c] sm:$0xf]
    %s597 = scalar_lea.vmem %s1, 16
    %v598 = vld [vmem:[%s597] sm:$0xf]
    %v599 = vld [vmem:[%s597 + $0x4] sm:$0x3]
    %v632 = vunpack.c.l.b16 %v565
    %v633 = vunpack.c.l.b16 %v566
    %v634 = vunpack.c.l.b16 %v567
    %v635 = vunpack.c.l.b16 %v568
    %v636 = vunpack.c.l.b16 %v569
    %v637 = vunpack.c.l.b16 %v570
    %v638 = vunpack.c.l.b16 %v571
    %v639 = vunpack.c.l.b16 %v572
    %v640 = vunpack.c.l.b16 %v573
    %v641 = vunpack.c.l.b16 %v574
    %v642 = vunpack.c.l.b16 %v575
    %v643 = vunpack.c.l.b16 %v576
    %v644 = vunpack.c.l.b16 %v577
    %v645 = vunpack.c.l.b16 %v578
    %v646 = vunpack.c.l.b16 %v579
    %v647 = vunpack.c.l.b16 %v580
    %v648 = vunpack.c.l.b16 %v581
    %v649 = vunpack.c.l.b16 %v582
    %v650 = vunpack.c.l.b16 %v583
    %v651 = vunpack.c.l.b16 %v584
    %v652 = vunpack.c.l.b16 %v585
    %v653 = vunpack.c.l.b16 %v586
    %v654 = vunpack.c.l.b16 %v587
    %v655 = vunpack.c.l.b16 %v588
    %v656 = vunpack.c.l.b16 %v589
    %v657 = vunpack.c.l.b16 %v590
    %v658 = vunpack.c.l.b16 %v591
    %v659 = vunpack.c.l.b16 %v592
    %v660 = vunpack.c.l.b16 %v593
    %v661 = vunpack.c.l.b16 %v594
    %v662 = vunpack.c.l.b16 %v595
    %v663 = vunpack.c.l.b16 %v596
    %v664 = vpack.c.b16 %v633, %v632
    %v665 = vpack.c.b16 %v635, %v634
    %v666 = vpack.c.b16 %v637, %v636
    %v667 = vpack.c.b16 %v639, %v638
    %v668 = vpack.c.b16 %v641, %v640
    %v669 = vpack.c.b16 %v643, %v642
    %v670 = vpack.c.b16 %v645, %v644
    %v671 = vpack.c.b16 %v647, %v646
    %v672 = vpack.c.b16 %v649, %v648
    %v673 = vpack.c.b16 %v651, %v650
    %v674 = vpack.c.b16 %v653, %v652
    %v675 = vpack.c.b16 %v655, %v654
    %v676 = vpack.c.b16 %v657, %v656
    %v677 = vpack.c.b16 %v659, %v658
    %v678 = vpack.c.b16 %v661, %v660
    %v679 = vpack.c.b16 %v663, %v662
    %v682 = vunpack.c.l.b16 %v598
    %v683 = vunpack.c.l.b16 %v599
    %v684 = vpack.c.b16 %v683, %v682
    %v686 = vsel %vm174, %v664, 0
    %v689 = vsel %vm174, %v665, 0
    %v692 = vsel %vm174, %v666, 0
    %v695 = vsel %vm174, %v667, 0
    %v698 = vsel %vm174, %v668, 0
    %v701 = vsel %vm174, %v669, 0
    %v704 = vsel %vm174, %v670, 0
    %v707 = vsel %vm174, %v671, 0
    %v710 = vsel %vm174, %v672, 0
    %v713 = vsel %vm174, %v673, 0
    %v716 = vsel %vm174, %v674, 0
    %v719 = vsel %vm174, %v675, 0
    %v722 = vsel %vm174, %v676, 0
    %v725 = vsel %vm174, %v677, 0
    %v728 = vsel %vm174, %v678, 0
    %v731 = vsel %vm174, %v679, 0
    %v734 = vsel %vm223, %v684, 0
    %736 = vmatprep.subr.bf16.mxu0 0
    %737 = vmatpush1.bf16.msra.mxu0 %v734
    %738 = vmatprep.subr.bf16.mxu0 0
    %739 = vmatpush1.bf16.msra.mxu0 0
    %740 = vmatprep.subr.bf16.mxu0 0
    %741 = vmatpush1.bf16.msra.mxu0 0
    %742 = vmatprep.subr.bf16.mxu0 0
    %743 = vmatpush1.bf16.msra.mxu0 0
    %744 = vmatprep.subr.bf16.mxu0 0
    %745 = vmatpush1.bf16.msra.mxu0 0
    %746 = vmatprep.subr.bf16.mxu0 0
    %747 = vmatpush1.bf16.msra.mxu0 0
    %748 = vmatprep.subr.bf16.mxu0 0
    %749 = vmatpush1.bf16.msra.mxu0 0
    %750 = vmatprep.subr.bf16.mxu0 0
    %751 = vmatpush1.bf16.msra.mxu0 0
    %752 = vmatprep.subr.bf16.mxu0 0
    %753 = vmatpush1.bf16.msra.mxu0 0
    %754 = vmatprep.subr.bf16.mxu0 0
    %755 = vmatpush1.bf16.msra.mxu0 0
    %756 = vmatprep.subr.bf16.mxu0 0
    %757 = vmatpush1.bf16.msra.mxu0 0
    %758 = vmatprep.subr.bf16.mxu0 0
    %759 = vmatpush1.bf16.msra.mxu0 0
    %760 = vmatprep.subr.bf16.mxu0 0
    %761 = vmatpush1.bf16.msra.mxu0 0
    %762 = vmatprep.subr.bf16.mxu0 0
    %763 = vmatpush1.bf16.msra.mxu0 0
    %764 = vmatprep.subr.bf16.mxu0 0
    %765 = vmatpush1.bf16.msra.mxu0 0
    %766 = vmatprep.subr.bf16.mxu0 0
    %767 = vmatpush1.bf16.msra.mxu0 0
    %768 = vmatprep.mubr.bf16.mxu0 0
    %769 = vmatmul.mubr.bf16.gmra.mrb[0].mxu0 %v686
    %v770 = vpop.f32.mrb[0].mxu0
    %v771 = vadd.f32 0.0, %v770
    %v772 = vpop.f32.mrb[0].mxu0
    %v773 = vpop.f32.mrb[0].mxu0
    %v774 = vadd.f32 0.0, %v773
    %v775 = vpop.f32.mrb[0].mxu0
    %776 = vmatprep.mubr.bf16.mxu0 0
    %777 = vmatmul.mubr.bf16.gmra.mrb[0].mxu0 %v689
    %v778 = vpop.f32.mrb[0].mxu0
    %v779 = vadd.f32 0.0, %v778
    %v780 = vpop.f32.mrb[0].mxu0
    %v781 = vpop.f32.mrb[0].mxu0
    %v782 = vadd.f32 0.0, %v781
    %v783 = vpop.f32.mrb[0].mxu0
    %784 = vmatprep.mubr.bf16.mxu0 0
    %785 = vmatmul.mubr.bf16.gmra.mrb[0].mxu0 %v692
    %v786 = vpop.f32.mrb[0].mxu0
    %v787 = vadd.f32 0.0, %v786
    %v788 = vpop.f32.mrb[0].mxu0
    %v789 = vpop.f32.mrb[0].mxu0
    %v790 = vadd.f32 0.0, %v789
    %v791 = vpop.f32.mrb[0].mxu0
    %792 = vmatprep.mubr.bf16.mxu0 0
    %793 = vmatmul.mubr.bf16.gmra.mrb[0].mxu0 %v695
    %v794 = vpop.f32.mrb[0].mxu0
    %v795 = vadd.f32 0.0, %v794
    %v796 = vpop.f32.mrb[0].mxu0
    %v797 = vpop.f32.mrb[0].mxu0
    %v798 = vadd.f32 0.0, %v797
    %v799 = vpop.f32.mrb[0].mxu0
    %800 = vmatprep.mubr.bf16.mxu0 0
    %801 = vmatmul.mubr.bf16.gmra.mrb[0].mxu0 %v698
    %v802 = vpop.f32.mrb[0].mxu0
    %v803 = vadd.f32 0.0, %v802
    %v804 = vpop.f32.mrb[0].mxu0
    %v805 = vpop.f32.mrb[0].mxu0
    %v806 = vadd.f32 0.0, %v805
    %v807 = vpop.f32.mrb[0].mxu0
    %808 = vmatprep.mubr.bf16.mxu0 0
    %809 = vmatmul.mubr.bf16.gmra.mrb[0].mxu0 %v701
    %v810 = vpop.f32.mrb[0].mxu0
    %v811 = vadd.f32 0.0, %v810
    %v812 = vpop.f32.mrb[0].mxu0
    %v813 = vpop.f32.mrb[0].mxu0
    %v814 = vadd.f32 0.0, %v813
    %v815 = vpop.f32.mrb[0].mxu0
    %816 = vmatprep.mubr.bf16.mxu0 0
    %817 = vmatmul.mubr.bf16.gmra.mrb[0].mxu0 %v704
    %v818 = vpop.f32.mrb[0].mxu0
    %v819 = vadd.f32 0.0, %v818
    %v820 = vpop.f32.mrb[0].mxu0
    %v821 = vpop.f32.mrb[0].mxu0
    %v822 = vadd.f32 0.0, %v821
    %v823 = vpop.f32.mrb[0].mxu0
    %824 = vmatprep.mubr.bf16.mxu0 0
    %825 = vmatmul.mubr.bf16.gmra.mrb[0].mxu0 %v707
    %v826 = vpop.f32.mrb[0].mxu0
    %v827 = vadd.f32 0.0, %v826
    %v828 = vpop.f32.mrb[0].mxu0
    %v829 = vpop.f32.mrb[0].mxu0
    %v830 = vadd.f32 0.0, %v829
    %v831 = vpop.f32.mrb[0].mxu0
    %832 = vmatprep.mubr.bf16.mxu0 0
    %833 = vmatmul.mubr.bf16.gmra.mrb[0].mxu0 %v710
    %v834 = vpop.f32.mrb[0].mxu0
    %v835 = vadd.f32 0.0, %v834
    %v836 = vpop.f32.mrb[0].mxu0
    %v837 = vpop.f32.mrb[0].mxu0
    %v838 = vadd.f32 0.0, %v837
    %v839 = vpop.f32.mrb[0].mxu0
    %840 = vmatprep.mubr.bf16.mxu0 0
    %841 = vmatmul.mubr.bf16.gmra.mrb[0].mxu0 %v713
    %v842 = vpop.f32.mrb[0].mxu0
    %v843 = vadd.f32 0.0, %v842
    %v844 = vpop.f32.mrb[0].mxu0
    %v845 = vpop.f32.mrb[0].mxu0
    %v846 = vadd.f32 0.0, %v845
    %v847 = vpop.f32.mrb[0].mxu0
    %848 = vmatprep.mubr.bf16.mxu0 0
    %849 = vmatmul.mubr.bf16.gmra.mrb[0].mxu0 %v716
    %v850 = vpop.f32.mrb[0].mxu0
    %v851 = vadd.f32 0.0, %v850
    %v852 = vpop.f32.mrb[0].mxu0
    %v853 = vpop.f32.mrb[0].mxu0
    %v854 = vadd.f32 0.0, %v853
    %v855 = vpop.f32.mrb[0].mxu0
    %856 = vmatprep.mubr.bf16.mxu0 0
    %857 = vmatmul.mubr.bf16.gmra.mrb[0].mxu0 %v719
    %v858 = vpop.f32.mrb[0].mxu0
    %v859 = vadd.f32 0.0, %v858
    %v860 = vpop.f32.mrb[0].mxu0
    %v861 = vpop.f32.mrb[0].mxu0
    %v862 = vadd.f32 0.0, %v861
    %v863 = vpop.f32.mrb[0].mxu0
    %864 = vmatprep.mubr.bf16.mxu0 0
    %865 = vmatmul.mubr.bf16.gmra.mrb[0].mxu0 %v722
    %v866 = vpop.f32.mrb[0].mxu0
    %v867 = vadd.f32 0.0, %v866
    %v868 = vpop.f32.mrb[0].mxu0
    %v869 = vpop.f32.mrb[0].mxu0
    %v870 = vadd.f32 0.0, %v869
    %v871 = vpop.f32.mrb[0].mxu0
    %872 = vmatprep.mubr.bf16.mxu0 0
    %873 = vmatmul.mubr.bf16.gmra.mrb[0].mxu0 %v725
    %v874 = vpop.f32.mrb[0].mxu0
    %v875 = vadd.f32 0.0, %v874
    %v876 = vpop.f32.mrb[0].mxu0
    %v877 = vpop.f32.mrb[0].mxu0
    %v878 = vadd.f32 0.0, %v877
    %v879 = vpop.f32.mrb[0].mxu0
    %880 = vmatprep.mubr.bf16.mxu0 0
    %881 = vmatmul.mubr.bf16.gmra.mrb[0].mxu0 %v728
    %v882 = vpop.f32.mrb[0].mxu0
    %v883 = vadd.f32 0.0, %v882
    %v884 = vpop.f32.mrb[0].mxu0
    %v885 = vpop.f32.mrb[0].mxu0
    %v886 = vadd.f32 0.0, %v885
    %v887 = vpop.f32.mrb[0].mxu0
    %888 = vmatprep.mubr.bf16.mxu0 0
    %889 = vmatmul.mubr.bf16.gmra.mrb[0].mxu0 %v731
    %v890 = vpop.f32.mrb[0].mxu0
    %v891 = vadd.f32 0.0, %v890
    %v892 = vpop.f32.mrb[0].mxu0
    %v893 = vpop.f32.mrb[0].mxu0
    %v894 = vadd.f32 0.0, %v893
    %v895 = vpop.f32.mrb[0].mxu0
    %896 = vdwg.mxu0
    %v897 = vadd.f32 %v439, %v771
    %v898 = vadd.f32 %v442, %v774
    %v899 = vadd.f32 %v447, %v779
    %v900 = vadd.f32 %v450, %v782
    %v901 = vadd.f32 %v455, %v787
    %v902 = vadd.f32 %v458, %v790
    %v903 = vadd.f32 %v463, %v795
    %v904 = vadd.f32 %v466, %v798
    %v905 = vadd.f32 %v471, %v803
    %v906 = vadd.f32 %v474, %v806
    %v907 = vadd.f32 %v479, %v811
    %v908 = vadd.f32 %v482, %v814
    %v909 = vadd.f32 %v487, %v819
    %v910 = vadd.f32 %v490, %v822
    %v911 = vadd.f32 %v495, %v827
    %v912 = vadd.f32 %v498, %v830
    %v913 = vadd.f32 %v503, %v835
    %v914 = vadd.f32 %v506, %v838
    %v915 = vadd.f32 %v511, %v843
    %v916 = vadd.f32 %v514, %v846
    %v917 = vadd.f32 %v519, %v851
    %v918 = vadd.f32 %v522, %v854
    %v919 = vadd.f32 %v527, %v859
    %v920 = vadd.f32 %v530, %v862
    %v921 = vadd.f32 %v535, %v867
    %v922 = vadd.f32 %v538, %v870
    %v923 = vadd.f32 %v543, %v875
    %v924 = vadd.f32 %v546, %v878
    %v925 = vadd.f32 %v551, %v883
    %v926 = vadd.f32 %v554, %v886
    %v927 = vadd.f32 %v559, %v891
    %v928 = vadd.f32 %v562, %v894
    %v929 = vld [vmem:[%s2] sm:$0x1]
    %v931 = vlaneseq
    %v932 = vshrl.u32 %v931, 7
    %v933 = vsub.s32 0, %v932
    %v934 = vrot.slane %v929, %v933
    %v936 = vadd.f32 %v897, %v934
    %v937 = vadd.f32 %v898, %v934
    %v938 = vadd.f32 %v899, %v934
    %v939 = vadd.f32 %v900, %v934
    %v940 = vadd.f32 %v901, %v934
    %v941 = vadd.f32 %v902, %v934
    %v942 = vadd.f32 %v903, %v934
    %v943 = vadd.f32 %v904, %v934
    %v944 = vadd.f32 %v905, %v934
    %v945 = vadd.f32 %v906, %v934
    %v946 = vadd.f32 %v907, %v934
    %v947 = vadd.f32 %v908, %v934
    %v948 = vadd.f32 %v909, %v934
    %v949 = vadd.f32 %v910, %v934
    %v950 = vadd.f32 %v911, %v934
    %v951 = vadd.f32 %v912, %v934
    %v952 = vadd.f32 %v913, %v934
    %v953 = vadd.f32 %v914, %v934
    %v954 = vadd.f32 %v915, %v934
    %v955 = vadd.f32 %v916, %v934
    %v956 = vadd.f32 %v917, %v934
    %v957 = vadd.f32 %v918, %v934
    %v958 = vadd.f32 %v919, %v934
    %v959 = vadd.f32 %v920, %v934
    %v960 = vadd.f32 %v921, %v934
    %v961 = vadd.f32 %v922, %v934
    %v962 = vadd.f32 %v923, %v934
    %v963 = vadd.f32 %v924, %v934
    %v964 = vadd.f32 %v925, %v934
    %v965 = vadd.f32 %v926, %v934
    %v966 = vadd.f32 %v927, %v934
    %v967 = vadd.f32 %v928, %v934
    %v968 = vmax.f32 %v936, 0.0
    %v969 = vmax.f32 %v937, 0.0
    %v970 = vmax.f32 %v938, 0.0
    %v971 = vmax.f32 %v939, 0.0
    %v972 = vmax.f32 %v940, 0.0
    %v973 = vmax.f32 %v941, 0.0
    %v974 = vmax.f32 %v942, 0.0
    %v975 = vmax.f32 %v943, 0.0
    %v976 = vmax.f32 %v944, 0.0
    %v977 = vmax.f32 %v945, 0.0
    %v978 = vmax.f32 %v946, 0.0
    %v979 = vmax.f32 %v947, 0.0
    %v980 = vmax.f32 %v948, 0.0
    %v981 = vmax.f32 %v949, 0.0
    %v982 = vmax.f32 %v950, 0.0
    %v983 = vmax.f32 %v951, 0.0
    %v984 = vmax.f32 %v952, 0.0
    %v985 = vmax.f32 %v953, 0.0
    %v986 = vmax.f32 %v954, 0.0
    %v987 = vmax.f32 %v955, 0.0
    %v988 = vmax.f32 %v956, 0.0
    %v989 = vmax.f32 %v957, 0.0
    %v990 = vmax.f32 %v958, 0.0
    %v991 = vmax.f32 %v959, 0.0
    %v992 = vmax.f32 %v960, 0.0
    %v993 = vmax.f32 %v961, 0.0
    %v994 = vmax.f32 %v962, 0.0
    %v995 = vmax.f32 %v963, 0.0
    %v996 = vmax.f32 %v964, 0.0
    %v997 = vmax.f32 %v965, 0.0
    %v998 = vmax.f32 %v966, 0.0
    %v999 = vmax.f32 %v967, 0.0
    %v1000 = vadd.f32 %v968, %v969
    %v1001 = vadd.f32 %v1000, %v970
    %v1002 = vadd.f32 %v1001, %v971
    %v1003 = vadd.f32 %v1002, %v972
    %v1004 = vadd.f32 %v1003, %v973
    %v1005 = vadd.f32 %v1004, %v974
    %v1006 = vadd.f32 %v1005, %v975
    %v1007 = vadd.f32 %v1006, %v976
    %v1008 = vadd.f32 %v1007, %v977
    %v1009 = vadd.f32 %v1008, %v978
    %v1010 = vadd.f32 %v1009, %v979
    %v1011 = vadd.f32 %v1010, %v980
    %v1012 = vadd.f32 %v1011, %v981
    %v1013 = vadd.f32 %v1012, %v982
    %v1014 = vadd.f32 %v1013, %v983
    %v1015 = vadd.f32 %v1014, %v984
    %v1016 = vadd.f32 %v1015, %v985
    %v1017 = vadd.f32 %v1016, %v986
    %v1018 = vadd.f32 %v1017, %v987
    %v1019 = vadd.f32 %v1018, %v988
    %v1020 = vadd.f32 %v1019, %v989
    %v1021 = vadd.f32 %v1020, %v990
    %v1022 = vadd.f32 %v1021, %v991
    %v1023 = vadd.f32 %v1022, %v992
    %v1024 = vadd.f32 %v1023, %v993
    %v1025 = vadd.f32 %v1024, %v994
    %v1026 = vadd.f32 %v1025, %v995
    %v1027 = vadd.f32 %v1026, %v996
    %v1028 = vadd.f32 %v1027, %v997
    %v1029 = vadd.f32 %v1028, %v998
    %v1030 = vadd.f32 %v1029, %v999
    %v1031 = vrot.slane %v1030, 4
    %v1032 = vadd.f32 %v1030, %v1031
    %v1033 = vrot.slane %v1032, 2
    %v1034 = vadd.f32 %v1032, %v1033
    %v1035 = vrot.slane %v1034, 1
    %v1036 = vadd.f32 %v1034, %v1035
    %v1037 = vmul.f32 %v1036, 0.00390625
    %v1038 = vsub.f32 %v968, %v1037
    %v1039 = vsub.f32 %v969, %v1037
    %v1040 = vsub.f32 %v970, %v1037
    %v1041 = vsub.f32 %v971, %v1037
    %v1042 = vsub.f32 %v972, %v1037
    %v1043 = vsub.f32 %v973, %v1037
    %v1044 = vsub.f32 %v974, %v1037
    %v1045 = vsub.f32 %v975, %v1037
    %v1046 = vsub.f32 %v976, %v1037
    %v1047 = vsub.f32 %v977, %v1037
    %v1048 = vsub.f32 %v978, %v1037
    %v1049 = vsub.f32 %v979, %v1037
    %v1050 = vsub.f32 %v980, %v1037
    %v1051 = vsub.f32 %v981, %v1037
    %v1052 = vsub.f32 %v982, %v1037
    %v1053 = vsub.f32 %v983, %v1037
    %v1054 = vsub.f32 %v984, %v1037
    %v1055 = vsub.f32 %v985, %v1037
    %v1056 = vsub.f32 %v986, %v1037
    %v1057 = vsub.f32 %v987, %v1037
    %v1058 = vsub.f32 %v988, %v1037
    %v1059 = vsub.f32 %v989, %v1037
    %v1060 = vsub.f32 %v990, %v1037
    %v1061 = vsub.f32 %v991, %v1037
    %v1062 = vsub.f32 %v992, %v1037
    %v1063 = vsub.f32 %v993, %v1037
    %v1064 = vsub.f32 %v994, %v1037
    %v1065 = vsub.f32 %v995, %v1037
    %v1066 = vsub.f32 %v996, %v1037
    %v1067 = vsub.f32 %v997, %v1037
    %v1068 = vsub.f32 %v998, %v1037
    %v1069 = vsub.f32 %v999, %v1037
    %v1070 = vmul.f32 %v1038, %v1038
    %v1071 = vmul.f32 %v1039, %v1039
    %v1072 = vmul.f32 %v1040, %v1040
    %v1073 = vmul.f32 %v1041, %v1041
    %v1074 = vmul.f32 %v1042, %v1042
    %v1075 = vmul.f32 %v1043, %v1043
    %v1076 = vmul.f32 %v1044, %v1044
    %v1077 = vmul.f32 %v1045, %v1045
    %v1078 = vmul.f32 %v1046, %v1046
    %v1079 = vmul.f32 %v1047, %v1047
    %v1080 = vmul.f32 %v1048, %v1048
    %v1081 = vmul.f32 %v1049, %v1049
    %v1082 = vmul.f32 %v1050, %v1050
    %v1083 = vmul.f32 %v1051, %v1051
    %v1084 = vmul.f32 %v1052, %v1052
    %v1085 = vmul.f32 %v1053, %v1053
    %v1086 = vmul.f32 %v1054, %v1054
    %v1087 = vmul.f32 %v1055, %v1055
    %v1088 = vmul.f32 %v1056, %v1056
    %v1089 = vmul.f32 %v1057, %v1057
    %v1090 = vmul.f32 %v1058, %v1058
    %v1091 = vmul.f32 %v1059, %v1059
    %v1092 = vmul.f32 %v1060, %v1060
    %v1093 = vmul.f32 %v1061, %v1061
    %v1094 = vmul.f32 %v1062, %v1062
    %v1095 = vmul.f32 %v1063, %v1063
    %v1096 = vmul.f32 %v1064, %v1064
    %v1097 = vmul.f32 %v1065, %v1065
    %v1098 = vmul.f32 %v1066, %v1066
    %v1099 = vmul.f32 %v1067, %v1067
    %v1100 = vmul.f32 %v1068, %v1068
    %v1101 = vmul.f32 %v1069, %v1069
    %v1102 = vadd.f32 %v1070, %v1071
    %v1103 = vadd.f32 %v1102, %v1072
    %v1104 = vadd.f32 %v1103, %v1073
    %v1105 = vadd.f32 %v1104, %v1074
    %v1106 = vadd.f32 %v1105, %v1075
    %v1107 = vadd.f32 %v1106, %v1076
    %v1108 = vadd.f32 %v1107, %v1077
    %v1109 = vadd.f32 %v1108, %v1078
    %v1110 = vadd.f32 %v1109, %v1079
    %v1111 = vadd.f32 %v1110, %v1080
    %v1112 = vadd.f32 %v1111, %v1081
    %v1113 = vadd.f32 %v1112, %v1082
    %v1114 = vadd.f32 %v1113, %v1083
    %v1115 = vadd.f32 %v1114, %v1084
    %v1116 = vadd.f32 %v1115, %v1085
    %v1117 = vadd.f32 %v1116, %v1086
    %v1118 = vadd.f32 %v1117, %v1087
    %v1119 = vadd.f32 %v1118, %v1088
    %v1120 = vadd.f32 %v1119, %v1089
    %v1121 = vadd.f32 %v1120, %v1090
    %v1122 = vadd.f32 %v1121, %v1091
    %v1123 = vadd.f32 %v1122, %v1092
    %v1124 = vadd.f32 %v1123, %v1093
    %v1125 = vadd.f32 %v1124, %v1094
    %v1126 = vadd.f32 %v1125, %v1095
    %v1127 = vadd.f32 %v1126, %v1096
    %v1128 = vadd.f32 %v1127, %v1097
    %v1129 = vadd.f32 %v1128, %v1098
    %v1130 = vadd.f32 %v1129, %v1099
    %v1131 = vadd.f32 %v1130, %v1100
    %v1132 = vadd.f32 %v1131, %v1101
    %v1133 = vrot.slane %v1132, 4
    %v1134 = vadd.f32 %v1132, %v1133
    %v1135 = vrot.slane %v1134, 2
    %v1136 = vadd.f32 %v1134, %v1135
    %v1137 = vrot.slane %v1136, 1
    %v1138 = vadd.f32 %v1136, %v1137
    %v1139 = vmul.f32 %v1138, 0.00390625
    %v1140 = vadd.f32 %v1139, 1e-05
    %v1141 = vrsqrt.pop %v1140
    %v1142 = vmul.f32 %v1038, %v1141
    %v1143 = vmul.f32 %v1039, %v1141
    %v1144 = vmul.f32 %v1040, %v1141
    %v1145 = vmul.f32 %v1041, %v1141
    %v1146 = vmul.f32 %v1042, %v1141
    %v1147 = vmul.f32 %v1043, %v1141
    %v1148 = vmul.f32 %v1044, %v1141
    %v1149 = vmul.f32 %v1045, %v1141
    %v1150 = vmul.f32 %v1046, %v1141
    %v1151 = vmul.f32 %v1047, %v1141
    %v1152 = vmul.f32 %v1048, %v1141
    %v1153 = vmul.f32 %v1049, %v1141
    %v1154 = vmul.f32 %v1050, %v1141
    %v1155 = vmul.f32 %v1051, %v1141
    %v1156 = vmul.f32 %v1052, %v1141
    %v1157 = vmul.f32 %v1053, %v1141
    %v1158 = vmul.f32 %v1054, %v1141
    %v1159 = vmul.f32 %v1055, %v1141
    %v1160 = vmul.f32 %v1056, %v1141
    %v1161 = vmul.f32 %v1057, %v1141
    %v1162 = vmul.f32 %v1058, %v1141
    %v1163 = vmul.f32 %v1059, %v1141
    %v1164 = vmul.f32 %v1060, %v1141
    %v1165 = vmul.f32 %v1061, %v1141
    %v1166 = vmul.f32 %v1062, %v1141
    %v1167 = vmul.f32 %v1063, %v1141
    %v1168 = vmul.f32 %v1064, %v1141
    %v1169 = vmul.f32 %v1065, %v1141
    %v1170 = vmul.f32 %v1066, %v1141
    %v1171 = vmul.f32 %v1067, %v1141
    %v1172 = vmul.f32 %v1068, %v1141
    %v1173 = vmul.f32 %v1069, %v1141
    %v1174 = vld [vmem:[%s3] sm:$0x1]
    %v1176 = vlaneseq
    %v1177 = vshrl.u32 %v1176, 7
    %v1178 = vsub.s32 0, %v1177
    %v1179 = vrot.slane %v1174, %v1178
    %v1181 = vmul.f32 %v1142, %v1179
    %v1182 = vmul.f32 %v1143, %v1179
    %v1183 = vmul.f32 %v1144, %v1179
    %v1184 = vmul.f32 %v1145, %v1179
    %v1185 = vmul.f32 %v1146, %v1179
    %v1186 = vmul.f32 %v1147, %v1179
    %v1187 = vmul.f32 %v1148, %v1179
    %v1188 = vmul.f32 %v1149, %v1179
    %v1189 = vmul.f32 %v1150, %v1179
    %v1190 = vmul.f32 %v1151, %v1179
    %v1191 = vmul.f32 %v1152, %v1179
    %v1192 = vmul.f32 %v1153, %v1179
    %v1193 = vmul.f32 %v1154, %v1179
    %v1194 = vmul.f32 %v1155, %v1179
    %v1195 = vmul.f32 %v1156, %v1179
    %v1196 = vmul.f32 %v1157, %v1179
    %v1197 = vmul.f32 %v1158, %v1179
    %v1198 = vmul.f32 %v1159, %v1179
    %v1199 = vmul.f32 %v1160, %v1179
    %v1200 = vmul.f32 %v1161, %v1179
    %v1201 = vmul.f32 %v1162, %v1179
    %v1202 = vmul.f32 %v1163, %v1179
    %v1203 = vmul.f32 %v1164, %v1179
    %v1204 = vmul.f32 %v1165, %v1179
    %v1205 = vmul.f32 %v1166, %v1179
    %v1206 = vmul.f32 %v1167, %v1179
    %v1207 = vmul.f32 %v1168, %v1179
    %v1208 = vmul.f32 %v1169, %v1179
    %v1209 = vmul.f32 %v1170, %v1179
    %v1210 = vmul.f32 %v1171, %v1179
    %v1211 = vmul.f32 %v1172, %v1179
    %v1212 = vmul.f32 %v1173, %v1179
    %v1213 = vld [vmem:[%s4] sm:$0x1]
    %v1215 = vlaneseq
    %v1216 = vshrl.u32 %v1215, 7
    %v1217 = vsub.s32 0, %v1216
    %v1218 = vrot.slane %v1213, %v1217
    %v1220 = vadd.f32 %v1181, %v1218
    %v1221 = vadd.f32 %v1182, %v1218
    %v1222 = vadd.f32 %v1183, %v1218
    %v1223 = vadd.f32 %v1184, %v1218
    %v1224 = vadd.f32 %v1185, %v1218
    %v1225 = vadd.f32 %v1186, %v1218
    %v1226 = vadd.f32 %v1187, %v1218
    %v1227 = vadd.f32 %v1188, %v1218
    %v1228 = vadd.f32 %v1189, %v1218
    %v1229 = vadd.f32 %v1190, %v1218
    %v1230 = vadd.f32 %v1191, %v1218
    %v1231 = vadd.f32 %v1192, %v1218
    %v1232 = vadd.f32 %v1193, %v1218
    %v1233 = vadd.f32 %v1194, %v1218
    %v1234 = vadd.f32 %v1195, %v1218
    %v1235 = vadd.f32 %v1196, %v1218
    %v1236 = vadd.f32 %v1197, %v1218
    %v1237 = vadd.f32 %v1198, %v1218
    %v1238 = vadd.f32 %v1199, %v1218
    %v1239 = vadd.f32 %v1200, %v1218
    %v1240 = vadd.f32 %v1201, %v1218
    %v1241 = vadd.f32 %v1202, %v1218
    %v1242 = vadd.f32 %v1203, %v1218
    %v1243 = vadd.f32 %v1204, %v1218
    %v1244 = vadd.f32 %v1205, %v1218
    %v1245 = vadd.f32 %v1206, %v1218
    %v1246 = vadd.f32 %v1207, %v1218
    %v1247 = vadd.f32 %v1208, %v1218
    %v1248 = vadd.f32 %v1209, %v1218
    %v1249 = vadd.f32 %v1210, %v1218
    %v1250 = vadd.f32 %v1211, %v1218
    %v1251 = vadd.f32 %v1212, %v1218
    %v1284 = vcombine.high %v1220, %v1220
    %v1286 = vunpack.c.l.s4 1983009808
    %v1287 = vunpack.c.0.s8 %v1286
    %v1288 = vlaneseq
    %v1289 = vshrl.u32 %v1288, 7
    %v1290 = vsub.s32 %v1287, %v1289
    %v1291 = vrot.slane %v1220, %v1290
    %v1293 = vunpack.c.l.s4 1983009808
    %v1294 = vunpack.c.0.s8 %v1293
    %v1295 = vlaneseq
    %v1296 = vshrl.u32 %v1295, 7
    %v1297 = vsub.s32 %v1294, %v1296
    %v1298 = vrot.slane %v1284, %v1297
    %v1299 = vcombine.high %v1291, %v1291
    %v1300 = vcombine.high %v1298, %v1298
    %v1301 = vcombine.high %v1221, %v1221
    %v1303 = vunpack.c.l.s4 1983009808
    %v1304 = vunpack.c.0.s8 %v1303
    %v1305 = vlaneseq
    %v1306 = vshrl.u32 %v1305, 7
    %v1307 = vsub.s32 %v1304, %v1306
    %v1308 = vrot.slane %v1221, %v1307
    %v1310 = vunpack.c.l.s4 1983009808
    %v1311 = vunpack.c.0.s8 %v1310
    %v1312 = vlaneseq
    %v1313 = vshrl.u32 %v1312, 7
    %v1314 = vsub.s32 %v1311, %v1313
    %v1315 = vrot.slane %v1301, %v1314
    %v1316 = vcombine.high %v1308, %v1308
    %v1317 = vcombine.high %v1315, %v1315
    %v1318 = vcombine.high %v1222, %v1222
    %v1320 = vunpack.c.l.s4 1983009808
    %v1321 = vunpack.c.0.s8 %v1320
    %v1322 = vlaneseq
    %v1323 = vshrl.u32 %v1322, 7
    %v1324 = vsub.s32 %v1321, %v1323
    %v1325 = vrot.slane %v1222, %v1324
    %v1327 = vunpack.c.l.s4 1983009808
    %v1328 = vunpack.c.0.s8 %v1327
    %v1329 = vlaneseq
    %v1330 = vshrl.u32 %v1329, 7
    %v1331 = vsub.s32 %v1328, %v1330
    %v1332 = vrot.slane %v1318, %v1331
    %v1333 = vcombine.high %v1325, %v1325
    %v1334 = vcombine.high %v1332, %v1332
    %v1335 = vcombine.high %v1223, %v1223
    %v1337 = vunpack.c.l.s4 1983009808
    %v1338 = vunpack.c.0.s8 %v1337
    %v1339 = vlaneseq
    %v1340 = vshrl.u32 %v1339, 7
    %v1341 = vsub.s32 %v1338, %v1340
    %v1342 = vrot.slane %v1223, %v1341
    %v1344 = vunpack.c.l.s4 1983009808
    %v1345 = vunpack.c.0.s8 %v1344
    %v1346 = vlaneseq
    %v1347 = vshrl.u32 %v1346, 7
    %v1348 = vsub.s32 %v1345, %v1347
    %v1349 = vrot.slane %v1335, %v1348
    %v1350 = vcombine.high %v1342, %v1342
    %v1351 = vcombine.high %v1349, %v1349
    %v1352 = vcombine.high %v1224, %v1224
    %v1354 = vunpack.c.l.s4 1983009808
    %v1355 = vunpack.c.0.s8 %v1354
    %v1356 = vlaneseq
    %v1357 = vshrl.u32 %v1356, 7
    %v1358 = vsub.s32 %v1355, %v1357
    %v1359 = vrot.slane %v1224, %v1358
    %v1361 = vunpack.c.l.s4 1983009808
    %v1362 = vunpack.c.0.s8 %v1361
    %v1363 = vlaneseq
    %v1364 = vshrl.u32 %v1363, 7
    %v1365 = vsub.s32 %v1362, %v1364
    %v1366 = vrot.slane %v1352, %v1365
    %v1367 = vcombine.high %v1359, %v1359
    %v1368 = vcombine.high %v1366, %v1366
    %v1369 = vcombine.high %v1225, %v1225
    %v1371 = vunpack.c.l.s4 1983009808
    %v1372 = vunpack.c.0.s8 %v1371
    %v1373 = vlaneseq
    %v1374 = vshrl.u32 %v1373, 7
    %v1375 = vsub.s32 %v1372, %v1374
    %v1376 = vrot.slane %v1225, %v1375
    %v1378 = vunpack.c.l.s4 1983009808
    %v1379 = vunpack.c.0.s8 %v1378
    %v1380 = vlaneseq
    %v1381 = vshrl.u32 %v1380, 7
    %v1382 = vsub.s32 %v1379, %v1381
    %v1383 = vrot.slane %v1369, %v1382
    %v1384 = vcombine.high %v1376, %v1376
    %v1385 = vcombine.high %v1383, %v1383
    %v1386 = vcombine.high %v1226, %v1226
    %v1388 = vunpack.c.l.s4 1983009808
    %v1389 = vunpack.c.0.s8 %v1388
    %v1390 = vlaneseq
    %v1391 = vshrl.u32 %v1390, 7
    %v1392 = vsub.s32 %v1389, %v1391
    %v1393 = vrot.slane %v1226, %v1392
    %v1395 = vunpack.c.l.s4 1983009808
    %v1396 = vunpack.c.0.s8 %v1395
    %v1397 = vlaneseq
    %v1398 = vshrl.u32 %v1397, 7
    %v1399 = vsub.s32 %v1396, %v1398
    %v1400 = vrot.slane %v1386, %v1399
    %v1401 = vcombine.high %v1393, %v1393
    %v1402 = vcombine.high %v1400, %v1400
    %v1403 = vcombine.high %v1227, %v1227
    %v1405 = vunpack.c.l.s4 1983009808
    %v1406 = vunpack.c.0.s8 %v1405
    %v1407 = vlaneseq
    %v1408 = vshrl.u32 %v1407, 7
    %v1409 = vsub.s32 %v1406, %v1408
    %v1410 = vrot.slane %v1227, %v1409
    %v1412 = vunpack.c.l.s4 1983009808
    %v1413 = vunpack.c.0.s8 %v1412
    %v1414 = vlaneseq
    %v1415 = vshrl.u32 %v1414, 7
    %v1416 = vsub.s32 %v1413, %v1415
    %v1417 = vrot.slane %v1403, %v1416
    %v1418 = vcombine.high %v1410, %v1410
    %v1419 = vcombine.high %v1417, %v1417
    %v1420 = vcombine.high %v1228, %v1228
    %v1422 = vunpack.c.l.s4 1983009808
    %v1423 = vunpack.c.0.s8 %v1422
    %v1424 = vlaneseq
    %v1425 = vshrl.u32 %v1424, 7
    %v1426 = vsub.s32 %v1423, %v1425
    %v1427 = vrot.slane %v1228, %v1426
    %v1429 = vunpack.c.l.s4 1983009808
    %v1430 = vunpack.c.0.s8 %v1429
    %v1431 = vlaneseq
    %v1432 = vshrl.u32 %v1431, 7
    %v1433 = vsub.s32 %v1430, %v1432
    %v1434 = vrot.slane %v1420, %v1433
    %v1435 = vcombine.high %v1427, %v1427
    %v1436 = vcombine.high %v1434, %v1434
    %v1437 = vcombine.high %v1229, %v1229
    %v1439 = vunpack.c.l.s4 1983009808
    %v1440 = vunpack.c.0.s8 %v1439
    %v1441 = vlaneseq
    %v1442 = vshrl.u32 %v1441, 7
    %v1443 = vsub.s32 %v1440, %v1442
    %v1444 = vrot.slane %v1229, %v1443
    %v1446 = vunpack.c.l.s4 1983009808
    %v1447 = vunpack.c.0.s8 %v1446
    %v1448 = vlaneseq
    %v1449 = vshrl.u32 %v1448, 7
    %v1450 = vsub.s32 %v1447, %v1449
    %v1451 = vrot.slane %v1437, %v1450
    %v1452 = vcombine.high %v1444, %v1444
    %v1453 = vcombine.high %v1451, %v1451
    %v1454 = vcombine.high %v1230, %v1230
    %v1456 = vunpack.c.l.s4 1983009808
    %v1457 = vunpack.c.0.s8 %v1456
    %v1458 = vlaneseq
    %v1459 = vshrl.u32 %v1458, 7
    %v1460 = vsub.s32 %v1457, %v1459
    %v1461 = vrot.slane %v1230, %v1460
    %v1463 = vunpack.c.l.s4 1983009808
    %v1464 = vunpack.c.0.s8 %v1463
    %v1465 = vlaneseq
    %v1466 = vshrl.u32 %v1465, 7
    %v1467 = vsub.s32 %v1464, %v1466
    %v1468 = vrot.slane %v1454, %v1467
    %v1469 = vcombine.high %v1461, %v1461
    %v1470 = vcombine.high %v1468, %v1468
    %v1471 = vcombine.high %v1231, %v1231
    %v1473 = vunpack.c.l.s4 1983009808
    %v1474 = vunpack.c.0.s8 %v1473
    %v1475 = vlaneseq
    %v1476 = vshrl.u32 %v1475, 7
    %v1477 = vsub.s32 %v1474, %v1476
    %v1478 = vrot.slane %v1231, %v1477
    %v1480 = vunpack.c.l.s4 1983009808
    %v1481 = vunpack.c.0.s8 %v1480
    %v1482 = vlaneseq
    %v1483 = vshrl.u32 %v1482, 7
    %v1484 = vsub.s32 %v1481, %v1483
    %v1485 = vrot.slane %v1471, %v1484
    %v1486 = vcombine.high %v1478, %v1478
    %v1487 = vcombine.high %v1485, %v1485
    %v1488 = vcombine.high %v1232, %v1232
    %v1490 = vunpack.c.l.s4 1983009808
    %v1491 = vunpack.c.0.s8 %v1490
    %v1492 = vlaneseq
    %v1493 = vshrl.u32 %v1492, 7
    %v1494 = vsub.s32 %v1491, %v1493
    %v1495 = vrot.slane %v1232, %v1494
    %v1497 = vunpack.c.l.s4 1983009808
    %v1498 = vunpack.c.0.s8 %v1497
    %v1499 = vlaneseq
    %v1500 = vshrl.u32 %v1499, 7
    %v1501 = vsub.s32 %v1498, %v1500
    %v1502 = vrot.slane %v1488, %v1501
    %v1503 = vcombine.high %v1495, %v1495
    %v1504 = vcombine.high %v1502, %v1502
    %v1505 = vcombine.high %v1233, %v1233
    %v1507 = vunpack.c.l.s4 1983009808
    %v1508 = vunpack.c.0.s8 %v1507
    %v1509 = vlaneseq
    %v1510 = vshrl.u32 %v1509, 7
    %v1511 = vsub.s32 %v1508, %v1510
    %v1512 = vrot.slane %v1233, %v1511
    %v1514 = vunpack.c.l.s4 1983009808
    %v1515 = vunpack.c.0.s8 %v1514
    %v1516 = vlaneseq
    %v1517 = vshrl.u32 %v1516, 7
    %v1518 = vsub.s32 %v1515, %v1517
    %v1519 = vrot.slane %v1505, %v1518
    %v1520 = vcombine.high %v1512, %v1512
    %v1521 = vcombine.high %v1519, %v1519
    %v1522 = vcombine.high %v1234, %v1234
    %v1524 = vunpack.c.l.s4 1983009808
    %v1525 = vunpack.c.0.s8 %v1524
    %v1526 = vlaneseq
    %v1527 = vshrl.u32 %v1526, 7
    %v1528 = vsub.s32 %v1525, %v1527
    %v1529 = vrot.slane %v1234, %v1528
    %v1531 = vunpack.c.l.s4 1983009808
    %v1532 = vunpack.c.0.s8 %v1531
    %v1533 = vlaneseq
    %v1534 = vshrl.u32 %v1533, 7
    %v1535 = vsub.s32 %v1532, %v1534
    %v1536 = vrot.slane %v1522, %v1535
    %v1537 = vcombine.high %v1529, %v1529
    %v1538 = vcombine.high %v1536, %v1536
    %v1539 = vcombine.high %v1235, %v1235
    %v1541 = vunpack.c.l.s4 1983009808
    %v1542 = vunpack.c.0.s8 %v1541
    %v1543 = vlaneseq
    %v1544 = vshrl.u32 %v1543, 7
    %v1545 = vsub.s32 %v1542, %v1544
    %v1546 = vrot.slane %v1235, %v1545
    %v1548 = vunpack.c.l.s4 1983009808
    %v1549 = vunpack.c.0.s8 %v1548
    %v1550 = vlaneseq
    %v1551 = vshrl.u32 %v1550, 7
    %v1552 = vsub.s32 %v1549, %v1551
    %v1553 = vrot.slane %v1539, %v1552
    %v1554 = vcombine.high %v1546, %v1546
    %v1555 = vcombine.high %v1553, %v1553
    %v1556 = vcombine.high %v1236, %v1236
    %v1558 = vunpack.c.l.s4 1983009808
    %v1559 = vunpack.c.0.s8 %v1558
    %v1560 = vlaneseq
    %v1561 = vshrl.u32 %v1560, 7
    %v1562 = vsub.s32 %v1559, %v1561
    %v1563 = vrot.slane %v1236, %v1562
    %v1565 = vunpack.c.l.s4 1983009808
    %v1566 = vunpack.c.0.s8 %v1565
    %v1567 = vlaneseq
    %v1568 = vshrl.u32 %v1567, 7
    %v1569 = vsub.s32 %v1566, %v1568
    %v1570 = vrot.slane %v1556, %v1569
    %v1571 = vcombine.high %v1563, %v1563
    %v1572 = vcombine.high %v1570, %v1570
    %v1573 = vcombine.high %v1237, %v1237
    %v1575 = vunpack.c.l.s4 1983009808
    %v1576 = vunpack.c.0.s8 %v1575
    %v1577 = vlaneseq
    %v1578 = vshrl.u32 %v1577, 7
    %v1579 = vsub.s32 %v1576, %v1578
    %v1580 = vrot.slane %v1237, %v1579
    %v1582 = vunpack.c.l.s4 1983009808
    %v1583 = vunpack.c.0.s8 %v1582
    %v1584 = vlaneseq
    %v1585 = vshrl.u32 %v1584, 7
    %v1586 = vsub.s32 %v1583, %v1585
    %v1587 = vrot.slane %v1573, %v1586
    %v1588 = vcombine.high %v1580, %v1580
    %v1589 = vcombine.high %v1587, %v1587
    %v1590 = vcombine.high %v1238, %v1238
    %v1592 = vunpack.c.l.s4 1983009808
    %v1593 = vunpack.c.0.s8 %v1592
    %v1594 = vlaneseq
    %v1595 = vshrl.u32 %v1594, 7
    %v1596 = vsub.s32 %v1593, %v1595
    %v1597 = vrot.slane %v1238, %v1596
    %v1599 = vunpack.c.l.s4 1983009808
    %v1600 = vunpack.c.0.s8 %v1599
    %v1601 = vlaneseq
    %v1602 = vshrl.u32 %v1601, 7
    %v1603 = vsub.s32 %v1600, %v1602
    %v1604 = vrot.slane %v1590, %v1603
    %v1605 = vcombine.high %v1597, %v1597
    %v1606 = vcombine.high %v1604, %v1604
    %v1607 = vcombine.high %v1239, %v1239
    %v1609 = vunpack.c.l.s4 1983009808
    %v1610 = vunpack.c.0.s8 %v1609
    %v1611 = vlaneseq
    %v1612 = vshrl.u32 %v1611, 7
    %v1613 = vsub.s32 %v1610, %v1612
    %v1614 = vrot.slane %v1239, %v1613
    %v1616 = vunpack.c.l.s4 1983009808
    %v1617 = vunpack.c.0.s8 %v1616
    %v1618 = vlaneseq
    %v1619 = vshrl.u32 %v1618, 7
    %v1620 = vsub.s32 %v1617, %v1619
    %v1621 = vrot.slane %v1607, %v1620
    %v1622 = vcombine.high %v1614, %v1614
    %v1623 = vcombine.high %v1621, %v1621
    %v1624 = vcombine.high %v1240, %v1240
    %v1626 = vunpack.c.l.s4 1983009808
    %v1627 = vunpack.c.0.s8 %v1626
    %v1628 = vlaneseq
    %v1629 = vshrl.u32 %v1628, 7
    %v1630 = vsub.s32 %v1627, %v1629
    %v1631 = vrot.slane %v1240, %v1630
    %v1633 = vunpack.c.l.s4 1983009808
    %v1634 = vunpack.c.0.s8 %v1633
    %v1635 = vlaneseq
    %v1636 = vshrl.u32 %v1635, 7
    %v1637 = vsub.s32 %v1634, %v1636
    %v1638 = vrot.slane %v1624, %v1637
    %v1639 = vcombine.high %v1631, %v1631
    %v1640 = vcombine.high %v1638, %v1638
    %v1641 = vcombine.high %v1241, %v1241
    %v1643 = vunpack.c.l.s4 1983009808
    %v1644 = vunpack.c.0.s8 %v1643
    %v1645 = vlaneseq
    %v1646 = vshrl.u32 %v1645, 7
    %v1647 = vsub.s32 %v1644, %v1646
    %v1648 = vrot.slane %v1241, %v1647
    %v1650 = vunpack.c.l.s4 1983009808
    %v1651 = vunpack.c.0.s8 %v1650
    %v1652 = vlaneseq
    %v1653 = vshrl.u32 %v1652, 7
    %v1654 = vsub.s32 %v1651, %v1653
    %v1655 = vrot.slane %v1641, %v1654
    %v1656 = vcombine.high %v1648, %v1648
    %v1657 = vcombine.high %v1655, %v1655
    %v1658 = vcombine.high %v1242, %v1242
    %v1660 = vunpack.c.l.s4 1983009808
    %v1661 = vunpack.c.0.s8 %v1660
    %v1662 = vlaneseq
    %v1663 = vshrl.u32 %v1662, 7
    %v1664 = vsub.s32 %v1661, %v1663
    %v1665 = vrot.slane %v1242, %v1664
    %v1667 = vunpack.c.l.s4 1983009808
    %v1668 = vunpack.c.0.s8 %v1667
    %v1669 = vlaneseq
    %v1670 = vshrl.u32 %v1669, 7
    %v1671 = vsub.s32 %v1668, %v1670
    %v1672 = vrot.slane %v1658, %v1671
    %v1673 = vcombine.high %v1665, %v1665
    %v1674 = vcombine.high %v1672, %v1672
    %v1675 = vcombine.high %v1243, %v1243
    %v1677 = vunpack.c.l.s4 1983009808
    %v1678 = vunpack.c.0.s8 %v1677
    %v1679 = vlaneseq
    %v1680 = vshrl.u32 %v1679, 7
    %v1681 = vsub.s32 %v1678, %v1680
    %v1682 = vrot.slane %v1243, %v1681
    %v1684 = vunpack.c.l.s4 1983009808
    %v1685 = vunpack.c.0.s8 %v1684
    %v1686 = vlaneseq
    %v1687 = vshrl.u32 %v1686, 7
    %v1688 = vsub.s32 %v1685, %v1687
    %v1689 = vrot.slane %v1675, %v1688
    %v1690 = vcombine.high %v1682, %v1682
    %v1691 = vcombine.high %v1689, %v1689
    %v1692 = vcombine.high %v1244, %v1244
    %v1694 = vunpack.c.l.s4 1983009808
    %v1695 = vunpack.c.0.s8 %v1694
    %v1696 = vlaneseq
    %v1697 = vshrl.u32 %v1696, 7
    %v1698 = vsub.s32 %v1695, %v1697
    %v1699 = vrot.slane %v1244, %v1698
    %v1701 = vunpack.c.l.s4 1983009808
    %v1702 = vunpack.c.0.s8 %v1701
    %v1703 = vlaneseq
    %v1704 = vshrl.u32 %v1703, 7
    %v1705 = vsub.s32 %v1702, %v1704
    %v1706 = vrot.slane %v1692, %v1705
    %v1707 = vcombine.high %v1699, %v1699
    %v1708 = vcombine.high %v1706, %v1706
    %v1709 = vcombine.high %v1245, %v1245
    %v1711 = vunpack.c.l.s4 1983009808
    %v1712 = vunpack.c.0.s8 %v1711
    %v1713 = vlaneseq
    %v1714 = vshrl.u32 %v1713, 7
    %v1715 = vsub.s32 %v1712, %v1714
    %v1716 = vrot.slane %v1245, %v1715
    %v1718 = vunpack.c.l.s4 1983009808
    %v1719 = vunpack.c.0.s8 %v1718
    %v1720 = vlaneseq
    %v1721 = vshrl.u32 %v1720, 7
    %v1722 = vsub.s32 %v1719, %v1721
    %v1723 = vrot.slane %v1709, %v1722
    %v1724 = vcombine.high %v1716, %v1716
    %v1725 = vcombine.high %v1723, %v1723
    %v1726 = vcombine.high %v1246, %v1246
    %v1728 = vunpack.c.l.s4 1983009808
    %v1729 = vunpack.c.0.s8 %v1728
    %v1730 = vlaneseq
    %v1731 = vshrl.u32 %v1730, 7
    %v1732 = vsub.s32 %v1729, %v1731
    %v1733 = vrot.slane %v1246, %v1732
    %v1735 = vunpack.c.l.s4 1983009808
    %v1736 = vunpack.c.0.s8 %v1735
    %v1737 = vlaneseq
    %v1738 = vshrl.u32 %v1737, 7
    %v1739 = vsub.s32 %v1736, %v1738
    %v1740 = vrot.slane %v1726, %v1739
    %v1741 = vcombine.high %v1733, %v1733
    %v1742 = vcombine.high %v1740, %v1740
    %v1743 = vcombine.high %v1247, %v1247
    %v1745 = vunpack.c.l.s4 1983009808
    %v1746 = vunpack.c.0.s8 %v1745
    %v1747 = vlaneseq
    %v1748 = vshrl.u32 %v1747, 7
    %v1749 = vsub.s32 %v1746, %v1748
    %v1750 = vrot.slane %v1247, %v1749
    %v1752 = vunpack.c.l.s4 1983009808
    %v1753 = vunpack.c.0.s8 %v1752
    %v1754 = vlaneseq
    %v1755 = vshrl.u32 %v1754, 7
    %v1756 = vsub.s32 %v1753, %v1755
    %v1757 = vrot.slane %v1743, %v1756
    %v1758 = vcombine.high %v1750, %v1750
    %v1759 = vcombine.high %v1757, %v1757
    %v1760 = vcombine.high %v1248, %v1248
    %v1762 = vunpack.c.l.s4 1983009808
    %v1763 = vunpack.c.0.s8 %v1762
    %v1764 = vlaneseq
    %v1765 = vshrl.u32 %v1764, 7
    %v1766 = vsub.s32 %v1763, %v1765
    %v1767 = vrot.slane %v1248, %v1766
    %v1769 = vunpack.c.l.s4 1983009808
    %v1770 = vunpack.c.0.s8 %v1769
    %v1771 = vlaneseq
    %v1772 = vshrl.u32 %v1771, 7
    %v1773 = vsub.s32 %v1770, %v1772
    %v1774 = vrot.slane %v1760, %v1773
    %v1775 = vcombine.high %v1767, %v1767
    %v1776 = vcombine.high %v1774, %v1774
    %v1777 = vcombine.high %v1249, %v1249
    %v1779 = vunpack.c.l.s4 1983009808
    %v1780 = vunpack.c.0.s8 %v1779
    %v1781 = vlaneseq
    %v1782 = vshrl.u32 %v1781, 7
    %v1783 = vsub.s32 %v1780, %v1782
    %v1784 = vrot.slane %v1249, %v1783
    %v1786 = vunpack.c.l.s4 1983009808
    %v1787 = vunpack.c.0.s8 %v1786
    %v1788 = vlaneseq
    %v1789 = vshrl.u32 %v1788, 7
    %v1790 = vsub.s32 %v1787, %v1789
    %v1791 = vrot.slane %v1777, %v1790
    %v1792 = vcombine.high %v1784, %v1784
    %v1793 = vcombine.high %v1791, %v1791
    %v1794 = vcombine.high %v1250, %v1250
    %v1796 = vunpack.c.l.s4 1983009808
    %v1797 = vunpack.c.0.s8 %v1796
    %v1798 = vlaneseq
    %v1799 = vshrl.u32 %v1798, 7
    %v1800 = vsub.s32 %v1797, %v1799
    %v1801 = vrot.slane %v1250, %v1800
    %v1803 = vunpack.c.l.s4 1983009808
    %v1804 = vunpack.c.0.s8 %v1803
    %v1805 = vlaneseq
    %v1806 = vshrl.u32 %v1805, 7
    %v1807 = vsub.s32 %v1804, %v1806
    %v1808 = vrot.slane %v1794, %v1807
    %v1809 = vcombine.high %v1801, %v1801
    %v1810 = vcombine.high %v1808, %v1808
    %v1811 = vcombine.high %v1251, %v1251
    %v1813 = vunpack.c.l.s4 1983009808
    %v1814 = vunpack.c.0.s8 %v1813
    %v1815 = vlaneseq
    %v1816 = vshrl.u32 %v1815, 7
    %v1817 = vsub.s32 %v1814, %v1816
    %v1818 = vrot.slane %v1251, %v1817
    %v1820 = vunpack.c.l.s4 1983009808
    %v1821 = vunpack.c.0.s8 %v1820
    %v1822 = vlaneseq
    %v1823 = vshrl.u32 %v1822, 7
    %v1824 = vsub.s32 %v1821, %v1823
    %v1825 = vrot.slane %v1811, %v1824
    %v1826 = vcombine.high %v1818, %v1818
    %v1827 = vcombine.high %v1825, %v1825
    %v1956 = vrot.slane %v1291, 7
    %v1957 = vrot.slane %v1956, 2
    %v1958 = vrot.slane %v1299, 7
    %v1959 = vrot.slane %v1958, 2
    %v1960 = vrot.slane %v1298, 7
    %v1961 = vrot.slane %v1960, 2
    %v1962 = vrot.slane %v1300, 7
    %v1963 = vrot.slane %v1962, 2
    %v1964 = vrot.slane %v1308, 7
    %v1965 = vrot.slane %v1964, 2
    %v1966 = vrot.slane %v1316, 7
    %v1967 = vrot.slane %v1966, 2
    %v1968 = vrot.slane %v1315, 7
    %v1969 = vrot.slane %v1968, 2
    %v1970 = vrot.slane %v1317, 7
    %v1971 = vrot.slane %v1970, 2
    %v1972 = vrot.slane %v1325, 7
    %v1973 = vrot.slane %v1972, 2
    %v1974 = vrot.slane %v1333, 7
    %v1975 = vrot.slane %v1974, 2
    %v1976 = vrot.slane %v1332, 7
    %v1977 = vrot.slane %v1976, 2
    %v1978 = vrot.slane %v1334, 7
    %v1979 = vrot.slane %v1978, 2
    %v1980 = vrot.slane %v1342, 7
    %v1981 = vrot.slane %v1980, 2
    %v1982 = vrot.slane %v1350, 7
    %v1983 = vrot.slane %v1982, 2
    %v1984 = vrot.slane %v1349, 7
    %v1985 = vrot.slane %v1984, 2
    %v1986 = vrot.slane %v1351, 7
    %v1987 = vrot.slane %v1986, 2
    %v1988 = vrot.slane %v1359, 7
    %v1989 = vrot.slane %v1988, 2
    %v1990 = vrot.slane %v1367, 7
    %v1991 = vrot.slane %v1990, 2
    %v1992 = vrot.slane %v1366, 7
    %v1993 = vrot.slane %v1992, 2
    %v1994 = vrot.slane %v1368, 7
    %v1995 = vrot.slane %v1994, 2
    %v1996 = vrot.slane %v1376, 7
    %v1997 = vrot.slane %v1996, 2
    %v1998 = vrot.slane %v1384, 7
    %v1999 = vrot.slane %v1998, 2
    %v2000 = vrot.slane %v1383, 7
    %v2001 = vrot.slane %v2000, 2
    %v2002 = vrot.slane %v1385, 7
    %v2003 = vrot.slane %v2002, 2
    %v2004 = vrot.slane %v1393, 7
    %v2005 = vrot.slane %v2004, 2
    %v2006 = vrot.slane %v1401, 7
    %v2007 = vrot.slane %v2006, 2
    %v2008 = vrot.slane %v1400, 7
    %v2009 = vrot.slane %v2008, 2
    %v2010 = vrot.slane %v1402, 7
    %v2011 = vrot.slane %v2010, 2
    %v2012 = vrot.slane %v1410, 7
    %v2013 = vrot.slane %v2012, 2
    %v2014 = vrot.slane %v1418, 7
    %v2015 = vrot.slane %v2014, 2
    %v2016 = vrot.slane %v1417, 7
    %v2017 = vrot.slane %v2016, 2
    %v2018 = vrot.slane %v1419, 7
    %v2019 = vrot.slane %v2018, 2
    %v2020 = vrot.slane %v1427, 7
    %v2021 = vrot.slane %v2020, 2
    %v2022 = vrot.slane %v1435, 7
    %v2023 = vrot.slane %v2022, 2
    %v2024 = vrot.slane %v1434, 7
    %v2025 = vrot.slane %v2024, 2
    %v2026 = vrot.slane %v1436, 7
    %v2027 = vrot.slane %v2026, 2
    %v2028 = vrot.slane %v1444, 7
    %v2029 = vrot.slane %v2028, 2
    %v2030 = vrot.slane %v1452, 7
    %v2031 = vrot.slane %v2030, 2
    %v2032 = vrot.slane %v1451, 7
    %v2033 = vrot.slane %v2032, 2
    %v2034 = vrot.slane %v1453, 7
    %v2035 = vrot.slane %v2034, 2
    %v2036 = vrot.slane %v1461, 7
    %v2037 = vrot.slane %v2036, 2
    %v2038 = vrot.slane %v1469, 7
    %v2039 = vrot.slane %v2038, 2
    %v2040 = vrot.slane %v1468, 7
    %v2041 = vrot.slane %v2040, 2
    %v2042 = vrot.slane %v1470, 7
    %v2043 = vrot.slane %v2042, 2
    %v2044 = vrot.slane %v1478, 7
    %v2045 = vrot.slane %v2044, 2
    %v2046 = vrot.slane %v1486, 7
    %v2047 = vrot.slane %v2046, 2
    %v2048 = vrot.slane %v1485, 7
    %v2049 = vrot.slane %v2048, 2
    %v2050 = vrot.slane %v1487, 7
    %v2051 = vrot.slane %v2050, 2
    %v2052 = vrot.slane %v1495, 7
    %v2053 = vrot.slane %v2052, 2
    %v2054 = vrot.slane %v1503, 7
    %v2055 = vrot.slane %v2054, 2
    %v2056 = vrot.slane %v1502, 7
    %v2057 = vrot.slane %v2056, 2
    %v2058 = vrot.slane %v1504, 7
    %v2059 = vrot.slane %v2058, 2
    %v2060 = vrot.slane %v1512, 7
    %v2061 = vrot.slane %v2060, 2
    %v2062 = vrot.slane %v1520, 7
    %v2063 = vrot.slane %v2062, 2
    %v2064 = vrot.slane %v1519, 7
    %v2065 = vrot.slane %v2064, 2
    %v2066 = vrot.slane %v1521, 7
    %v2067 = vrot.slane %v2066, 2
    %v2068 = vrot.slane %v1529, 7
    %v2069 = vrot.slane %v2068, 2
    %v2070 = vrot.slane %v1537, 7
    %v2071 = vrot.slane %v2070, 2
    %v2072 = vrot.slane %v1536, 7
    %v2073 = vrot.slane %v2072, 2
    %v2074 = vrot.slane %v1538, 7
    %v2075 = vrot.slane %v2074, 2
    %v2076 = vrot.slane %v1546, 7
    %v2077 = vrot.slane %v2076, 2
    %v2078 = vrot.slane %v1554, 7
    %v2079 = vrot.slane %v2078, 2
    %v2080 = vrot.slane %v1553, 7
    %v2081 = vrot.slane %v2080, 2
    %v2082 = vrot.slane %v1555, 7
    %v2083 = vrot.slane %v2082, 2
    %v2084 = vrot.slane %v1563, 7
    %v2085 = vrot.slane %v2084, 2
    %v2086 = vrot.slane %v1571, 7
    %v2087 = vrot.slane %v2086, 2
    %v2088 = vrot.slane %v1570, 7
    %v2089 = vrot.slane %v2088, 2
    %v2090 = vrot.slane %v1572, 7
    %v2091 = vrot.slane %v2090, 2
    %v2092 = vrot.slane %v1580, 7
    %v2093 = vrot.slane %v2092, 2
    %v2094 = vrot.slane %v1588, 7
    %v2095 = vrot.slane %v2094, 2
    %v2096 = vrot.slane %v1587, 7
    %v2097 = vrot.slane %v2096, 2
    %v2098 = vrot.slane %v1589, 7
    %v2099 = vrot.slane %v2098, 2
    %v2100 = vrot.slane %v1597, 7
    %v2101 = vrot.slane %v2100, 2
    %v2102 = vrot.slane %v1605, 7
    %v2103 = vrot.slane %v2102, 2
    %v2104 = vrot.slane %v1604, 7
    %v2105 = vrot.slane %v2104, 2
    %v2106 = vrot.slane %v1606, 7
    %v2107 = vrot.slane %v2106, 2
    %v2108 = vrot.slane %v1614, 7
    %v2109 = vrot.slane %v2108, 2
    %v2110 = vrot.slane %v1622, 7
    %v2111 = vrot.slane %v2110, 2
    %v2112 = vrot.slane %v1621, 7
    %v2113 = vrot.slane %v2112, 2
    %v2114 = vrot.slane %v1623, 7
    %v2115 = vrot.slane %v2114, 2
    %v2116 = vrot.slane %v1631, 7
    %v2117 = vrot.slane %v2116, 2
    %v2118 = vrot.slane %v1639, 7
    %v2119 = vrot.slane %v2118, 2
    %v2120 = vrot.slane %v1638, 7
    %v2121 = vrot.slane %v2120, 2
    %v2122 = vrot.slane %v1640, 7
    %v2123 = vrot.slane %v2122, 2
    %v2124 = vrot.slane %v1648, 7
    %v2125 = vrot.slane %v2124, 2
    %v2126 = vrot.slane %v1656, 7
    %v2127 = vrot.slane %v2126, 2
    %v2128 = vrot.slane %v1655, 7
    %v2129 = vrot.slane %v2128, 2
    %v2130 = vrot.slane %v1657, 7
    %v2131 = vrot.slane %v2130, 2
    %v2132 = vrot.slane %v1665, 7
    %v2133 = vrot.slane %v2132, 2
    %v2134 = vrot.slane %v1673, 7
    %v2135 = vrot.slane %v2134, 2
    %v2136 = vrot.slane %v1672, 7
    %v2137 = vrot.slane %v2136, 2
    %v2138 = vrot.slane %v1674, 7
    %v2139 = vrot.slane %v2138, 2
    %v2140 = vrot.slane %v1682, 7
    %v2141 = vrot.slane %v2140, 2
    %v2142 = vrot.slane %v1690, 7
    %v2143 = vrot.slane %v2142, 2
    %v2144 = vrot.slane %v1689, 7
    %v2145 = vrot.slane %v2144, 2
    %v2146 = vrot.slane %v1691, 7
    %v2147 = vrot.slane %v2146, 2
    %v2148 = vrot.slane %v1699, 7
    %v2149 = vrot.slane %v2148, 2
    %v2150 = vrot.slane %v1707, 7
    %v2151 = vrot.slane %v2150, 2
    %v2152 = vrot.slane %v1706, 7
    %v2153 = vrot.slane %v2152, 2
    %v2154 = vrot.slane %v1708, 7
    %v2155 = vrot.slane %v2154, 2
    %v2156 = vrot.slane %v1716, 7
    %v2157 = vrot.slane %v2156, 2
    %v2158 = vrot.slane %v1724, 7
    %v2159 = vrot.slane %v2158, 2
    %v2160 = vrot.slane %v1723, 7
    %v2161 = vrot.slane %v2160, 2
    %v2162 = vrot.slane %v1725, 7
    %v2163 = vrot.slane %v2162, 2
    %v2164 = vrot.slane %v1733, 7
    %v2165 = vrot.slane %v2164, 2
    %v2166 = vrot.slane %v1741, 7
    %v2167 = vrot.slane %v2166, 2
    %v2168 = vrot.slane %v1740, 7
    %v2169 = vrot.slane %v2168, 2
    %v2170 = vrot.slane %v1742, 7
    %v2171 = vrot.slane %v2170, 2
    %v2172 = vrot.slane %v1750, 7
    %v2173 = vrot.slane %v2172, 2
    %v2174 = vrot.slane %v1758, 7
    %v2175 = vrot.slane %v2174, 2
    %v2176 = vrot.slane %v1757, 7
    %v2177 = vrot.slane %v2176, 2
    %v2178 = vrot.slane %v1759, 7
    %v2179 = vrot.slane %v2178, 2
    %v2180 = vrot.slane %v1767, 7
    %v2181 = vrot.slane %v2180, 2
    %v2182 = vrot.slane %v1775, 7
    %v2183 = vrot.slane %v2182, 2
    %v2184 = vrot.slane %v1774, 7
    %v2185 = vrot.slane %v2184, 2
    %v2186 = vrot.slane %v1776, 7
    %v2187 = vrot.slane %v2186, 2
    %v2188 = vrot.slane %v1784, 7
    %v2189 = vrot.slane %v2188, 2
    %v2190 = vrot.slane %v1792, 7
    %v2191 = vrot.slane %v2190, 2
    %v2192 = vrot.slane %v1791, 7
    %v2193 = vrot.slane %v2192, 2
    %v2194 = vrot.slane %v1793, 7
    %v2195 = vrot.slane %v2194, 2
    %v2196 = vrot.slane %v1801, 7
    %v2197 = vrot.slane %v2196, 2
    %v2198 = vrot.slane %v1809, 7
    %v2199 = vrot.slane %v2198, 2
    %v2200 = vrot.slane %v1808, 7
    %v2201 = vrot.slane %v2200, 2
    %v2202 = vrot.slane %v1810, 7
    %v2203 = vrot.slane %v2202, 2
    %v2204 = vrot.slane %v1818, 7
    %v2205 = vrot.slane %v2204, 2
    %v2206 = vrot.slane %v1826, 7
    %v2207 = vrot.slane %v2206, 2
    %v2208 = vrot.slane %v1825, 7
    %v2209 = vrot.slane %v2208, 2
    %v2210 = vrot.slane %v1827, 7
    %v2211 = vrot.slane %v2210, 2
    %v2340 = vmax.f32 %v1291, %v1957
    %v2341 = vmax.f32 %v1299, %v1959
    %v2342 = vmax.f32 %v1298, %v1961
    %v2343 = vmax.f32 %v1300, %v1963
    %v2344 = vmax.f32 %v1308, %v1965
    %v2345 = vmax.f32 %v1316, %v1967
    %v2346 = vmax.f32 %v1315, %v1969
    %v2347 = vmax.f32 %v1317, %v1971
    %v2348 = vmax.f32 %v1325, %v1973
    %v2349 = vmax.f32 %v1333, %v1975
    %v2350 = vmax.f32 %v1332, %v1977
    %v2351 = vmax.f32 %v1334, %v1979
    %v2352 = vmax.f32 %v1342, %v1981
    %v2353 = vmax.f32 %v1350, %v1983
    %v2354 = vmax.f32 %v1349, %v1985
    %v2355 = vmax.f32 %v1351, %v1987
    %v2356 = vmax.f32 %v1359, %v1989
    %v2357 = vmax.f32 %v1367, %v1991
    %v2358 = vmax.f32 %v1366, %v1993
    %v2359 = vmax.f32 %v1368, %v1995
    %v2360 = vmax.f32 %v1376, %v1997
    %v2361 = vmax.f32 %v1384, %v1999
    %v2362 = vmax.f32 %v1383, %v2001
    %v2363 = vmax.f32 %v1385, %v2003
    %v2364 = vmax.f32 %v1393, %v2005
    %v2365 = vmax.f32 %v1401, %v2007
    %v2366 = vmax.f32 %v1400, %v2009
    %v2367 = vmax.f32 %v1402, %v2011
    %v2368 = vmax.f32 %v1410, %v2013
    %v2369 = vmax.f32 %v1418, %v2015
    %v2370 = vmax.f32 %v1417, %v2017
    %v2371 = vmax.f32 %v1419, %v2019
    %v2372 = vmax.f32 %v1427, %v2021
    %v2373 = vmax.f32 %v1435, %v2023
    %v2374 = vmax.f32 %v1434, %v2025
    %v2375 = vmax.f32 %v1436, %v2027
    %v2376 = vmax.f32 %v1444, %v2029
    %v2377 = vmax.f32 %v1452, %v2031
    %v2378 = vmax.f32 %v1451, %v2033
    %v2379 = vmax.f32 %v1453, %v2035
    %v2380 = vmax.f32 %v1461, %v2037
    %v2381 = vmax.f32 %v1469, %v2039
    %v2382 = vmax.f32 %v1468, %v2041
    %v2383 = vmax.f32 %v1470, %v2043
    %v2384 = vmax.f32 %v1478, %v2045
    %v2385 = vmax.f32 %v1486, %v2047
    %v2386 = vmax.f32 %v1485, %v2049
    %v2387 = vmax.f32 %v1487, %v2051
    %v2388 = vmax.f32 %v1495, %v2053
    %v2389 = vmax.f32 %v1503, %v2055
    %v2390 = vmax.f32 %v1502, %v2057
    %v2391 = vmax.f32 %v1504, %v2059
    %v2392 = vmax.f32 %v1512, %v2061
    %v2393 = vmax.f32 %v1520, %v2063
    %v2394 = vmax.f32 %v1519, %v2065
    %v2395 = vmax.f32 %v1521, %v2067
    %v2396 = vmax.f32 %v1529, %v2069
    %v2397 = vmax.f32 %v1537, %v2071
    %v2398 = vmax.f32 %v1536, %v2073
    %v2399 = vmax.f32 %v1538, %v2075
    %v2400 = vmax.f32 %v1546, %v2077
    %v2401 = vmax.f32 %v1554, %v2079
    %v2402 = vmax.f32 %v1553, %v2081
    %v2403 = vmax.f32 %v1555, %v2083
    %v2404 = vmax.f32 %v1563, %v2085
    %v2405 = vmax.f32 %v1571, %v2087
    %v2406 = vmax.f32 %v1570, %v2089
    %v2407 = vmax.f32 %v1572, %v2091
    %v2408 = vmax.f32 %v1580, %v2093
    %v2409 = vmax.f32 %v1588, %v2095
    %v2410 = vmax.f32 %v1587, %v2097
    %v2411 = vmax.f32 %v1589, %v2099
    %v2412 = vmax.f32 %v1597, %v2101
    %v2413 = vmax.f32 %v1605, %v2103
    %v2414 = vmax.f32 %v1604, %v2105
    %v2415 = vmax.f32 %v1606, %v2107
    %v2416 = vmax.f32 %v1614, %v2109
    %v2417 = vmax.f32 %v1622, %v2111
    %v2418 = vmax.f32 %v1621, %v2113
    %v2419 = vmax.f32 %v1623, %v2115
    %v2420 = vmax.f32 %v1631, %v2117
    %v2421 = vmax.f32 %v1639, %v2119
    %v2422 = vmax.f32 %v1638, %v2121
    %v2423 = vmax.f32 %v1640, %v2123
    %v2424 = vmax.f32 %v1648, %v2125
    %v2425 = vmax.f32 %v1656, %v2127
    %v2426 = vmax.f32 %v1655, %v2129
    %v2427 = vmax.f32 %v1657, %v2131
    %v2428 = vmax.f32 %v1665, %v2133
    %v2429 = vmax.f32 %v1673, %v2135
    %v2430 = vmax.f32 %v1672, %v2137
    %v2431 = vmax.f32 %v1674, %v2139
    %v2432 = vmax.f32 %v1682, %v2141
    %v2433 = vmax.f32 %v1690, %v2143
    %v2434 = vmax.f32 %v1689, %v2145
    %v2435 = vmax.f32 %v1691, %v2147
    %v2436 = vmax.f32 %v1699, %v2149
    %v2437 = vmax.f32 %v1707, %v2151
    %v2438 = vmax.f32 %v1706, %v2153
    %v2439 = vmax.f32 %v1708, %v2155
    %v2440 = vmax.f32 %v1716, %v2157
    %v2441 = vmax.f32 %v1724, %v2159
    %v2442 = vmax.f32 %v1723, %v2161
    %v2443 = vmax.f32 %v1725, %v2163
    %v2444 = vmax.f32 %v1733, %v2165
    %v2445 = vmax.f32 %v1741, %v2167
    %v2446 = vmax.f32 %v1740, %v2169
    %v2447 = vmax.f32 %v1742, %v2171
    %v2448 = vmax.f32 %v1750, %v2173
    %v2449 = vmax.f32 %v1758, %v2175
    %v2450 = vmax.f32 %v1757, %v2177
    %v2451 = vmax.f32 %v1759, %v2179
    %v2452 = vmax.f32 %v1767, %v2181
    %v2453 = vmax.f32 %v1775, %v2183
    %v2454 = vmax.f32 %v1774, %v2185
    %v2455 = vmax.f32 %v1776, %v2187
    %v2456 = vmax.f32 %v1784, %v2189
    %v2457 = vmax.f32 %v1792, %v2191
    %v2458 = vmax.f32 %v1791, %v2193
    %v2459 = vmax.f32 %v1793, %v2195
    %v2460 = vmax.f32 %v1801, %v2197
    %v2461 = vmax.f32 %v1809, %v2199
    %v2462 = vmax.f32 %v1808, %v2201
    %v2463 = vmax.f32 %v1810, %v2203
    %v2464 = vmax.f32 %v1818, %v2205
    %v2465 = vmax.f32 %v1826, %v2207
    %v2466 = vmax.f32 %v1825, %v2209
    %v2467 = vmax.f32 %v1827, %v2211
    %v2468 = vmax.f32 %v2340, %v2348
    %v2469 = vmax.f32 %v2341, %v2349
    %v2470 = vmax.f32 %v2342, %v2350
    %v2471 = vmax.f32 %v2343, %v2351
    %v2472 = vmax.f32 %v2344, %v2352
    %v2473 = vmax.f32 %v2345, %v2353
    %v2474 = vmax.f32 %v2346, %v2354
    %v2475 = vmax.f32 %v2347, %v2355
    %v2476 = vmax.f32 %v2356, %v2364
    %v2477 = vmax.f32 %v2357, %v2365
    %v2478 = vmax.f32 %v2358, %v2366
    %v2479 = vmax.f32 %v2359, %v2367
    %v2480 = vmax.f32 %v2360, %v2368
    %v2481 = vmax.f32 %v2361, %v2369
    %v2482 = vmax.f32 %v2362, %v2370
    %v2483 = vmax.f32 %v2363, %v2371
    %v2484 = vmax.f32 %v2372, %v2380
    %v2485 = vmax.f32 %v2373, %v2381
    %v2486 = vmax.f32 %v2374, %v2382
    %v2487 = vmax.f32 %v2375, %v2383
    %v2488 = vmax.f32 %v2376, %v2384
    %v2489 = vmax.f32 %v2377, %v2385
    %v2490 = vmax.f32 %v2378, %v2386
    %v2491 = vmax.f32 %v2379, %v2387
    %v2492 = vmax.f32 %v2388, %v2396
    %v2493 = vmax.f32 %v2389, %v2397
    %v2494 = vmax.f32 %v2390, %v2398
    %v2495 = vmax.f32 %v2391, %v2399
    %v2496 = vmax.f32 %v2392, %v2400
    %v2497 = vmax.f32 %v2393, %v2401
    %v2498 = vmax.f32 %v2394, %v2402
    %v2499 = vmax.f32 %v2395, %v2403
    %v2500 = vmax.f32 %v2404, %v2412
    %v2501 = vmax.f32 %v2405, %v2413
    %v2502 = vmax.f32 %v2406, %v2414
    %v2503 = vmax.f32 %v2407, %v2415
    %v2504 = vmax.f32 %v2408, %v2416
    %v2505 = vmax.f32 %v2409, %v2417
    %v2506 = vmax.f32 %v2410, %v2418
    %v2507 = vmax.f32 %v2411, %v2419
    %v2508 = vmax.f32 %v2420, %v2428
    %v2509 = vmax.f32 %v2421, %v2429
    %v2510 = vmax.f32 %v2422, %v2430
    %v2511 = vmax.f32 %v2423, %v2431
    %v2512 = vmax.f32 %v2424, %v2432
    %v2513 = vmax.f32 %v2425, %v2433
    %v2514 = vmax.f32 %v2426, %v2434
    %v2515 = vmax.f32 %v2427, %v2435
    %v2516 = vmax.f32 %v2436, %v2444
    %v2517 = vmax.f32 %v2437, %v2445
    %v2518 = vmax.f32 %v2438, %v2446
    %v2519 = vmax.f32 %v2439, %v2447
    %v2520 = vmax.f32 %v2440, %v2448
    %v2521 = vmax.f32 %v2441, %v2449
    %v2522 = vmax.f32 %v2442, %v2450
    %v2523 = vmax.f32 %v2443, %v2451
    %v2524 = vmax.f32 %v2452, %v2460
    %v2525 = vmax.f32 %v2453, %v2461
    %v2526 = vmax.f32 %v2454, %v2462
    %v2527 = vmax.f32 %v2455, %v2463
    %v2528 = vmax.f32 %v2456, %v2464
    %v2529 = vmax.f32 %v2457, %v2465
    %v2530 = vmax.f32 %v2458, %v2466
    %v2531 = vmax.f32 %v2459, %v2467
    %v2596 = vlaneseq
    %v2597 = vshrl.u32 %v2596, 7
    %v2598 = vsub.s32 0, %v2597
    %v2599 = vrot.slane %v2468, %v2598
    %v2600 = vlaneseq
    %v2601 = vshrl.u32 %v2600, 7
    %v2602 = vsub.s32 0, %v2601
    %v2603 = vrot.slane %v2469, %v2602
    %v2604 = vlaneseq
    %v2605 = vshrl.u32 %v2604, 7
    %v2606 = vsub.s32 0, %v2605
    %v2607 = vrot.slane %v2470, %v2606
    %v2608 = vlaneseq
    %v2609 = vshrl.u32 %v2608, 7
    %v2610 = vsub.s32 0, %v2609
    %v2611 = vrot.slane %v2471, %v2610
    %v2612 = vlaneseq
    %v2613 = vshrl.u32 %v2612, 7
    %v2614 = vsub.s32 0, %v2613
    %v2615 = vrot.slane %v2472, %v2614
    %v2616 = vlaneseq
    %v2617 = vshrl.u32 %v2616, 7
    %v2618 = vsub.s32 0, %v2617
    %v2619 = vrot.slane %v2473, %v2618
    %v2620 = vlaneseq
    %v2621 = vshrl.u32 %v2620, 7
    %v2622 = vsub.s32 0, %v2621
    %v2623 = vrot.slane %v2474, %v2622
    %v2624 = vlaneseq
    %v2625 = vshrl.u32 %v2624, 7
    %v2626 = vsub.s32 0, %v2625
    %v2627 = vrot.slane %v2475, %v2626
    %v2628 = vlaneseq
    %v2629 = vshrl.u32 %v2628, 7
    %v2630 = vsub.s32 0, %v2629
    %v2631 = vrot.slane %v2476, %v2630
    %v2632 = vlaneseq
    %v2633 = vshrl.u32 %v2632, 7
    %v2634 = vsub.s32 0, %v2633
    %v2635 = vrot.slane %v2477, %v2634
    %v2636 = vlaneseq
    %v2637 = vshrl.u32 %v2636, 7
    %v2638 = vsub.s32 0, %v2637
    %v2639 = vrot.slane %v2478, %v2638
    %v2640 = vlaneseq
    %v2641 = vshrl.u32 %v2640, 7
    %v2642 = vsub.s32 0, %v2641
    %v2643 = vrot.slane %v2479, %v2642
    %v2644 = vlaneseq
    %v2645 = vshrl.u32 %v2644, 7
    %v2646 = vsub.s32 0, %v2645
    %v2647 = vrot.slane %v2480, %v2646
    %v2648 = vlaneseq
    %v2649 = vshrl.u32 %v2648, 7
    %v2650 = vsub.s32 0, %v2649
    %v2651 = vrot.slane %v2481, %v2650
    %v2652 = vlaneseq
    %v2653 = vshrl.u32 %v2652, 7
    %v2654 = vsub.s32 0, %v2653
    %v2655 = vrot.slane %v2482, %v2654
    %v2656 = vlaneseq
    %v2657 = vshrl.u32 %v2656, 7
    %v2658 = vsub.s32 0, %v2657
    %v2659 = vrot.slane %v2483, %v2658
    %v2660 = vlaneseq
    %v2661 = vshrl.u32 %v2660, 7
    %v2662 = vsub.s32 0, %v2661
    %v2663 = vrot.slane %v2484, %v2662
    %v2664 = vlaneseq
    %v2665 = vshrl.u32 %v2664, 7
    %v2666 = vsub.s32 0, %v2665
    %v2667 = vrot.slane %v2485, %v2666
    %v2668 = vlaneseq
    %v2669 = vshrl.u32 %v2668, 7
    %v2670 = vsub.s32 0, %v2669
    %v2671 = vrot.slane %v2486, %v2670
    %v2672 = vlaneseq
    %v2673 = vshrl.u32 %v2672, 7
    %v2674 = vsub.s32 0, %v2673
    %v2675 = vrot.slane %v2487, %v2674
    %v2676 = vlaneseq
    %v2677 = vshrl.u32 %v2676, 7
    %v2678 = vsub.s32 0, %v2677
    %v2679 = vrot.slane %v2488, %v2678
    %v2680 = vlaneseq
    %v2681 = vshrl.u32 %v2680, 7
    %v2682 = vsub.s32 0, %v2681
    %v2683 = vrot.slane %v2489, %v2682
    %v2684 = vlaneseq
    %v2685 = vshrl.u32 %v2684, 7
    %v2686 = vsub.s32 0, %v2685
    %v2687 = vrot.slane %v2490, %v2686
    %v2688 = vlaneseq
    %v2689 = vshrl.u32 %v2688, 7
    %v2690 = vsub.s32 0, %v2689
    %v2691 = vrot.slane %v2491, %v2690
    %v2692 = vlaneseq
    %v2693 = vshrl.u32 %v2692, 7
    %v2694 = vsub.s32 0, %v2693
    %v2695 = vrot.slane %v2492, %v2694
    %v2696 = vlaneseq
    %v2697 = vshrl.u32 %v2696, 7
    %v2698 = vsub.s32 0, %v2697
    %v2699 = vrot.slane %v2493, %v2698
    %v2700 = vlaneseq
    %v2701 = vshrl.u32 %v2700, 7
    %v2702 = vsub.s32 0, %v2701
    %v2703 = vrot.slane %v2494, %v2702
    %v2704 = vlaneseq
    %v2705 = vshrl.u32 %v2704, 7
    %v2706 = vsub.s32 0, %v2705
    %v2707 = vrot.slane %v2495, %v2706
    %v2708 = vlaneseq
    %v2709 = vshrl.u32 %v2708, 7
    %v2710 = vsub.s32 0, %v2709
    %v2711 = vrot.slane %v2496, %v2710
    %v2712 = vlaneseq
    %v2713 = vshrl.u32 %v2712, 7
    %v2714 = vsub.s32 0, %v2713
    %v2715 = vrot.slane %v2497, %v2714
    %v2716 = vlaneseq
    %v2717 = vshrl.u32 %v2716, 7
    %v2718 = vsub.s32 0, %v2717
    %v2719 = vrot.slane %v2498, %v2718
    %v2720 = vlaneseq
    %v2721 = vshrl.u32 %v2720, 7
    %v2722 = vsub.s32 0, %v2721
    %v2723 = vrot.slane %v2499, %v2722
    %v2724 = vlaneseq
    %v2725 = vshrl.u32 %v2724, 7
    %v2726 = vsub.s32 0, %v2725
    %v2727 = vrot.slane %v2500, %v2726
    %v2728 = vlaneseq
    %v2729 = vshrl.u32 %v2728, 7
    %v2730 = vsub.s32 0, %v2729
    %v2731 = vrot.slane %v2501, %v2730
    %v2732 = vlaneseq
    %v2733 = vshrl.u32 %v2732, 7
    %v2734 = vsub.s32 0, %v2733
    %v2735 = vrot.slane %v2502, %v2734
    %v2736 = vlaneseq
    %v2737 = vshrl.u32 %v2736, 7
    %v2738 = vsub.s32 0, %v2737
    %v2739 = vrot.slane %v2503, %v2738
    %v2740 = vlaneseq
    %v2741 = vshrl.u32 %v2740, 7
    %v2742 = vsub.s32 0, %v2741
    %v2743 = vrot.slane %v2504, %v2742
    %v2744 = vlaneseq
    %v2745 = vshrl.u32 %v2744, 7
    %v2746 = vsub.s32 0, %v2745
    %v2747 = vrot.slane %v2505, %v2746
    %v2748 = vlaneseq
    %v2749 = vshrl.u32 %v2748, 7
    %v2750 = vsub.s32 0, %v2749
    %v2751 = vrot.slane %v2506, %v2750
    %v2752 = vlaneseq
    %v2753 = vshrl.u32 %v2752, 7
    %v2754 = vsub.s32 0, %v2753
    %v2755 = vrot.slane %v2507, %v2754
    %v2756 = vlaneseq
    %v2757 = vshrl.u32 %v2756, 7
    %v2758 = vsub.s32 0, %v2757
    %v2759 = vrot.slane %v2508, %v2758
    %v2760 = vlaneseq
    %v2761 = vshrl.u32 %v2760, 7
    %v2762 = vsub.s32 0, %v2761
    %v2763 = vrot.slane %v2509, %v2762
    %v2764 = vlaneseq
    %v2765 = vshrl.u32 %v2764, 7
    %v2766 = vsub.s32 0, %v2765
    %v2767 = vrot.slane %v2510, %v2766
    %v2768 = vlaneseq
    %v2769 = vshrl.u32 %v2768, 7
    %v2770 = vsub.s32 0, %v2769
    %v2771 = vrot.slane %v2511, %v2770
    %v2772 = vlaneseq
    %v2773 = vshrl.u32 %v2772, 7
    %v2774 = vsub.s32 0, %v2773
    %v2775 = vrot.slane %v2512, %v2774
    %v2776 = vlaneseq
    %v2777 = vshrl.u32 %v2776, 7
    %v2778 = vsub.s32 0, %v2777
    %v2779 = vrot.slane %v2513, %v2778
    %v2780 = vlaneseq
    %v2781 = vshrl.u32 %v2780, 7
    %v2782 = vsub.s32 0, %v2781
    %v2783 = vrot.slane %v2514, %v2782
    %v2784 = vlaneseq
    %v2785 = vshrl.u32 %v2784, 7
    %v2786 = vsub.s32 0, %v2785
    %v2787 = vrot.slane %v2515, %v2786
    %v2788 = vlaneseq
    %v2789 = vshrl.u32 %v2788, 7
    %v2790 = vsub.s32 0, %v2789
    %v2791 = vrot.slane %v2516, %v2790
    %v2792 = vlaneseq
    %v2793 = vshrl.u32 %v2792, 7
    %v2794 = vsub.s32 0, %v2793
    %v2795 = vrot.slane %v2517, %v2794
    %v2796 = vlaneseq
    %v2797 = vshrl.u32 %v2796, 7
    %v2798 = vsub.s32 0, %v2797
    %v2799 = vrot.slane %v2518, %v2798
    %v2800 = vlaneseq
    %v2801 = vshrl.u32 %v2800, 7
    %v2802 = vsub.s32 0, %v2801
    %v2803 = vrot.slane %v2519, %v2802
    %v2804 = vlaneseq
    %v2805 = vshrl.u32 %v2804, 7
    %v2806 = vsub.s32 0, %v2805
    %v2807 = vrot.slane %v2520, %v2806
    %v2808 = vlaneseq
    %v2809 = vshrl.u32 %v2808, 7
    %v2810 = vsub.s32 0, %v2809
    %v2811 = vrot.slane %v2521, %v2810
    %v2812 = vlaneseq
    %v2813 = vshrl.u32 %v2812, 7
    %v2814 = vsub.s32 0, %v2813
    %v2815 = vrot.slane %v2522, %v2814
    %v2816 = vlaneseq
    %v2817 = vshrl.u32 %v2816, 7
    %v2818 = vsub.s32 0, %v2817
    %v2819 = vrot.slane %v2523, %v2818
    %v2820 = vlaneseq
    %v2821 = vshrl.u32 %v2820, 7
    %v2822 = vsub.s32 0, %v2821
    %v2823 = vrot.slane %v2524, %v2822
    %v2824 = vlaneseq
    %v2825 = vshrl.u32 %v2824, 7
    %v2826 = vsub.s32 0, %v2825
    %v2827 = vrot.slane %v2525, %v2826
    %v2828 = vlaneseq
    %v2829 = vshrl.u32 %v2828, 7
    %v2830 = vsub.s32 0, %v2829
    %v2831 = vrot.slane %v2526, %v2830
    %v2832 = vlaneseq
    %v2833 = vshrl.u32 %v2832, 7
    %v2834 = vsub.s32 0, %v2833
    %v2835 = vrot.slane %v2527, %v2834
    %v2836 = vlaneseq
    %v2837 = vshrl.u32 %v2836, 7
    %v2838 = vsub.s32 0, %v2837
    %v2839 = vrot.slane %v2528, %v2838
    %v2840 = vlaneseq
    %v2841 = vshrl.u32 %v2840, 7
    %v2842 = vsub.s32 0, %v2841
    %v2843 = vrot.slane %v2529, %v2842
    %v2844 = vlaneseq
    %v2845 = vshrl.u32 %v2844, 7
    %v2846 = vsub.s32 0, %v2845
    %v2847 = vrot.slane %v2530, %v2846
    %v2848 = vlaneseq
    %v2849 = vshrl.u32 %v2848, 7
    %v2850 = vsub.s32 0, %v2849
    %v2851 = vrot.slane %v2531, %v2850
    %vm2852 = vcmask 1041409
    %v2853 = vsel %vm2852, %v2603, %v2599
    %vm2854 = vcmask 1042434
    %v2855 = vsel %vm2854, %v2607, %v2853
    %vm2856 = vcmask 1043459
    %v2857 = vsel %vm2856, %v2611, %v2855
    %vm2858 = vcmask 1044484
    %v2859 = vsel %vm2858, %v2615, %v2857
    %vm2860 = vcmask 1045509
    %v2861 = vsel %vm2860, %v2619, %v2859
    %vm2862 = vcmask 1046534
    %v2863 = vsel %vm2862, %v2623, %v2861
    %vm2864 = vcmask 1047559
    %v2865 = vsel %vm2864, %v2627, %v2863
    %v2866 = vsel %vm2852, %v2635, %v2631
    %v2867 = vsel %vm2854, %v2639, %v2866
    %v2868 = vsel %vm2856, %v2643, %v2867
    %v2869 = vsel %vm2858, %v2647, %v2868
    %v2870 = vsel %vm2860, %v2651, %v2869
    %v2871 = vsel %vm2862, %v2655, %v2870
    %v2872 = vsel %vm2864, %v2659, %v2871
    %v2873 = vsel %vm2852, %v2667, %v2663
    %v2874 = vsel %vm2854, %v2671, %v2873
    %v2875 = vsel %vm2856, %v2675, %v2874
    %v2876 = vsel %vm2858, %v2679, %v2875
    %v2877 = vsel %vm2860, %v2683, %v2876
    %v2878 = vsel %vm2862, %v2687, %v2877
    %v2879 = vsel %vm2864, %v2691, %v2878
    %v2880 = vsel %vm2852, %v2699, %v2695
    %v2881 = vsel %vm2854, %v2703, %v2880
    %v2882 = vsel %vm2856, %v2707, %v2881
    %v2883 = vsel %vm2858, %v2711, %v2882
    %v2884 = vsel %vm2860, %v2715, %v2883
    %v2885 = vsel %vm2862, %v2719, %v2884
    %v2886 = vsel %vm2864, %v2723, %v2885
    %v2887 = vsel %vm2852, %v2731, %v2727
    %v2888 = vsel %vm2854, %v2735, %v2887
    %v2889 = vsel %vm2856, %v2739, %v2888
    %v2890 = vsel %vm2858, %v2743, %v2889
    %v2891 = vsel %vm2860, %v2747, %v2890
    %v2892 = vsel %vm2862, %v2751, %v2891
    %v2893 = vsel %vm2864, %v2755, %v2892
    %v2894 = vsel %vm2852, %v2763, %v2759
    %v2895 = vsel %vm2854, %v2767, %v2894
    %v2896 = vsel %vm2856, %v2771, %v2895
    %v2897 = vsel %vm2858, %v2775, %v2896
    %v2898 = vsel %vm2860, %v2779, %v2897
    %v2899 = vsel %vm2862, %v2783, %v2898
    %v2900 = vsel %vm2864, %v2787, %v2899
    %v2901 = vsel %vm2852, %v2795, %v2791
    %v2902 = vsel %vm2854, %v2799, %v2901
    %v2903 = vsel %vm2856, %v2803, %v2902
    %v2904 = vsel %vm2858, %v2807, %v2903
    %v2905 = vsel %vm2860, %v2811, %v2904
    %v2906 = vsel %vm2862, %v2815, %v2905
    %v2907 = vsel %vm2864, %v2819, %v2906
    %v2908 = vsel %vm2852, %v2827, %v2823
    %v2909 = vsel %vm2854, %v2831, %v2908
    %v2910 = vsel %vm2856, %v2835, %v2909
    %v2911 = vsel %vm2858, %v2839, %v2910
    %v2912 = vsel %vm2860, %v2843, %v2911
    %v2913 = vsel %vm2862, %v2847, %v2912
    %v2914 = vsel %vm2864, %v2851, %v2913
    %v2923 = vadd.f32 %v2865, %v2872
    %v2924 = vadd.f32 %v2923, %v2879
    %v2925 = vadd.f32 %v2924, %v2886
    %v2926 = vadd.f32 %v2925, %v2893
    %v2927 = vadd.f32 %v2926, %v2900
    %v2928 = vadd.f32 %v2927, %v2907
    %v2929 = vadd.f32 %v2928, %v2914
    %v2930 = vrot.slane %v2929, 4
    %v2931 = vadd.f32 %v2929, %v2930
    %v2932 = vrot.slane %v2931, 2
    %v2933 = vadd.f32 %v2931, %v2932
    %v2934 = vrot.slane %v2933, 1
    %v2935 = vadd.f32 %v2933, %v2934
    %v2936 = vmul.f32 %v2935, 0.015625
    %v2937 = vlaneseq
    %v2938 = vshrl.u32 %v2937, 7
    %v2939 = vsub.s32 0, %v2938
    %v2940 = vrot.slane %v2936, %v2939
    %v2942 = vcombine.high %v2940, %v2940
    %v2944 = vunpack.c.l.s4 1983009808
    %v2945 = vunpack.c.0.s8 %v2944
    %v2946 = vlaneseq
    %v2947 = vshrl.u32 %v2946, 7
    %v2948 = vsub.s32 %v2945, %v2947
    %v2949 = vrot.slane %v2940, %v2948
    %v2951 = vunpack.c.l.s4 1983009808
    %v2952 = vunpack.c.0.s8 %v2951
    %v2953 = vlaneseq
    %v2954 = vshrl.u32 %v2953, 7
    %v2955 = vsub.s32 %v2952, %v2954
    %v2956 = vrot.slane %v2942, %v2955
    %v2957 = vcombine.high %v2949, %v2949
    %v2958 = vcombine.high %v2956, %v2956
    %v2959 = vrot.slane %v2949, 1
    %v2960 = vrot.slane %v2957, 1
    %v2961 = vrot.slane %v2956, 1
    %v2962 = vrot.slane %v2958, 1
    %v2971 = vsub.f32 %v2468, %v2949
    %v2972 = vsub.f32 %v2469, %v2959
    %v2973 = vsub.f32 %v2470, %v2957
    %v2974 = vsub.f32 %v2471, %v2960
    %v2975 = vsub.f32 %v2472, %v2956
    %v2976 = vsub.f32 %v2473, %v2961
    %v2977 = vsub.f32 %v2474, %v2958
    %v2978 = vsub.f32 %v2475, %v2962
    %v2979 = vsub.f32 %v2476, %v2949
    %v2980 = vsub.f32 %v2477, %v2959
    %v2981 = vsub.f32 %v2478, %v2957
    %v2982 = vsub.f32 %v2479, %v2960
    %v2983 = vsub.f32 %v2480, %v2956
    %v2984 = vsub.f32 %v2481, %v2961
    %v2985 = vsub.f32 %v2482, %v2958
    %v2986 = vsub.f32 %v2483, %v2962
    %v2987 = vsub.f32 %v2484, %v2949
    %v2988 = vsub.f32 %v2485, %v2959
    %v2989 = vsub.f32 %v2486, %v2957
    %v2990 = vsub.f32 %v2487, %v2960
    %v2991 = vsub.f32 %v2488, %v2956
    %v2992 = vsub.f32 %v2489, %v2961
    %v2993 = vsub.f32 %v2490, %v2958
    %v2994 = vsub.f32 %v2491, %v2962
    %v2995 = vsub.f32 %v2492, %v2949
    %v2996 = vsub.f32 %v2493, %v2959
    %v2997 = vsub.f32 %v2494, %v2957
    %v2998 = vsub.f32 %v2495, %v2960
    %v2999 = vsub.f32 %v2496, %v2956
    %v3000 = vsub.f32 %v2497, %v2961
    %v3001 = vsub.f32 %v2498, %v2958
    %v3002 = vsub.f32 %v2499, %v2962
    %v3003 = vsub.f32 %v2500, %v2949
    %v3004 = vsub.f32 %v2501, %v2959
    %v3005 = vsub.f32 %v2502, %v2957
    %v3006 = vsub.f32 %v2503, %v2960
    %v3007 = vsub.f32 %v2504, %v2956
    %v3008 = vsub.f32 %v2505, %v2961
    %v3009 = vsub.f32 %v2506, %v2958
    %v3010 = vsub.f32 %v2507, %v2962
    %v3011 = vsub.f32 %v2508, %v2949
    %v3012 = vsub.f32 %v2509, %v2959
    %v3013 = vsub.f32 %v2510, %v2957
    %v3014 = vsub.f32 %v2511, %v2960
    %v3015 = vsub.f32 %v2512, %v2956
    %v3016 = vsub.f32 %v2513, %v2961
    %v3017 = vsub.f32 %v2514, %v2958
    %v3018 = vsub.f32 %v2515, %v2962
    %v3019 = vsub.f32 %v2516, %v2949
    %v3020 = vsub.f32 %v2517, %v2959
    %v3021 = vsub.f32 %v2518, %v2957
    %v3022 = vsub.f32 %v2519, %v2960
    %v3023 = vsub.f32 %v2520, %v2956
    %v3024 = vsub.f32 %v2521, %v2961
    %v3025 = vsub.f32 %v2522, %v2958
    %v3026 = vsub.f32 %v2523, %v2962
    %v3027 = vsub.f32 %v2524, %v2949
    %v3028 = vsub.f32 %v2525, %v2959
    %v3029 = vsub.f32 %v2526, %v2957
    %v3030 = vsub.f32 %v2527, %v2960
    %v3031 = vsub.f32 %v2528, %v2956
    %v3032 = vsub.f32 %v2529, %v2961
    %v3033 = vsub.f32 %v2530, %v2958
    %v3034 = vsub.f32 %v2531, %v2962
    %v3035 = vmul.f32 %v2971, %v2971
    %v3036 = vmul.f32 %v2972, %v2972
    %v3037 = vmul.f32 %v2973, %v2973
    %v3038 = vmul.f32 %v2974, %v2974
    %v3039 = vmul.f32 %v2975, %v2975
    %v3040 = vmul.f32 %v2976, %v2976
    %v3041 = vmul.f32 %v2977, %v2977
    %v3042 = vmul.f32 %v2978, %v2978
    %v3043 = vmul.f32 %v2979, %v2979
    %v3044 = vmul.f32 %v2980, %v2980
    %v3045 = vmul.f32 %v2981, %v2981
    %v3046 = vmul.f32 %v2982, %v2982
    %v3047 = vmul.f32 %v2983, %v2983
    %v3048 = vmul.f32 %v2984, %v2984
    %v3049 = vmul.f32 %v2985, %v2985
    %v3050 = vmul.f32 %v2986, %v2986
    %v3051 = vmul.f32 %v2987, %v2987
    %v3052 = vmul.f32 %v2988, %v2988
    %v3053 = vmul.f32 %v2989, %v2989
    %v3054 = vmul.f32 %v2990, %v2990
    %v3055 = vmul.f32 %v2991, %v2991
    %v3056 = vmul.f32 %v2992, %v2992
    %v3057 = vmul.f32 %v2993, %v2993
    %v3058 = vmul.f32 %v2994, %v2994
    %v3059 = vmul.f32 %v2995, %v2995
    %v3060 = vmul.f32 %v2996, %v2996
    %v3061 = vmul.f32 %v2997, %v2997
    %v3062 = vmul.f32 %v2998, %v2998
    %v3063 = vmul.f32 %v2999, %v2999
    %v3064 = vmul.f32 %v3000, %v3000
    %v3065 = vmul.f32 %v3001, %v3001
    %v3066 = vmul.f32 %v3002, %v3002
    %v3067 = vmul.f32 %v3003, %v3003
    %v3068 = vmul.f32 %v3004, %v3004
    %v3069 = vmul.f32 %v3005, %v3005
    %v3070 = vmul.f32 %v3006, %v3006
    %v3071 = vmul.f32 %v3007, %v3007
    %v3072 = vmul.f32 %v3008, %v3008
    %v3073 = vmul.f32 %v3009, %v3009
    %v3074 = vmul.f32 %v3010, %v3010
    %v3075 = vmul.f32 %v3011, %v3011
    %v3076 = vmul.f32 %v3012, %v3012
    %v3077 = vmul.f32 %v3013, %v3013
    %v3078 = vmul.f32 %v3014, %v3014
    %v3079 = vmul.f32 %v3015, %v3015
    %v3080 = vmul.f32 %v3016, %v3016
    %v3081 = vmul.f32 %v3017, %v3017
    %v3082 = vmul.f32 %v3018, %v3018
    %v3083 = vmul.f32 %v3019, %v3019
    %v3084 = vmul.f32 %v3020, %v3020
    %v3085 = vmul.f32 %v3021, %v3021
    %v3086 = vmul.f32 %v3022, %v3022
    %v3087 = vmul.f32 %v3023, %v3023
    %v3088 = vmul.f32 %v3024, %v3024
    %v3089 = vmul.f32 %v3025, %v3025
    %v3090 = vmul.f32 %v3026, %v3026
    %v3091 = vmul.f32 %v3027, %v3027
    %v3092 = vmul.f32 %v3028, %v3028
    %v3093 = vmul.f32 %v3029, %v3029
    %v3094 = vmul.f32 %v3030, %v3030
    %v3095 = vmul.f32 %v3031, %v3031
    %v3096 = vmul.f32 %v3032, %v3032
    %v3097 = vmul.f32 %v3033, %v3033
    %v3098 = vmul.f32 %v3034, %v3034
    %v3163 = vlaneseq
    %v3164 = vshrl.u32 %v3163, 7
    %v3165 = vsub.s32 0, %v3164
    %v3166 = vrot.slane %v3035, %v3165
    %v3167 = vlaneseq
    %v3168 = vshrl.u32 %v3167, 7
    %v3169 = vsub.s32 0, %v3168
    %v3170 = vrot.slane %v3036, %v3169
    %v3171 = vlaneseq
    %v3172 = vshrl.u32 %v3171, 7
    %v3173 = vsub.s32 0, %v3172
    %v3174 = vrot.slane %v3037, %v3173
    %v3175 = vlaneseq
    %v3176 = vshrl.u32 %v3175, 7
    %v3177 = vsub.s32 0, %v3176
    %v3178 = vrot.slane %v3038, %v3177
    %v3179 = vlaneseq
    %v3180 = vshrl.u32 %v3179, 7
    %v3181 = vsub.s32 0, %v3180
    %v3182 = vrot.slane %v3039, %v3181
    %v3183 = vlaneseq
    %v3184 = vshrl.u32 %v3183, 7
    %v3185 = vsub.s32 0, %v3184
    %v3186 = vrot.slane %v3040, %v3185
    %v3187 = vlaneseq
    %v3188 = vshrl.u32 %v3187, 7
    %v3189 = vsub.s32 0, %v3188
    %v3190 = vrot.slane %v3041, %v3189
    %v3191 = vlaneseq
    %v3192 = vshrl.u32 %v3191, 7
    %v3193 = vsub.s32 0, %v3192
    %v3194 = vrot.slane %v3042, %v3193
    %v3195 = vlaneseq
    %v3196 = vshrl.u32 %v3195, 7
    %v3197 = vsub.s32 0, %v3196
    %v3198 = vrot.slane %v3043, %v3197
    %v3199 = vlaneseq
    %v3200 = vshrl.u32 %v3199, 7
    %v3201 = vsub.s32 0, %v3200
    %v3202 = vrot.slane %v3044, %v3201
    %v3203 = vlaneseq
    %v3204 = vshrl.u32 %v3203, 7
    %v3205 = vsub.s32 0, %v3204
    %v3206 = vrot.slane %v3045, %v3205
    %v3207 = vlaneseq
    %v3208 = vshrl.u32 %v3207, 7
    %v3209 = vsub.s32 0, %v3208
    %v3210 = vrot.slane %v3046, %v3209
    %v3211 = vlaneseq
    %v3212 = vshrl.u32 %v3211, 7
    %v3213 = vsub.s32 0, %v3212
    %v3214 = vrot.slane %v3047, %v3213
    %v3215 = vlaneseq
    %v3216 = vshrl.u32 %v3215, 7
    %v3217 = vsub.s32 0, %v3216
    %v3218 = vrot.slane %v3048, %v3217
    %v3219 = vlaneseq
    %v3220 = vshrl.u32 %v3219, 7
    %v3221 = vsub.s32 0, %v3220
    %v3222 = vrot.slane %v3049, %v3221
    %v3223 = vlaneseq
    %v3224 = vshrl.u32 %v3223, 7
    %v3225 = vsub.s32 0, %v3224
    %v3226 = vrot.slane %v3050, %v3225
    %v3227 = vlaneseq
    %v3228 = vshrl.u32 %v3227, 7
    %v3229 = vsub.s32 0, %v3228
    %v3230 = vrot.slane %v3051, %v3229
    %v3231 = vlaneseq
    %v3232 = vshrl.u32 %v3231, 7
    %v3233 = vsub.s32 0, %v3232
    %v3234 = vrot.slane %v3052, %v3233
    %v3235 = vlaneseq
    %v3236 = vshrl.u32 %v3235, 7
    %v3237 = vsub.s32 0, %v3236
    %v3238 = vrot.slane %v3053, %v3237
    %v3239 = vlaneseq
    %v3240 = vshrl.u32 %v3239, 7
    %v3241 = vsub.s32 0, %v3240
    %v3242 = vrot.slane %v3054, %v3241
    %v3243 = vlaneseq
    %v3244 = vshrl.u32 %v3243, 7
    %v3245 = vsub.s32 0, %v3244
    %v3246 = vrot.slane %v3055, %v3245
    %v3247 = vlaneseq
    %v3248 = vshrl.u32 %v3247, 7
    %v3249 = vsub.s32 0, %v3248
    %v3250 = vrot.slane %v3056, %v3249
    %v3251 = vlaneseq
    %v3252 = vshrl.u32 %v3251, 7
    %v3253 = vsub.s32 0, %v3252
    %v3254 = vrot.slane %v3057, %v3253
    %v3255 = vlaneseq
    %v3256 = vshrl.u32 %v3255, 7
    %v3257 = vsub.s32 0, %v3256
    %v3258 = vrot.slane %v3058, %v3257
    %v3259 = vlaneseq
    %v3260 = vshrl.u32 %v3259, 7
    %v3261 = vsub.s32 0, %v3260
    %v3262 = vrot.slane %v3059, %v3261
    %v3263 = vlaneseq
    %v3264 = vshrl.u32 %v3263, 7
    %v3265 = vsub.s32 0, %v3264
    %v3266 = vrot.slane %v3060, %v3265
    %v3267 = vlaneseq
    %v3268 = vshrl.u32 %v3267, 7
    %v3269 = vsub.s32 0, %v3268
    %v3270 = vrot.slane %v3061, %v3269
    %v3271 = vlaneseq
    %v3272 = vshrl.u32 %v3271, 7
    %v3273 = vsub.s32 0, %v3272
    %v3274 = vrot.slane %v3062, %v3273
    %v3275 = vlaneseq
    %v3276 = vshrl.u32 %v3275, 7
    %v3277 = vsub.s32 0, %v3276
    %v3278 = vrot.slane %v3063, %v3277
    %v3279 = vlaneseq
    %v3280 = vshrl.u32 %v3279, 7
    %v3281 = vsub.s32 0, %v3280
    %v3282 = vrot.slane %v3064, %v3281
    %v3283 = vlaneseq
    %v3284 = vshrl.u32 %v3283, 7
    %v3285 = vsub.s32 0, %v3284
    %v3286 = vrot.slane %v3065, %v3285
    %v3287 = vlaneseq
    %v3288 = vshrl.u32 %v3287, 7
    %v3289 = vsub.s32 0, %v3288
    %v3290 = vrot.slane %v3066, %v3289
    %v3291 = vlaneseq
    %v3292 = vshrl.u32 %v3291, 7
    %v3293 = vsub.s32 0, %v3292
    %v3294 = vrot.slane %v3067, %v3293
    %v3295 = vlaneseq
    %v3296 = vshrl.u32 %v3295, 7
    %v3297 = vsub.s32 0, %v3296
    %v3298 = vrot.slane %v3068, %v3297
    %v3299 = vlaneseq
    %v3300 = vshrl.u32 %v3299, 7
    %v3301 = vsub.s32 0, %v3300
    %v3302 = vrot.slane %v3069, %v3301
    %v3303 = vlaneseq
    %v3304 = vshrl.u32 %v3303, 7
    %v3305 = vsub.s32 0, %v3304
    %v3306 = vrot.slane %v3070, %v3305
    %v3307 = vlaneseq
    %v3308 = vshrl.u32 %v3307, 7
    %v3309 = vsub.s32 0, %v3308
    %v3310 = vrot.slane %v3071, %v3309
    %v3311 = vlaneseq
    %v3312 = vshrl.u32 %v3311, 7
    %v3313 = vsub.s32 0, %v3312
    %v3314 = vrot.slane %v3072, %v3313
    %v3315 = vlaneseq
    %v3316 = vshrl.u32 %v3315, 7
    %v3317 = vsub.s32 0, %v3316
    %v3318 = vrot.slane %v3073, %v3317
    %v3319 = vlaneseq
    %v3320 = vshrl.u32 %v3319, 7
    %v3321 = vsub.s32 0, %v3320
    %v3322 = vrot.slane %v3074, %v3321
    %v3323 = vlaneseq
    %v3324 = vshrl.u32 %v3323, 7
    %v3325 = vsub.s32 0, %v3324
    %v3326 = vrot.slane %v3075, %v3325
    %v3327 = vlaneseq
    %v3328 = vshrl.u32 %v3327, 7
    %v3329 = vsub.s32 0, %v3328
    %v3330 = vrot.slane %v3076, %v3329
    %v3331 = vlaneseq
    %v3332 = vshrl.u32 %v3331, 7
    %v3333 = vsub.s32 0, %v3332
    %v3334 = vrot.slane %v3077, %v3333
    %v3335 = vlaneseq
    %v3336 = vshrl.u32 %v3335, 7
    %v3337 = vsub.s32 0, %v3336
    %v3338 = vrot.slane %v3078, %v3337
    %v3339 = vlaneseq
    %v3340 = vshrl.u32 %v3339, 7
    %v3341 = vsub.s32 0, %v3340
    %v3342 = vrot.slane %v3079, %v3341
    %v3343 = vlaneseq
    %v3344 = vshrl.u32 %v3343, 7
    %v3345 = vsub.s32 0, %v3344
    %v3346 = vrot.slane %v3080, %v3345
    %v3347 = vlaneseq
    %v3348 = vshrl.u32 %v3347, 7
    %v3349 = vsub.s32 0, %v3348
    %v3350 = vrot.slane %v3081, %v3349
    %v3351 = vlaneseq
    %v3352 = vshrl.u32 %v3351, 7
    %v3353 = vsub.s32 0, %v3352
    %v3354 = vrot.slane %v3082, %v3353
    %v3355 = vlaneseq
    %v3356 = vshrl.u32 %v3355, 7
    %v3357 = vsub.s32 0, %v3356
    %v3358 = vrot.slane %v3083, %v3357
    %v3359 = vlaneseq
    %v3360 = vshrl.u32 %v3359, 7
    %v3361 = vsub.s32 0, %v3360
    %v3362 = vrot.slane %v3084, %v3361
    %v3363 = vlaneseq
    %v3364 = vshrl.u32 %v3363, 7
    %v3365 = vsub.s32 0, %v3364
    %v3366 = vrot.slane %v3085, %v3365
    %v3367 = vlaneseq
    %v3368 = vshrl.u32 %v3367, 7
    %v3369 = vsub.s32 0, %v3368
    %v3370 = vrot.slane %v3086, %v3369
    %v3371 = vlaneseq
    %v3372 = vshrl.u32 %v3371, 7
    %v3373 = vsub.s32 0, %v3372
    %v3374 = vrot.slane %v3087, %v3373
    %v3375 = vlaneseq
    %v3376 = vshrl.u32 %v3375, 7
    %v3377 = vsub.s32 0, %v3376
    %v3378 = vrot.slane %v3088, %v3377
    %v3379 = vlaneseq
    %v3380 = vshrl.u32 %v3379, 7
    %v3381 = vsub.s32 0, %v3380
    %v3382 = vrot.slane %v3089, %v3381
    %v3383 = vlaneseq
    %v3384 = vshrl.u32 %v3383, 7
    %v3385 = vsub.s32 0, %v3384
    %v3386 = vrot.slane %v3090, %v3385
    %v3387 = vlaneseq
    %v3388 = vshrl.u32 %v3387, 7
    %v3389 = vsub.s32 0, %v3388
    %v3390 = vrot.slane %v3091, %v3389
    %v3391 = vlaneseq
    %v3392 = vshrl.u32 %v3391, 7
    %v3393 = vsub.s32 0, %v3392
    %v3394 = vrot.slane %v3092, %v3393
    %v3395 = vlaneseq
    %v3396 = vshrl.u32 %v3395, 7
    %v3397 = vsub.s32 0, %v3396
    %v3398 = vrot.slane %v3093, %v3397
    %v3399 = vlaneseq
    %v3400 = vshrl.u32 %v3399, 7
    %v3401 = vsub.s32 0, %v3400
    %v3402 = vrot.slane %v3094, %v3401
    %v3403 = vlaneseq
    %v3404 = vshrl.u32 %v3403, 7
    %v3405 = vsub.s32 0, %v3404
    %v3406 = vrot.slane %v3095, %v3405
    %v3407 = vlaneseq
    %v3408 = vshrl.u32 %v3407, 7
    %v3409 = vsub.s32 0, %v3408
    %v3410 = vrot.slane %v3096, %v3409
    %v3411 = vlaneseq
    %v3412 = vshrl.u32 %v3411, 7
    %v3413 = vsub.s32 0, %v3412
    %v3414 = vrot.slane %v3097, %v3413
    %v3415 = vlaneseq
    %v3416 = vshrl.u32 %v3415, 7
    %v3417 = vsub.s32 0, %v3416
    %v3418 = vrot.slane %v3098, %v3417
    %v3419 = vsel %vm2852, %v3170, %v3166
    %v3420 = vsel %vm2854, %v3174, %v3419
    %v3421 = vsel %vm2856, %v3178, %v3420
    %v3422 = vsel %vm2858, %v3182, %v3421
    %v3423 = vsel %vm2860, %v3186, %v3422
    %v3424 = vsel %vm2862, %v3190, %v3423
    %v3425 = vsel %vm2864, %v3194, %v3424
    %v3426 = vsel %vm2852, %v3202, %v3198
    %v3427 = vsel %vm2854, %v3206, %v3426
    %v3428 = vsel %vm2856, %v3210, %v3427
    %v3429 = vsel %vm2858, %v3214, %v3428
    %v3430 = vsel %vm2860, %v3218, %v3429
    %v3431 = vsel %vm2862, %v3222, %v3430
    %v3432 = vsel %vm2864, %v3226, %v3431
    %v3433 = vsel %vm2852, %v3234, %v3230
    %v3434 = vsel %vm2854, %v3238, %v3433
    %v3435 = vsel %vm2856, %v3242, %v3434
    %v3436 = vsel %vm2858, %v3246, %v3435
    %v3437 = vsel %vm2860, %v3250, %v3436
    %v3438 = vsel %vm2862, %v3254, %v3437
    %v3439 = vsel %vm2864, %v3258, %v3438
    %v3440 = vsel %vm2852, %v3266, %v3262
    %v3441 = vsel %vm2854, %v3270, %v3440
    %v3442 = vsel %vm2856, %v3274, %v3441
    %v3443 = vsel %vm2858, %v3278, %v3442
    %v3444 = vsel %vm2860, %v3282, %v3443
    %v3445 = vsel %vm2862, %v3286, %v3444
    %v3446 = vsel %vm2864, %v3290, %v3445
    %v3447 = vsel %vm2852, %v3298, %v3294
    %v3448 = vsel %vm2854, %v3302, %v3447
    %v3449 = vsel %vm2856, %v3306, %v3448
    %v3450 = vsel %vm2858, %v3310, %v3449
    %v3451 = vsel %vm2860, %v3314, %v3450
    %v3452 = vsel %vm2862, %v3318, %v3451
    %v3453 = vsel %vm2864, %v3322, %v3452
    %v3454 = vsel %vm2852, %v3330, %v3326
    %v3455 = vsel %vm2854, %v3334, %v3454
    %v3456 = vsel %vm2856, %v3338, %v3455
    %v3457 = vsel %vm2858, %v3342, %v3456
    %v3458 = vsel %vm2860, %v3346, %v3457
    %v3459 = vsel %vm2862, %v3350, %v3458
    %v3460 = vsel %vm2864, %v3354, %v3459
    %v3461 = vsel %vm2852, %v3362, %v3358
    %v3462 = vsel %vm2854, %v3366, %v3461
    %v3463 = vsel %vm2856, %v3370, %v3462
    %v3464 = vsel %vm2858, %v3374, %v3463
    %v3465 = vsel %vm2860, %v3378, %v3464
    %v3466 = vsel %vm2862, %v3382, %v3465
    %v3467 = vsel %vm2864, %v3386, %v3466
    %v3468 = vsel %vm2852, %v3394, %v3390
    %v3469 = vsel %vm2854, %v3398, %v3468
    %v3470 = vsel %vm2856, %v3402, %v3469
    %v3471 = vsel %vm2858, %v3406, %v3470
    %v3472 = vsel %vm2860, %v3410, %v3471
    %v3473 = vsel %vm2862, %v3414, %v3472
    %v3474 = vsel %vm2864, %v3418, %v3473
    %v3483 = vadd.f32 %v3425, %v3432
    %v3484 = vadd.f32 %v3483, %v3439
    %v3485 = vadd.f32 %v3484, %v3446
    %v3486 = vadd.f32 %v3485, %v3453
    %v3487 = vadd.f32 %v3486, %v3460
    %v3488 = vadd.f32 %v3487, %v3467
    %v3489 = vadd.f32 %v3488, %v3474
    %v3490 = vrot.slane %v3489, 4
    %v3491 = vadd.f32 %v3489, %v3490
    %v3492 = vrot.slane %v3491, 2
    %v3493 = vadd.f32 %v3491, %v3492
    %v3494 = vrot.slane %v3493, 1
    %v3495 = vadd.f32 %v3493, %v3494
    %v3496 = vmul.f32 %v3495, 0.015625
    %v3497 = vadd.f32 %v3496, 1e-05
    %v3498 = vrsqrt.pop %v3497
    %v3499 = vlaneseq
    %v3500 = vshrl.u32 %v3499, 7
    %v3501 = vsub.s32 0, %v3500
    %v3502 = vrot.slane %v3498, %v3501
    %v3504 = vcombine.high %v3502, %v3502
    %v3506 = vunpack.c.l.s4 1983009808
    %v3507 = vunpack.c.0.s8 %v3506
    %v3508 = vlaneseq
    %v3509 = vshrl.u32 %v3508, 7
    %v3510 = vsub.s32 %v3507, %v3509
    %v3511 = vrot.slane %v3502, %v3510
    %v3513 = vunpack.c.l.s4 1983009808
    %v3514 = vunpack.c.0.s8 %v3513
    %v3515 = vlaneseq
    %v3516 = vshrl.u32 %v3515, 7
    %v3517 = vsub.s32 %v3514, %v3516
    %v3518 = vrot.slane %v3504, %v3517
    %v3519 = vcombine.high %v3511, %v3511
    %v3520 = vcombine.high %v3518, %v3518
    %v3521 = vrot.slane %v3511, 1
    %v3522 = vrot.slane %v3519, 1
    %v3523 = vrot.slane %v3518, 1
    %v3524 = vrot.slane %v3520, 1
    %v3533 = vmul.f32 %v2971, %v3511
    %v3534 = vmul.f32 %v2972, %v3521
    %v3535 = vmul.f32 %v2973, %v3519
    %v3536 = vmul.f32 %v2974, %v3522
    %v3537 = vmul.f32 %v2975, %v3518
    %v3538 = vmul.f32 %v2976, %v3523
    %v3539 = vmul.f32 %v2977, %v3520
    %v3540 = vmul.f32 %v2978, %v3524
    %v3541 = vmul.f32 %v2979, %v3511
    %v3542 = vmul.f32 %v2980, %v3521
    %v3543 = vmul.f32 %v2981, %v3519
    %v3544 = vmul.f32 %v2982, %v3522
    %v3545 = vmul.f32 %v2983, %v3518
    %v3546 = vmul.f32 %v2984, %v3523
    %v3547 = vmul.f32 %v2985, %v3520
    %v3548 = vmul.f32 %v2986, %v3524
    %v3549 = vmul.f32 %v2987, %v3511
    %v3550 = vmul.f32 %v2988, %v3521
    %v3551 = vmul.f32 %v2989, %v3519
    %v3552 = vmul.f32 %v2990, %v3522
    %v3553 = vmul.f32 %v2991, %v3518
    %v3554 = vmul.f32 %v2992, %v3523
    %v3555 = vmul.f32 %v2993, %v3520
    %v3556 = vmul.f32 %v2994, %v3524
    %v3557 = vmul.f32 %v2995, %v3511
    %v3558 = vmul.f32 %v2996, %v3521
    %v3559 = vmul.f32 %v2997, %v3519
    %v3560 = vmul.f32 %v2998, %v3522
    %v3561 = vmul.f32 %v2999, %v3518
    %v3562 = vmul.f32 %v3000, %v3523
    %v3563 = vmul.f32 %v3001, %v3520
    %v3564 = vmul.f32 %v3002, %v3524
    %v3565 = vmul.f32 %v3003, %v3511
    %v3566 = vmul.f32 %v3004, %v3521
    %v3567 = vmul.f32 %v3005, %v3519
    %v3568 = vmul.f32 %v3006, %v3522
    %v3569 = vmul.f32 %v3007, %v3518
    %v3570 = vmul.f32 %v3008, %v3523
    %v3571 = vmul.f32 %v3009, %v3520
    %v3572 = vmul.f32 %v3010, %v3524
    %v3573 = vmul.f32 %v3011, %v3511
    %v3574 = vmul.f32 %v3012, %v3521
    %v3575 = vmul.f32 %v3013, %v3519
    %v3576 = vmul.f32 %v3014, %v3522
    %v3577 = vmul.f32 %v3015, %v3518
    %v3578 = vmul.f32 %v3016, %v3523
    %v3579 = vmul.f32 %v3017, %v3520
    %v3580 = vmul.f32 %v3018, %v3524
    %v3581 = vmul.f32 %v3019, %v3511
    %v3582 = vmul.f32 %v3020, %v3521
    %v3583 = vmul.f32 %v3021, %v3519
    %v3584 = vmul.f32 %v3022, %v3522
    %v3585 = vmul.f32 %v3023, %v3518
    %v3586 = vmul.f32 %v3024, %v3523
    %v3587 = vmul.f32 %v3025, %v3520
    %v3588 = vmul.f32 %v3026, %v3524
    %v3589 = vmul.f32 %v3027, %v3511
    %v3590 = vmul.f32 %v3028, %v3521
    %v3591 = vmul.f32 %v3029, %v3519
    %v3592 = vmul.f32 %v3030, %v3522
    %v3593 = vmul.f32 %v3031, %v3518
    %v3594 = vmul.f32 %v3032, %v3523
    %v3595 = vmul.f32 %v3033, %v3520
    %v3596 = vmul.f32 %v3034, %v3524
    %v3597 = vld [vmem:[%s5] sm:$0x1]
    %v3599 = vlaneseq
    %v3600 = vshrl.u32 %v3599, 7
    %v3601 = vsub.s32 0, %v3600
    %v3602 = vrot.slane %v3597, %v3601
    %v3603 = vcombine.high %v3602, %v3602
    %v3605 = vunpack.c.l.s4 1983009808
    %v3606 = vunpack.c.0.s8 %v3605
    %v3607 = vlaneseq
    %v3608 = vshrl.u32 %v3607, 7
    %v3609 = vsub.s32 %v3606, %v3608
    %v3610 = vrot.slane %v3602, %v3609
    %v3612 = vunpack.c.l.s4 1983009808
    %v3613 = vunpack.c.0.s8 %v3612
    %v3614 = vlaneseq
    %v3615 = vshrl.u32 %v3614, 7
    %v3616 = vsub.s32 %v3613, %v3615
    %v3617 = vrot.slane %v3603, %v3616
    %v3618 = vcombine.high %v3610, %v3610
    %v3619 = vcombine.high %v3617, %v3617
    %v3620 = vrot.slane %v3610, 1
    %v3621 = vrot.slane %v3618, 1
    %v3622 = vrot.slane %v3617, 1
    %v3623 = vrot.slane %v3619, 1
    %v3632 = vmul.f32 %v3533, %v3610
    %v3633 = vmul.f32 %v3534, %v3620
    %v3634 = vmul.f32 %v3535, %v3618
    %v3635 = vmul.f32 %v3536, %v3621
    %v3636 = vmul.f32 %v3537, %v3617
    %v3637 = vmul.f32 %v3538, %v3622
    %v3638 = vmul.f32 %v3539, %v3619
    %v3639 = vmul.f32 %v3540, %v3623
    %v3640 = vmul.f32 %v3541, %v3610
    %v3641 = vmul.f32 %v3542, %v3620
    %v3642 = vmul.f32 %v3543, %v3618
    %v3643 = vmul.f32 %v3544, %v3621
    %v3644 = vmul.f32 %v3545, %v3617
    %v3645 = vmul.f32 %v3546, %v3622
    %v3646 = vmul.f32 %v3547, %v3619
    %v3647 = vmul.f32 %v3548, %v3623
    %v3648 = vmul.f32 %v3549, %v3610
    %v3649 = vmul.f32 %v3550, %v3620
    %v3650 = vmul.f32 %v3551, %v3618
    %v3651 = vmul.f32 %v3552, %v3621
    %v3652 = vmul.f32 %v3553, %v3617
    %v3653 = vmul.f32 %v3554, %v3622
    %v3654 = vmul.f32 %v3555, %v3619
    %v3655 = vmul.f32 %v3556, %v3623
    %v3656 = vmul.f32 %v3557, %v3610
    %v3657 = vmul.f32 %v3558, %v3620
    %v3658 = vmul.f32 %v3559, %v3618
    %v3659 = vmul.f32 %v3560, %v3621
    %v3660 = vmul.f32 %v3561, %v3617
    %v3661 = vmul.f32 %v3562, %v3622
    %v3662 = vmul.f32 %v3563, %v3619
    %v3663 = vmul.f32 %v3564, %v3623
    %v3664 = vmul.f32 %v3565, %v3610
    %v3665 = vmul.f32 %v3566, %v3620
    %v3666 = vmul.f32 %v3567, %v3618
    %v3667 = vmul.f32 %v3568, %v3621
    %v3668 = vmul.f32 %v3569, %v3617
    %v3669 = vmul.f32 %v3570, %v3622
    %v3670 = vmul.f32 %v3571, %v3619
    %v3671 = vmul.f32 %v3572, %v3623
    %v3672 = vmul.f32 %v3573, %v3610
    %v3673 = vmul.f32 %v3574, %v3620
    %v3674 = vmul.f32 %v3575, %v3618
    %v3675 = vmul.f32 %v3576, %v3621
    %v3676 = vmul.f32 %v3577, %v3617
    %v3677 = vmul.f32 %v3578, %v3622
    %v3678 = vmul.f32 %v3579, %v3619
    %v3679 = vmul.f32 %v3580, %v3623
    %v3680 = vmul.f32 %v3581, %v3610
    %v3681 = vmul.f32 %v3582, %v3620
    %v3682 = vmul.f32 %v3583, %v3618
    %v3683 = vmul.f32 %v3584, %v3621
    %v3684 = vmul.f32 %v3585, %v3617
    %v3685 = vmul.f32 %v3586, %v3622
    %v3686 = vmul.f32 %v3587, %v3619
    %v3687 = vmul.f32 %v3588, %v3623
    %v3688 = vmul.f32 %v3589, %v3610
    %v3689 = vmul.f32 %v3590, %v3620
    %v3690 = vmul.f32 %v3591, %v3618
    %v3691 = vmul.f32 %v3592, %v3621
    %v3692 = vmul.f32 %v3593, %v3617
    %v3693 = vmul.f32 %v3594, %v3622
    %v3694 = vmul.f32 %v3595, %v3619
    %v3695 = vmul.f32 %v3596, %v3623
    %v3696 = vld [vmem:[%s6] sm:$0x1]
    %v3698 = vlaneseq
    %v3699 = vshrl.u32 %v3698, 7
    %v3700 = vsub.s32 0, %v3699
    %v3701 = vrot.slane %v3696, %v3700
    %v3702 = vcombine.high %v3701, %v3701
    %v3704 = vunpack.c.l.s4 1983009808
    %v3705 = vunpack.c.0.s8 %v3704
    %v3706 = vlaneseq
    %v3707 = vshrl.u32 %v3706, 7
    %v3708 = vsub.s32 %v3705, %v3707
    %v3709 = vrot.slane %v3701, %v3708
    %v3711 = vunpack.c.l.s4 1983009808
    %v3712 = vunpack.c.0.s8 %v3711
    %v3713 = vlaneseq
    %v3714 = vshrl.u32 %v3713, 7
    %v3715 = vsub.s32 %v3712, %v3714
    %v3716 = vrot.slane %v3702, %v3715
    %v3717 = vcombine.high %v3709, %v3709
    %v3718 = vcombine.high %v3716, %v3716
    %v3719 = vrot.slane %v3709, 1
    %v3720 = vrot.slane %v3717, 1
    %v3721 = vrot.slane %v3716, 1
    %v3722 = vrot.slane %v3718, 1
    %v3731 = vadd.f32 %v3632, %v3709
    %v3732 = vadd.f32 %v3633, %v3719
    %v3733 = vadd.f32 %v3634, %v3717
    %v3734 = vadd.f32 %v3635, %v3720
    %v3735 = vadd.f32 %v3636, %v3716
    %v3736 = vadd.f32 %v3637, %v3721
    %v3737 = vadd.f32 %v3638, %v3718
    %v3738 = vadd.f32 %v3639, %v3722
    %v3739 = vadd.f32 %v3640, %v3709
    %v3740 = vadd.f32 %v3641, %v3719
    %v3741 = vadd.f32 %v3642, %v3717
    %v3742 = vadd.f32 %v3643, %v3720
    %v3743 = vadd.f32 %v3644, %v3716
    %v3744 = vadd.f32 %v3645, %v3721
    %v3745 = vadd.f32 %v3646, %v3718
    %v3746 = vadd.f32 %v3647, %v3722
    %v3747 = vadd.f32 %v3648, %v3709
    %v3748 = vadd.f32 %v3649, %v3719
    %v3749 = vadd.f32 %v3650, %v3717
    %v3750 = vadd.f32 %v3651, %v3720
    %v3751 = vadd.f32 %v3652, %v3716
    %v3752 = vadd.f32 %v3653, %v3721
    %v3753 = vadd.f32 %v3654, %v3718
    %v3754 = vadd.f32 %v3655, %v3722
    %v3755 = vadd.f32 %v3656, %v3709
    %v3756 = vadd.f32 %v3657, %v3719
    %v3757 = vadd.f32 %v3658, %v3717
    %v3758 = vadd.f32 %v3659, %v3720
    %v3759 = vadd.f32 %v3660, %v3716
    %v3760 = vadd.f32 %v3661, %v3721
    %v3761 = vadd.f32 %v3662, %v3718
    %v3762 = vadd.f32 %v3663, %v3722
    %v3763 = vadd.f32 %v3664, %v3709
    %v3764 = vadd.f32 %v3665, %v3719
    %v3765 = vadd.f32 %v3666, %v3717
    %v3766 = vadd.f32 %v3667, %v3720
    %v3767 = vadd.f32 %v3668, %v3716
    %v3768 = vadd.f32 %v3669, %v3721
    %v3769 = vadd.f32 %v3670, %v3718
    %v3770 = vadd.f32 %v3671, %v3722
    %v3771 = vadd.f32 %v3672, %v3709
    %v3772 = vadd.f32 %v3673, %v3719
    %v3773 = vadd.f32 %v3674, %v3717
    %v3774 = vadd.f32 %v3675, %v3720
    %v3775 = vadd.f32 %v3676, %v3716
    %v3776 = vadd.f32 %v3677, %v3721
    %v3777 = vadd.f32 %v3678, %v3718
    %v3778 = vadd.f32 %v3679, %v3722
    %v3779 = vadd.f32 %v3680, %v3709
    %v3780 = vadd.f32 %v3681, %v3719
    %v3781 = vadd.f32 %v3682, %v3717
    %v3782 = vadd.f32 %v3683, %v3720
    %v3783 = vadd.f32 %v3684, %v3716
    %v3784 = vadd.f32 %v3685, %v3721
    %v3785 = vadd.f32 %v3686, %v3718
    %v3786 = vadd.f32 %v3687, %v3722
    %v3787 = vadd.f32 %v3688, %v3709
    %v3788 = vadd.f32 %v3689, %v3719
    %v3789 = vadd.f32 %v3690, %v3717
    %v3790 = vadd.f32 %v3691, %v3720
    %v3791 = vadd.f32 %v3692, %v3716
    %v3792 = vadd.f32 %v3693, %v3721
    %v3793 = vadd.f32 %v3694, %v3718
    %v3794 = vadd.f32 %v3695, %v3722
    %s3795 = sld [smem:[#allocation2]]
    %s3796 = sld [smem:[#allocation2 + $0x1]]
    %s3797 = sld [smem:[#allocation2 + $0x2]]
    %s3798 = sld [smem:[#allocation2 + $0x3]]
    %v3799 = vstv %s3795
    %v3800 = vmul.f32 %v3731, %v3799
    %v3801 = vmul.f32 %v3732, %v3799
    %v3802 = vmul.f32 %v3733, %v3799
    %v3803 = vmul.f32 %v3734, %v3799
    %v3804 = vmul.f32 %v3735, %v3799
    %v3805 = vmul.f32 %v3736, %v3799
    %v3806 = vmul.f32 %v3737, %v3799
    %v3807 = vmul.f32 %v3738, %v3799
    %v3808 = vmul.f32 %v3739, %v3799
    %v3809 = vmul.f32 %v3740, %v3799
    %v3810 = vmul.f32 %v3741, %v3799
    %v3811 = vmul.f32 %v3742, %v3799
    %v3812 = vmul.f32 %v3743, %v3799
    %v3813 = vmul.f32 %v3744, %v3799
    %v3814 = vmul.f32 %v3745, %v3799
    %v3815 = vmul.f32 %v3746, %v3799
    %v3816 = vmul.f32 %v3747, %v3799
    %v3817 = vmul.f32 %v3748, %v3799
    %v3818 = vmul.f32 %v3749, %v3799
    %v3819 = vmul.f32 %v3750, %v3799
    %v3820 = vmul.f32 %v3751, %v3799
    %v3821 = vmul.f32 %v3752, %v3799
    %v3822 = vmul.f32 %v3753, %v3799
    %v3823 = vmul.f32 %v3754, %v3799
    %v3824 = vmul.f32 %v3755, %v3799
    %v3825 = vmul.f32 %v3756, %v3799
    %v3826 = vmul.f32 %v3757, %v3799
    %v3827 = vmul.f32 %v3758, %v3799
    %v3828 = vmul.f32 %v3759, %v3799
    %v3829 = vmul.f32 %v3760, %v3799
    %v3830 = vmul.f32 %v3761, %v3799
    %v3831 = vmul.f32 %v3762, %v3799
    %v3832 = vmul.f32 %v3763, %v3799
    %v3833 = vmul.f32 %v3764, %v3799
    %v3834 = vmul.f32 %v3765, %v3799
    %v3835 = vmul.f32 %v3766, %v3799
    %v3836 = vmul.f32 %v3767, %v3799
    %v3837 = vmul.f32 %v3768, %v3799
    %v3838 = vmul.f32 %v3769, %v3799
    %v3839 = vmul.f32 %v3770, %v3799
    %v3840 = vmul.f32 %v3771, %v3799
    %v3841 = vmul.f32 %v3772, %v3799
    %v3842 = vmul.f32 %v3773, %v3799
    %v3843 = vmul.f32 %v3774, %v3799
    %v3844 = vmul.f32 %v3775, %v3799
    %v3845 = vmul.f32 %v3776, %v3799
    %v3846 = vmul.f32 %v3777, %v3799
    %v3847 = vmul.f32 %v3778, %v3799
    %v3848 = vmul.f32 %v3779, %v3799
    %v3849 = vmul.f32 %v3780, %v3799
    %v3850 = vmul.f32 %v3781, %v3799
    %v3851 = vmul.f32 %v3782, %v3799
    %v3852 = vmul.f32 %v3783, %v3799
    %v3853 = vmul.f32 %v3784, %v3799
    %v3854 = vmul.f32 %v3785, %v3799
    %v3855 = vmul.f32 %v3786, %v3799
    %v3856 = vmul.f32 %v3787, %v3799
    %v3857 = vmul.f32 %v3788, %v3799
    %v3858 = vmul.f32 %v3789, %v3799
    %v3859 = vmul.f32 %v3790, %v3799
    %v3860 = vmul.f32 %v3791, %v3799
    %v3861 = vmul.f32 %v3792, %v3799
    %v3862 = vmul.f32 %v3793, %v3799
    %v3863 = vmul.f32 %v3794, %v3799
    %v3864 = vstv %s3797
    %v3865 = vadd.f32 %v3800, %v3864
    %v3866 = vadd.f32 %v3801, %v3864
    %v3867 = vadd.f32 %v3802, %v3864
    %v3868 = vadd.f32 %v3803, %v3864
    %v3869 = vadd.f32 %v3804, %v3864
    %v3870 = vadd.f32 %v3805, %v3864
    %v3871 = vadd.f32 %v3806, %v3864
    %v3872 = vadd.f32 %v3807, %v3864
    %v3873 = vadd.f32 %v3808, %v3864
    %v3874 = vadd.f32 %v3809, %v3864
    %v3875 = vadd.f32 %v3810, %v3864
    %v3876 = vadd.f32 %v3811, %v3864
    %v3877 = vadd.f32 %v3812, %v3864
    %v3878 = vadd.f32 %v3813, %v3864
    %v3879 = vadd.f32 %v3814, %v3864
    %v3880 = vadd.f32 %v3815, %v3864
    %v3881 = vadd.f32 %v3816, %v3864
    %v3882 = vadd.f32 %v3817, %v3864
    %v3883 = vadd.f32 %v3818, %v3864
    %v3884 = vadd.f32 %v3819, %v3864
    %v3885 = vadd.f32 %v3820, %v3864
    %v3886 = vadd.f32 %v3821, %v3864
    %v3887 = vadd.f32 %v3822, %v3864
    %v3888 = vadd.f32 %v3823, %v3864
    %v3889 = vadd.f32 %v3824, %v3864
    %v3890 = vadd.f32 %v3825, %v3864
    %v3891 = vadd.f32 %v3826, %v3864
    %v3892 = vadd.f32 %v3827, %v3864
    %v3893 = vadd.f32 %v3828, %v3864
    %v3894 = vadd.f32 %v3829, %v3864
    %v3895 = vadd.f32 %v3830, %v3864
    %v3896 = vadd.f32 %v3831, %v3864
    %v3897 = vadd.f32 %v3832, %v3864
    %v3898 = vadd.f32 %v3833, %v3864
    %v3899 = vadd.f32 %v3834, %v3864
    %v3900 = vadd.f32 %v3835, %v3864
    %v3901 = vadd.f32 %v3836, %v3864
    %v3902 = vadd.f32 %v3837, %v3864
    %v3903 = vadd.f32 %v3838, %v3864
    %v3904 = vadd.f32 %v3839, %v3864
    %v3905 = vadd.f32 %v3840, %v3864
    %v3906 = vadd.f32 %v3841, %v3864
    %v3907 = vadd.f32 %v3842, %v3864
    %v3908 = vadd.f32 %v3843, %v3864
    %v3909 = vadd.f32 %v3844, %v3864
    %v3910 = vadd.f32 %v3845, %v3864
    %v3911 = vadd.f32 %v3846, %v3864
    %v3912 = vadd.f32 %v3847, %v3864
    %v3913 = vadd.f32 %v3848, %v3864
    %v3914 = vadd.f32 %v3849, %v3864
    %v3915 = vadd.f32 %v3850, %v3864
    %v3916 = vadd.f32 %v3851, %v3864
    %v3917 = vadd.f32 %v3852, %v3864
    %v3918 = vadd.f32 %v3853, %v3864
    %v3919 = vadd.f32 %v3854, %v3864
    %v3920 = vadd.f32 %v3855, %v3864
    %v3921 = vadd.f32 %v3856, %v3864
    %v3922 = vadd.f32 %v3857, %v3864
    %v3923 = vadd.f32 %v3858, %v3864
    %v3924 = vadd.f32 %v3859, %v3864
    %v3925 = vadd.f32 %v3860, %v3864
    %v3926 = vadd.f32 %v3861, %v3864
    %v3927 = vadd.f32 %v3862, %v3864
    %v3928 = vadd.f32 %v3863, %v3864
    %v3929 = vstv %s3796
    %v3930 = vmul.f32 %v3731, %v3929
    %v3931 = vmul.f32 %v3732, %v3929
    %v3932 = vmul.f32 %v3733, %v3929
    %v3933 = vmul.f32 %v3734, %v3929
    %v3934 = vmul.f32 %v3735, %v3929
    %v3935 = vmul.f32 %v3736, %v3929
    %v3936 = vmul.f32 %v3737, %v3929
    %v3937 = vmul.f32 %v3738, %v3929
    %v3938 = vmul.f32 %v3739, %v3929
    %v3939 = vmul.f32 %v3740, %v3929
    %v3940 = vmul.f32 %v3741, %v3929
    %v3941 = vmul.f32 %v3742, %v3929
    %v3942 = vmul.f32 %v3743, %v3929
    %v3943 = vmul.f32 %v3744, %v3929
    %v3944 = vmul.f32 %v3745, %v3929
    %v3945 = vmul.f32 %v3746, %v3929
    %v3946 = vmul.f32 %v3747, %v3929
    %v3947 = vmul.f32 %v3748, %v3929
    %v3948 = vmul.f32 %v3749, %v3929
    %v3949 = vmul.f32 %v3750, %v3929
    %v3950 = vmul.f32 %v3751, %v3929
    %v3951 = vmul.f32 %v3752, %v3929
    %v3952 = vmul.f32 %v3753, %v3929
    %v3953 = vmul.f32 %v3754, %v3929
    %v3954 = vmul.f32 %v3755, %v3929
    %v3955 = vmul.f32 %v3756, %v3929
    %v3956 = vmul.f32 %v3757, %v3929
    %v3957 = vmul.f32 %v3758, %v3929
    %v3958 = vmul.f32 %v3759, %v3929
    %v3959 = vmul.f32 %v3760, %v3929
    %v3960 = vmul.f32 %v3761, %v3929
    %v3961 = vmul.f32 %v3762, %v3929
    %v3962 = vmul.f32 %v3763, %v3929
    %v3963 = vmul.f32 %v3764, %v3929
    %v3964 = vmul.f32 %v3765, %v3929
    %v3965 = vmul.f32 %v3766, %v3929
    %v3966 = vmul.f32 %v3767, %v3929
    %v3967 = vmul.f32 %v3768, %v3929
    %v3968 = vmul.f32 %v3769, %v3929
    %v3969 = vmul.f32 %v3770, %v3929
    %v3970 = vmul.f32 %v3771, %v3929
    %v3971 = vmul.f32 %v3772, %v3929
    %v3972 = vmul.f32 %v3773, %v3929
    %v3973 = vmul.f32 %v3774, %v3929
    %v3974 = vmul.f32 %v3775, %v3929
    %v3975 = vmul.f32 %v3776, %v3929
    %v3976 = vmul.f32 %v3777, %v3929
    %v3977 = vmul.f32 %v3778, %v3929
    %v3978 = vmul.f32 %v3779, %v3929
    %v3979 = vmul.f32 %v3780, %v3929
    %v3980 = vmul.f32 %v3781, %v3929
    %v3981 = vmul.f32 %v3782, %v3929
    %v3982 = vmul.f32 %v3783, %v3929
    %v3983 = vmul.f32 %v3784, %v3929
    %v3984 = vmul.f32 %v3785, %v3929
    %v3985 = vmul.f32 %v3786, %v3929
    %v3986 = vmul.f32 %v3787, %v3929
    %v3987 = vmul.f32 %v3788, %v3929
    %v3988 = vmul.f32 %v3789, %v3929
    %v3989 = vmul.f32 %v3790, %v3929
    %v3990 = vmul.f32 %v3791, %v3929
    %v3991 = vmul.f32 %v3792, %v3929
    %v3992 = vmul.f32 %v3793, %v3929
    %v3993 = vmul.f32 %v3794, %v3929
    %v3994 = vstv %s3798
    %v3995 = vadd.f32 %v3930, %v3994
    %v3996 = vadd.f32 %v3931, %v3994
    %v3997 = vadd.f32 %v3932, %v3994
    %v3998 = vadd.f32 %v3933, %v3994
    %v3999 = vadd.f32 %v3934, %v3994
    %v4000 = vadd.f32 %v3935, %v3994
    %v4001 = vadd.f32 %v3936, %v3994
    %v4002 = vadd.f32 %v3937, %v3994
    %v4003 = vadd.f32 %v3938, %v3994
    %v4004 = vadd.f32 %v3939, %v3994
    %v4005 = vadd.f32 %v3940, %v3994
    %v4006 = vadd.f32 %v3941, %v3994
    %v4007 = vadd.f32 %v3942, %v3994
    %v4008 = vadd.f32 %v3943, %v3994
    %v4009 = vadd.f32 %v3944, %v3994
    %v4010 = vadd.f32 %v3945, %v3994
    %v4011 = vadd.f32 %v3946, %v3994
    %v4012 = vadd.f32 %v3947, %v3994
    %v4013 = vadd.f32 %v3948, %v3994
    %v4014 = vadd.f32 %v3949, %v3994
    %v4015 = vadd.f32 %v3950, %v3994
    %v4016 = vadd.f32 %v3951, %v3994
    %v4017 = vadd.f32 %v3952, %v3994
    %v4018 = vadd.f32 %v3953, %v3994
    %v4019 = vadd.f32 %v3954, %v3994
    %v4020 = vadd.f32 %v3955, %v3994
    %v4021 = vadd.f32 %v3956, %v3994
    %v4022 = vadd.f32 %v3957, %v3994
    %v4023 = vadd.f32 %v3958, %v3994
    %v4024 = vadd.f32 %v3959, %v3994
    %v4025 = vadd.f32 %v3960, %v3994
    %v4026 = vadd.f32 %v3961, %v3994
    %v4027 = vadd.f32 %v3962, %v3994
    %v4028 = vadd.f32 %v3963, %v3994
    %v4029 = vadd.f32 %v3964, %v3994
    %v4030 = vadd.f32 %v3965, %v3994
    %v4031 = vadd.f32 %v3966, %v3994
    %v4032 = vadd.f32 %v3967, %v3994
    %v4033 = vadd.f32 %v3968, %v3994
    %v4034 = vadd.f32 %v3969, %v3994
    %v4035 = vadd.f32 %v3970, %v3994
    %v4036 = vadd.f32 %v3971, %v3994
    %v4037 = vadd.f32 %v3972, %v3994
    %v4038 = vadd.f32 %v3973, %v3994
    %v4039 = vadd.f32 %v3974, %v3994
    %v4040 = vadd.f32 %v3975, %v3994
    %v4041 = vadd.f32 %v3976, %v3994
    %v4042 = vadd.f32 %v3977, %v3994
    %v4043 = vadd.f32 %v3978, %v3994
    %v4044 = vadd.f32 %v3979, %v3994
    %v4045 = vadd.f32 %v3980, %v3994
    %v4046 = vadd.f32 %v3981, %v3994
    %v4047 = vadd.f32 %v3982, %v3994
    %v4048 = vadd.f32 %v3983, %v3994
    %v4049 = vadd.f32 %v3984, %v3994
    %v4050 = vadd.f32 %v3985, %v3994
    %v4051 = vadd.f32 %v3986, %v3994
    %v4052 = vadd.f32 %v3987, %v3994
    %v4053 = vadd.f32 %v3988, %v3994
    %v4054 = vadd.f32 %v3989, %v3994
    %v4055 = vadd.f32 %v3990, %v3994
    %v4056 = vadd.f32 %v3991, %v3994
    %v4057 = vadd.f32 %v3992, %v3994
    %v4058 = vadd.f32 %v3993, %v3994
    %v4059 = vmax.f32 %v3865, %v3995
    %v4060 = vmax.f32 %v3866, %v3996
    %v4061 = vmax.f32 %v3867, %v3997
    %v4062 = vmax.f32 %v3868, %v3998
    %v4063 = vmax.f32 %v3869, %v3999
    %v4064 = vmax.f32 %v3870, %v4000
    %v4065 = vmax.f32 %v3871, %v4001
    %v4066 = vmax.f32 %v3872, %v4002
    %v4067 = vmax.f32 %v3873, %v4003
    %v4068 = vmax.f32 %v3874, %v4004
    %v4069 = vmax.f32 %v3875, %v4005
    %v4070 = vmax.f32 %v3876, %v4006
    %v4071 = vmax.f32 %v3877, %v4007
    %v4072 = vmax.f32 %v3878, %v4008
    %v4073 = vmax.f32 %v3879, %v4009
    %v4074 = vmax.f32 %v3880, %v4010
    %v4075 = vmax.f32 %v3881, %v4011
    %v4076 = vmax.f32 %v3882, %v4012
    %v4077 = vmax.f32 %v3883, %v4013
    %v4078 = vmax.f32 %v3884, %v4014
    %v4079 = vmax.f32 %v3885, %v4015
    %v4080 = vmax.f32 %v3886, %v4016
    %v4081 = vmax.f32 %v3887, %v4017
    %v4082 = vmax.f32 %v3888, %v4018
    %v4083 = vmax.f32 %v3889, %v4019
    %v4084 = vmax.f32 %v3890, %v4020
    %v4085 = vmax.f32 %v3891, %v4021
    %v4086 = vmax.f32 %v3892, %v4022
    %v4087 = vmax.f32 %v3893, %v4023
    %v4088 = vmax.f32 %v3894, %v4024
    %v4089 = vmax.f32 %v3895, %v4025
    %v4090 = vmax.f32 %v3896, %v4026
    %v4091 = vmax.f32 %v3897, %v4027
    %v4092 = vmax.f32 %v3898, %v4028
    %v4093 = vmax.f32 %v3899, %v4029
    %v4094 = vmax.f32 %v3900, %v4030
    %v4095 = vmax.f32 %v3901, %v4031
    %v4096 = vmax.f32 %v3902, %v4032
    %v4097 = vmax.f32 %v3903, %v4033
    %v4098 = vmax.f32 %v3904, %v4034
    %v4099 = vmax.f32 %v3905, %v4035
    %v4100 = vmax.f32 %v3906, %v4036
    %v4101 = vmax.f32 %v3907, %v4037
    %v4102 = vmax.f32 %v3908, %v4038
    %v4103 = vmax.f32 %v3909, %v4039
    %v4104 = vmax.f32 %v3910, %v4040
    %v4105 = vmax.f32 %v3911, %v4041
    %v4106 = vmax.f32 %v3912, %v4042
    %v4107 = vmax.f32 %v3913, %v4043
    %v4108 = vmax.f32 %v3914, %v4044
    %v4109 = vmax.f32 %v3915, %v4045
    %v4110 = vmax.f32 %v3916, %v4046
    %v4111 = vmax.f32 %v3917, %v4047
    %v4112 = vmax.f32 %v3918, %v4048
    %v4113 = vmax.f32 %v3919, %v4049
    %v4114 = vmax.f32 %v3920, %v4050
    %v4115 = vmax.f32 %v3921, %v4051
    %v4116 = vmax.f32 %v3922, %v4052
    %v4117 = vmax.f32 %v3923, %v4053
    %v4118 = vmax.f32 %v3924, %v4054
    %v4119 = vmax.f32 %v3925, %v4055
    %v4120 = vmax.f32 %v3926, %v4056
    %v4121 = vmax.f32 %v3927, %v4057
    %v4122 = vmax.f32 %v3928, %v4058
    %v4123 = vsub.f32 %v3865, %v4059
    %v4124 = vsub.f32 %v3866, %v4060
    %v4125 = vsub.f32 %v3867, %v4061
    %v4126 = vsub.f32 %v3868, %v4062
    %v4127 = vsub.f32 %v3869, %v4063
    %v4128 = vsub.f32 %v3870, %v4064
    %v4129 = vsub.f32 %v3871, %v4065
    %v4130 = vsub.f32 %v3872, %v4066
    %v4131 = vsub.f32 %v3873, %v4067
    %v4132 = vsub.f32 %v3874, %v4068
    %v4133 = vsub.f32 %v3875, %v4069
    %v4134 = vsub.f32 %v3876, %v4070
    %v4135 = vsub.f32 %v3877, %v4071
    %v4136 = vsub.f32 %v3878, %v4072
    %v4137 = vsub.f32 %v3879, %v4073
    %v4138 = vsub.f32 %v3880, %v4074
    %v4139 = vsub.f32 %v3881, %v4075
    %v4140 = vsub.f32 %v3882, %v4076
    %v4141 = vsub.f32 %v3883, %v4077
    %v4142 = vsub.f32 %v3884, %v4078
    %v4143 = vsub.f32 %v3885, %v4079
    %v4144 = vsub.f32 %v3886, %v4080
    %v4145 = vsub.f32 %v3887, %v4081
    %v4146 = vsub.f32 %v3888, %v4082
    %v4147 = vsub.f32 %v3889, %v4083
    %v4148 = vsub.f32 %v3890, %v4084
    %v4149 = vsub.f32 %v3891, %v4085
    %v4150 = vsub.f32 %v3892, %v4086
    %v4151 = vsub.f32 %v3893, %v4087
    %v4152 = vsub.f32 %v3894, %v4088
    %v4153 = vsub.f32 %v3895, %v4089
    %v4154 = vsub.f32 %v3896, %v4090
    %v4155 = vsub.f32 %v3897, %v4091
    %v4156 = vsub.f32 %v3898, %v4092
    %v4157 = vsub.f32 %v3899, %v4093
    %v4158 = vsub.f32 %v3900, %v4094
    %v4159 = vsub.f32 %v3901, %v4095
    %v4160 = vsub.f32 %v3902, %v4096
    %v4161 = vsub.f32 %v3903, %v4097
    %v4162 = vsub.f32 %v3904, %v4098
    %v4163 = vsub.f32 %v3905, %v4099
    %v4164 = vsub.f32 %v3906, %v4100
    %v4165 = vsub.f32 %v3907, %v4101
    %v4166 = vsub.f32 %v3908, %v4102
    %v4167 = vsub.f32 %v3909, %v4103
    %v4168 = vsub.f32 %v3910, %v4104
    %v4169 = vsub.f32 %v3911, %v4105
    %v4170 = vsub.f32 %v3912, %v4106
    %v4171 = vsub.f32 %v3913, %v4107
    %v4172 = vsub.f32 %v3914, %v4108
    %v4173 = vsub.f32 %v3915, %v4109
    %v4174 = vsub.f32 %v3916, %v4110
    %v4175 = vsub.f32 %v3917, %v4111
    %v4176 = vsub.f32 %v3918, %v4112
    %v4177 = vsub.f32 %v3919, %v4113
    %v4178 = vsub.f32 %v3920, %v4114
    %v4179 = vsub.f32 %v3921, %v4115
    %v4180 = vsub.f32 %v3922, %v4116
    %v4181 = vsub.f32 %v3923, %v4117
    %v4182 = vsub.f32 %v3924, %v4118
    %v4183 = vsub.f32 %v3925, %v4119
    %v4184 = vsub.f32 %v3926, %v4120
    %v4185 = vsub.f32 %v3927, %v4121
    %v4186 = vsub.f32 %v3928, %v4122
    %v4187 = vmul.f32 %v4123, 1.442695
    %v4188 = vpow.pop %v4187
    %v4189 = vmul.f32 %v4124, 1.442695
    %v4190 = vpow.pop %v4189
    %v4191 = vmul.f32 %v4125, 1.442695
    %v4192 = vpow.pop %v4191
    %v4193 = vmul.f32 %v4126, 1.442695
    %v4194 = vpow.pop %v4193
    %v4195 = vmul.f32 %v4127, 1.442695
    %v4196 = vpow.pop %v4195
    %v4197 = vmul.f32 %v4128, 1.442695
    %v4198 = vpow.pop %v4197
    %v4199 = vmul.f32 %v4129, 1.442695
    %v4200 = vpow.pop %v4199
    %v4201 = vmul.f32 %v4130, 1.442695
    %v4202 = vpow.pop %v4201
    %v4203 = vmul.f32 %v4131, 1.442695
    %v4204 = vpow.pop %v4203
    %v4205 = vmul.f32 %v4132, 1.442695
    %v4206 = vpow.pop %v4205
    %v4207 = vmul.f32 %v4133, 1.442695
    %v4208 = vpow.pop %v4207
    %v4209 = vmul.f32 %v4134, 1.442695
    %v4210 = vpow.pop %v4209
    %v4211 = vmul.f32 %v4135, 1.442695
    %v4212 = vpow.pop %v4211
    %v4213 = vmul.f32 %v4136, 1.442695
    %v4214 = vpow.pop %v4213
    %v4215 = vmul.f32 %v4137, 1.442695
    %v4216 = vpow.pop %v4215
    %v4217 = vmul.f32 %v4138, 1.442695
    %v4218 = vpow.pop %v4217
    %v4219 = vmul.f32 %v4139, 1.442695
    %v4220 = vpow.pop %v4219
    %v4221 = vmul.f32 %v4140, 1.442695
    %v4222 = vpow.pop %v4221
    %v4223 = vmul.f32 %v4141, 1.442695
    %v4224 = vpow.pop %v4223
    %v4225 = vmul.f32 %v4142, 1.442695
    %v4226 = vpow.pop %v4225
    %v4227 = vmul.f32 %v4143, 1.442695
    %v4228 = vpow.pop %v4227
    %v4229 = vmul.f32 %v4144, 1.442695
    %v4230 = vpow.pop %v4229
    %v4231 = vmul.f32 %v4145, 1.442695
    %v4232 = vpow.pop %v4231
    %v4233 = vmul.f32 %v4146, 1.442695
    %v4234 = vpow.pop %v4233
    %v4235 = vmul.f32 %v4147, 1.442695
    %v4236 = vpow.pop %v4235
    %v4237 = vmul.f32 %v4148, 1.442695
    %v4238 = vpow.pop %v4237
    %v4239 = vmul.f32 %v4149, 1.442695
    %v4240 = vpow.pop %v4239
    %v4241 = vmul.f32 %v4150, 1.442695
    %v4242 = vpow.pop %v4241
    %v4243 = vmul.f32 %v4151, 1.442695
    %v4244 = vpow.pop %v4243
    %v4245 = vmul.f32 %v4152, 1.442695
    %v4246 = vpow.pop %v4245
    %v4247 = vmul.f32 %v4153, 1.442695
    %v4248 = vpow.pop %v4247
    %v4249 = vmul.f32 %v4154, 1.442695
    %v4250 = vpow.pop %v4249
    %v4251 = vmul.f32 %v4155, 1.442695
    %v4252 = vpow.pop %v4251
    %v4253 = vmul.f32 %v4156, 1.442695
    %v4254 = vpow.pop %v4253
    %v4255 = vmul.f32 %v4157, 1.442695
    %v4256 = vpow.pop %v4255
    %v4257 = vmul.f32 %v4158, 1.442695
    %v4258 = vpow.pop %v4257
    %v4259 = vmul.f32 %v4159, 1.442695
    %v4260 = vpow.pop %v4259
    %v4261 = vmul.f32 %v4160, 1.442695
    %v4262 = vpow.pop %v4261
    %v4263 = vmul.f32 %v4161, 1.442695
    %v4264 = vpow.pop %v4263
    %v4265 = vmul.f32 %v4162, 1.442695
    %v4266 = vpow.pop %v4265
    %v4267 = vmul.f32 %v4163, 1.442695
    %v4268 = vpow.pop %v4267
    %v4269 = vmul.f32 %v4164, 1.442695
    %v4270 = vpow.pop %v4269
    %v4271 = vmul.f32 %v4165, 1.442695
    %v4272 = vpow.pop %v4271
    %v4273 = vmul.f32 %v4166, 1.442695
    %v4274 = vpow.pop %v4273
    %v4275 = vmul.f32 %v4167, 1.442695
    %v4276 = vpow.pop %v4275
    %v4277 = vmul.f32 %v4168, 1.442695
    %v4278 = vpow.pop %v4277
    %v4279 = vmul.f32 %v4169, 1.442695
    %v4280 = vpow.pop %v4279
    %v4281 = vmul.f32 %v4170, 1.442695
    %v4282 = vpow.pop %v4281
    %v4283 = vmul.f32 %v4171, 1.442695
    %v4284 = vpow.pop %v4283
    %v4285 = vmul.f32 %v4172, 1.442695
    %v4286 = vpow.pop %v4285
    %v4287 = vmul.f32 %v4173, 1.442695
    %v4288 = vpow.pop %v4287
    %v4289 = vmul.f32 %v4174, 1.442695
    %v4290 = vpow.pop %v4289
    %v4291 = vmul.f32 %v4175, 1.442695
    %v4292 = vpow.pop %v4291
    %v4293 = vmul.f32 %v4176, 1.442695
    %v4294 = vpow.pop %v4293
    %v4295 = vmul.f32 %v4177, 1.442695
    %v4296 = vpow.pop %v4295
    %v4297 = vmul.f32 %v4178, 1.442695
    %v4298 = vpow.pop %v4297
    %v4299 = vmul.f32 %v4179, 1.442695
    %v4300 = vpow.pop %v4299
    %v4301 = vmul.f32 %v4180, 1.442695
    %v4302 = vpow.pop %v4301
    %v4303 = vmul.f32 %v4181, 1.442695
    %v4304 = vpow.pop %v4303
    %v4305 = vmul.f32 %v4182, 1.442695
    %v4306 = vpow.pop %v4305
    %v4307 = vmul.f32 %v4183, 1.442695
    %v4308 = vpow.pop %v4307
    %v4309 = vmul.f32 %v4184, 1.442695
    %v4310 = vpow.pop %v4309
    %v4311 = vmul.f32 %v4185, 1.442695
    %v4312 = vpow.pop %v4311
    %v4313 = vmul.f32 %v4186, 1.442695
    %v4314 = vpow.pop %v4313
    %v4315 = vsub.f32 %v3995, %v4059
    %v4316 = vsub.f32 %v3996, %v4060
    %v4317 = vsub.f32 %v3997, %v4061
    %v4318 = vsub.f32 %v3998, %v4062
    %v4319 = vsub.f32 %v3999, %v4063
    %v4320 = vsub.f32 %v4000, %v4064
    %v4321 = vsub.f32 %v4001, %v4065
    %v4322 = vsub.f32 %v4002, %v4066
    %v4323 = vsub.f32 %v4003, %v4067
    %v4324 = vsub.f32 %v4004, %v4068
    %v4325 = vsub.f32 %v4005, %v4069
    %v4326 = vsub.f32 %v4006, %v4070
    %v4327 = vsub.f32 %v4007, %v4071
    %v4328 = vsub.f32 %v4008, %v4072
    %v4329 = vsub.f32 %v4009, %v4073
    %v4330 = vsub.f32 %v4010, %v4074
    %v4331 = vsub.f32 %v4011, %v4075
    %v4332 = vsub.f32 %v4012, %v4076
    %v4333 = vsub.f32 %v4013, %v4077
    %v4334 = vsub.f32 %v4014, %v4078
    %v4335 = vsub.f32 %v4015, %v4079
    %v4336 = vsub.f32 %v4016, %v4080
    %v4337 = vsub.f32 %v4017, %v4081
    %v4338 = vsub.f32 %v4018, %v4082
    %v4339 = vsub.f32 %v4019, %v4083
    %v4340 = vsub.f32 %v4020, %v4084
    %v4341 = vsub.f32 %v4021, %v4085
    %v4342 = vsub.f32 %v4022, %v4086
    %v4343 = vsub.f32 %v4023, %v4087
    %v4344 = vsub.f32 %v4024, %v4088
    %v4345 = vsub.f32 %v4025, %v4089
    %v4346 = vsub.f32 %v4026, %v4090
    %v4347 = vsub.f32 %v4027, %v4091
    %v4348 = vsub.f32 %v4028, %v4092
    %v4349 = vsub.f32 %v4029, %v4093
    %v4350 = vsub.f32 %v4030, %v4094
    %v4351 = vsub.f32 %v4031, %v4095
    %v4352 = vsub.f32 %v4032, %v4096
    %v4353 = vsub.f32 %v4033, %v4097
    %v4354 = vsub.f32 %v4034, %v4098
    %v4355 = vsub.f32 %v4035, %v4099
    %v4356 = vsub.f32 %v4036, %v4100
    %v4357 = vsub.f32 %v4037, %v4101
    %v4358 = vsub.f32 %v4038, %v4102
    %v4359 = vsub.f32 %v4039, %v4103
    %v4360 = vsub.f32 %v4040, %v4104
    %v4361 = vsub.f32 %v4041, %v4105
    %v4362 = vsub.f32 %v4042, %v4106
    %v4363 = vsub.f32 %v4043, %v4107
    %v4364 = vsub.f32 %v4044, %v4108
    %v4365 = vsub.f32 %v4045, %v4109
    %v4366 = vsub.f32 %v4046, %v4110
    %v4367 = vsub.f32 %v4047, %v4111
    %v4368 = vsub.f32 %v4048, %v4112
    %v4369 = vsub.f32 %v4049, %v4113
    %v4370 = vsub.f32 %v4050, %v4114
    %v4371 = vsub.f32 %v4051, %v4115
    %v4372 = vsub.f32 %v4052, %v4116
    %v4373 = vsub.f32 %v4053, %v4117
    %v4374 = vsub.f32 %v4054, %v4118
    %v4375 = vsub.f32 %v4055, %v4119
    %v4376 = vsub.f32 %v4056, %v4120
    %v4377 = vsub.f32 %v4057, %v4121
    %v4378 = vsub.f32 %v4058, %v4122
    %v4379 = vmul.f32 %v4315, 1.442695
    %v4380 = vpow.pop %v4379
    %v4381 = vmul.f32 %v4316, 1.442695
    %v4382 = vpow.pop %v4381
    %v4383 = vmul.f32 %v4317, 1.442695
    %v4384 = vpow.pop %v4383
    %v4385 = vmul.f32 %v4318, 1.442695
    %v4386 = vpow.pop %v4385
    %v4387 = vmul.f32 %v4319, 1.442695
    %v4388 = vpow.pop %v4387
    %v4389 = vmul.f32 %v4320, 1.442695
    %v4390 = vpow.pop %v4389
    %v4391 = vmul.f32 %v4321, 1.442695
    %v4392 = vpow.pop %v4391
    %v4393 = vmul.f32 %v4322, 1.442695
    %v4394 = vpow.pop %v4393
    %v4395 = vmul.f32 %v4323, 1.442695
    %v4396 = vpow.pop %v4395
    %v4397 = vmul.f32 %v4324, 1.442695
    %v4398 = vpow.pop %v4397
    %v4399 = vmul.f32 %v4325, 1.442695
    %v4400 = vpow.pop %v4399
    %v4401 = vmul.f32 %v4326, 1.442695
    %v4402 = vpow.pop %v4401
    %v4403 = vmul.f32 %v4327, 1.442695
    %v4404 = vpow.pop %v4403
    %v4405 = vmul.f32 %v4328, 1.442695
    %v4406 = vpow.pop %v4405
    %v4407 = vmul.f32 %v4329, 1.442695
    %v4408 = vpow.pop %v4407
    %v4409 = vmul.f32 %v4330, 1.442695
    %v4410 = vpow.pop %v4409
    %v4411 = vmul.f32 %v4331, 1.442695
    %v4412 = vpow.pop %v4411
    %v4413 = vmul.f32 %v4332, 1.442695
    %v4414 = vpow.pop %v4413
    %v4415 = vmul.f32 %v4333, 1.442695
    %v4416 = vpow.pop %v4415
    %v4417 = vmul.f32 %v4334, 1.442695
    %v4418 = vpow.pop %v4417
    %v4419 = vmul.f32 %v4335, 1.442695
    %v4420 = vpow.pop %v4419
    %v4421 = vmul.f32 %v4336, 1.442695
    %v4422 = vpow.pop %v4421
    %v4423 = vmul.f32 %v4337, 1.442695
    %v4424 = vpow.pop %v4423
    %v4425 = vmul.f32 %v4338, 1.442695
    %v4426 = vpow.pop %v4425
    %v4427 = vmul.f32 %v4339, 1.442695
    %v4428 = vpow.pop %v4427
    %v4429 = vmul.f32 %v4340, 1.442695
    %v4430 = vpow.pop %v4429
    %v4431 = vmul.f32 %v4341, 1.442695
    %v4432 = vpow.pop %v4431
    %v4433 = vmul.f32 %v4342, 1.442695
    %v4434 = vpow.pop %v4433
    %v4435 = vmul.f32 %v4343, 1.442695
    %v4436 = vpow.pop %v4435
    %v4437 = vmul.f32 %v4344, 1.442695
    %v4438 = vpow.pop %v4437
    %v4439 = vmul.f32 %v4345, 1.442695
    %v4440 = vpow.pop %v4439
    %v4441 = vmul.f32 %v4346, 1.442695
    %v4442 = vpow.pop %v4441
    %v4443 = vmul.f32 %v4347, 1.442695
    %v4444 = vpow.pop %v4443
    %v4445 = vmul.f32 %v4348, 1.442695
    %v4446 = vpow.pop %v4445
    %v4447 = vmul.f32 %v4349, 1.442695
    %v4448 = vpow.pop %v4447
    %v4449 = vmul.f32 %v4350, 1.442695
    %v4450 = vpow.pop %v4449
    %v4451 = vmul.f32 %v4351, 1.442695
    %v4452 = vpow.pop %v4451
    %v4453 = vmul.f32 %v4352, 1.442695
    %v4454 = vpow.pop %v4453
    %v4455 = vmul.f32 %v4353, 1.442695
    %v4456 = vpow.pop %v4455
    %v4457 = vmul.f32 %v4354, 1.442695
    %v4458 = vpow.pop %v4457
    %v4459 = vmul.f32 %v4355, 1.442695
    %v4460 = vpow.pop %v4459
    %v4461 = vmul.f32 %v4356, 1.442695
    %v4462 = vpow.pop %v4461
    %v4463 = vmul.f32 %v4357, 1.442695
    %v4464 = vpow.pop %v4463
    %v4465 = vmul.f32 %v4358, 1.442695
    %v4466 = vpow.pop %v4465
    %v4467 = vmul.f32 %v4359, 1.442695
    %v4468 = vpow.pop %v4467
    %v4469 = vmul.f32 %v4360, 1.442695
    %v4470 = vpow.pop %v4469
    %v4471 = vmul.f32 %v4361, 1.442695
    %v4472 = vpow.pop %v4471
    %v4473 = vmul.f32 %v4362, 1.442695
    %v4474 = vpow.pop %v4473
    %v4475 = vmul.f32 %v4363, 1.442695
    %v4476 = vpow.pop %v4475
    %v4477 = vmul.f32 %v4364, 1.442695
    %v4478 = vpow.pop %v4477
    %v4479 = vmul.f32 %v4365, 1.442695
    %v4480 = vpow.pop %v4479
    %v4481 = vmul.f32 %v4366, 1.442695
    %v4482 = vpow.pop %v4481
    %v4483 = vmul.f32 %v4367, 1.442695
    %v4484 = vpow.pop %v4483
    %v4485 = vmul.f32 %v4368, 1.442695
    %v4486 = vpow.pop %v4485
    %v4487 = vmul.f32 %v4369, 1.442695
    %v4488 = vpow.pop %v4487
    %v4489 = vmul.f32 %v4370, 1.442695
    %v4490 = vpow.pop %v4489
    %v4491 = vmul.f32 %v4371, 1.442695
    %v4492 = vpow.pop %v4491
    %v4493 = vmul.f32 %v4372, 1.442695
    %v4494 = vpow.pop %v4493
    %v4495 = vmul.f32 %v4373, 1.442695
    %v4496 = vpow.pop %v4495
    %v4497 = vmul.f32 %v4374, 1.442695
    %v4498 = vpow.pop %v4497
    %v4499 = vmul.f32 %v4375, 1.442695
    %v4500 = vpow.pop %v4499
    %v4501 = vmul.f32 %v4376, 1.442695
    %v4502 = vpow.pop %v4501
    %v4503 = vmul.f32 %v4377, 1.442695
    %v4504 = vpow.pop %v4503
    %v4505 = vmul.f32 %v4378, 1.442695
    %v4506 = vpow.pop %v4505
    %v4507 = vadd.f32 %v4188, %v4380
    %v4508 = vadd.f32 %v4190, %v4382
    %v4509 = vadd.f32 %v4192, %v4384
    %v4510 = vadd.f32 %v4194, %v4386
    %v4511 = vadd.f32 %v4196, %v4388
    %v4512 = vadd.f32 %v4198, %v4390
    %v4513 = vadd.f32 %v4200, %v4392
    %v4514 = vadd.f32 %v4202, %v4394
    %v4515 = vadd.f32 %v4204, %v4396
    %v4516 = vadd.f32 %v4206, %v4398
    %v4517 = vadd.f32 %v4208, %v4400
    %v4518 = vadd.f32 %v4210, %v4402
    %v4519 = vadd.f32 %v4212, %v4404
    %v4520 = vadd.f32 %v4214, %v4406
    %v4521 = vadd.f32 %v4216, %v4408
    %v4522 = vadd.f32 %v4218, %v4410
    %v4523 = vadd.f32 %v4220, %v4412
    %v4524 = vadd.f32 %v4222, %v4414
    %v4525 = vadd.f32 %v4224, %v4416
    %v4526 = vadd.f32 %v4226, %v4418
    %v4527 = vadd.f32 %v4228, %v4420
    %v4528 = vadd.f32 %v4230, %v4422
    %v4529 = vadd.f32 %v4232, %v4424
    %v4530 = vadd.f32 %v4234, %v4426
    %v4531 = vadd.f32 %v4236, %v4428
    %v4532 = vadd.f32 %v4238, %v4430
    %v4533 = vadd.f32 %v4240, %v4432
    %v4534 = vadd.f32 %v4242, %v4434
    %v4535 = vadd.f32 %v4244, %v4436
    %v4536 = vadd.f32 %v4246, %v4438
    %v4537 = vadd.f32 %v4248, %v4440
    %v4538 = vadd.f32 %v4250, %v4442
    %v4539 = vadd.f32 %v4252, %v4444
    %v4540 = vadd.f32 %v4254, %v4446
    %v4541 = vadd.f32 %v4256, %v4448
    %v4542 = vadd.f32 %v4258, %v4450
    %v4543 = vadd.f32 %v4260, %v4452
    %v4544 = vadd.f32 %v4262, %v4454
    %v4545 = vadd.f32 %v4264, %v4456
    %v4546 = vadd.f32 %v4266, %v4458
    %v4547 = vadd.f32 %v4268, %v4460
    %v4548 = vadd.f32 %v4270, %v4462
    %v4549 = vadd.f32 %v4272, %v4464
    %v4550 = vadd.f32 %v4274, %v4466
    %v4551 = vadd.f32 %v4276, %v4468
    %v4552 = vadd.f32 %v4278, %v4470
    %v4553 = vadd.f32 %v4280, %v4472
    %v4554 = vadd.f32 %v4282, %v4474
    %v4555 = vadd.f32 %v4284, %v4476
    %v4556 = vadd.f32 %v4286, %v4478
    %v4557 = vadd.f32 %v4288, %v4480
    %v4558 = vadd.f32 %v4290, %v4482
    %v4559 = vadd.f32 %v4292, %v4484
    %v4560 = vadd.f32 %v4294, %v4486
    %v4561 = vadd.f32 %v4296, %v4488
    %v4562 = vadd.f32 %v4298, %v4490
    %v4563 = vadd.f32 %v4300, %v4492
    %v4564 = vadd.f32 %v4302, %v4494
    %v4565 = vadd.f32 %v4304, %v4496
    %v4566 = vadd.f32 %v4306, %v4498
    %v4567 = vadd.f32 %v4308, %v4500
    %v4568 = vadd.f32 %v4310, %v4502
    %v4569 = vadd.f32 %v4312, %v4504
    %v4570 = vadd.f32 %v4314, %v4506
    %v4571 = vrcp.pop %v4507
    %v4572 = vmul.f32 1.0, %v4571
    %v4573 = vrcp.pop %v4508
    %v4574 = vmul.f32 1.0, %v4573
    %v4575 = vrcp.pop %v4509
    %v4576 = vmul.f32 1.0, %v4575
    %v4577 = vrcp.pop %v4510
    %v4578 = vmul.f32 1.0, %v4577
    %v4579 = vrcp.pop %v4511
    %v4580 = vmul.f32 1.0, %v4579
    %v4581 = vrcp.pop %v4512
    %v4582 = vmul.f32 1.0, %v4581
    %v4583 = vrcp.pop %v4513
    %v4584 = vmul.f32 1.0, %v4583
    %v4585 = vrcp.pop %v4514
    %v4586 = vmul.f32 1.0, %v4585
    %v4587 = vrcp.pop %v4515
    %v4588 = vmul.f32 1.0, %v4587
    %v4589 = vrcp.pop %v4516
    %v4590 = vmul.f32 1.0, %v4589
    %v4591 = vrcp.pop %v4517
    %v4592 = vmul.f32 1.0, %v4591
    %v4593 = vrcp.pop %v4518
    %v4594 = vmul.f32 1.0, %v4593
    %v4595 = vrcp.pop %v4519
    %v4596 = vmul.f32 1.0, %v4595
    %v4597 = vrcp.pop %v4520
    %v4598 = vmul.f32 1.0, %v4597
    %v4599 = vrcp.pop %v4521
    %v4600 = vmul.f32 1.0, %v4599
    %v4601 = vrcp.pop %v4522
    %v4602 = vmul.f32 1.0, %v4601
    %v4603 = vrcp.pop %v4523
    %v4604 = vmul.f32 1.0, %v4603
    %v4605 = vrcp.pop %v4524
    %v4606 = vmul.f32 1.0, %v4605
    %v4607 = vrcp.pop %v4525
    %v4608 = vmul.f32 1.0, %v4607
    %v4609 = vrcp.pop %v4526
    %v4610 = vmul.f32 1.0, %v4609
    %v4611 = vrcp.pop %v4527
    %v4612 = vmul.f32 1.0, %v4611
    %v4613 = vrcp.pop %v4528
    %v4614 = vmul.f32 1.0, %v4613
    %v4615 = vrcp.pop %v4529
    %v4616 = vmul.f32 1.0, %v4615
    %v4617 = vrcp.pop %v4530
    %v4618 = vmul.f32 1.0, %v4617
    %v4619 = vrcp.pop %v4531
    %v4620 = vmul.f32 1.0, %v4619
    %v4621 = vrcp.pop %v4532
    %v4622 = vmul.f32 1.0, %v4621
    %v4623 = vrcp.pop %v4533
    %v4624 = vmul.f32 1.0, %v4623
    %v4625 = vrcp.pop %v4534
    %v4626 = vmul.f32 1.0, %v4625
    %v4627 = vrcp.pop %v4535
    %v4628 = vmul.f32 1.0, %v4627
    %v4629 = vrcp.pop %v4536
    %v4630 = vmul.f32 1.0, %v4629
    %v4631 = vrcp.pop %v4537
    %v4632 = vmul.f32 1.0, %v4631
    %v4633 = vrcp.pop %v4538
    %v4634 = vmul.f32 1.0, %v4633
    %v4635 = vrcp.pop %v4539
    %v4636 = vmul.f32 1.0, %v4635
    %v4637 = vrcp.pop %v4540
    %v4638 = vmul.f32 1.0, %v4637
    %v4639 = vrcp.pop %v4541
    %v4640 = vmul.f32 1.0, %v4639
    %v4641 = vrcp.pop %v4542
    %v4642 = vmul.f32 1.0, %v4641
    %v4643 = vrcp.pop %v4543
    %v4644 = vmul.f32 1.0, %v4643
    %v4645 = vrcp.pop %v4544
    %v4646 = vmul.f32 1.0, %v4645
    %v4647 = vrcp.pop %v4545
    %v4648 = vmul.f32 1.0, %v4647
    %v4649 = vrcp.pop %v4546
    %v4650 = vmul.f32 1.0, %v4649
    %v4651 = vrcp.pop %v4547
    %v4652 = vmul.f32 1.0, %v4651
    %v4653 = vrcp.pop %v4548
    %v4654 = vmul.f32 1.0, %v4653
    %v4655 = vrcp.pop %v4549
    %v4656 = vmul.f32 1.0, %v4655
    %v4657 = vrcp.pop %v4550
    %v4658 = vmul.f32 1.0, %v4657
    %v4659 = vrcp.pop %v4551
    %v4660 = vmul.f32 1.0, %v4659
    %v4661 = vrcp.pop %v4552
    %v4662 = vmul.f32 1.0, %v4661
    %v4663 = vrcp.pop %v4553
    %v4664 = vmul.f32 1.0, %v4663
    %v4665 = vrcp.pop %v4554
    %v4666 = vmul.f32 1.0, %v4665
    %v4667 = vrcp.pop %v4555
    %v4668 = vmul.f32 1.0, %v4667
    %v4669 = vrcp.pop %v4556
    %v4670 = vmul.f32 1.0, %v4669
    %v4671 = vrcp.pop %v4557
    %v4672 = vmul.f32 1.0, %v4671
    %v4673 = vrcp.pop %v4558
    %v4674 = vmul.f32 1.0, %v4673
    %v4675 = vrcp.pop %v4559
    %v4676 = vmul.f32 1.0, %v4675
    %v4677 = vrcp.pop %v4560
    %v4678 = vmul.f32 1.0, %v4677
    %v4679 = vrcp.pop %v4561
    %v4680 = vmul.f32 1.0, %v4679
    %v4681 = vrcp.pop %v4562
    %v4682 = vmul.f32 1.0, %v4681
    %v4683 = vrcp.pop %v4563
    %v4684 = vmul.f32 1.0, %v4683
    %v4685 = vrcp.pop %v4564
    %v4686 = vmul.f32 1.0, %v4685
    %v4687 = vrcp.pop %v4565
    %v4688 = vmul.f32 1.0, %v4687
    %v4689 = vrcp.pop %v4566
    %v4690 = vmul.f32 1.0, %v4689
    %v4691 = vrcp.pop %v4567
    %v4692 = vmul.f32 1.0, %v4691
    %v4693 = vrcp.pop %v4568
    %v4694 = vmul.f32 1.0, %v4693
    %v4695 = vrcp.pop %v4569
    %v4696 = vmul.f32 1.0, %v4695
    %v4697 = vrcp.pop %v4570
    %v4698 = vmul.f32 1.0, %v4697
    %v4699 = vmul.f32 %v4188, %v4572
    %v4700 = vmul.f32 %v4190, %v4574
    %v4701 = vmul.f32 %v4192, %v4576
    %v4702 = vmul.f32 %v4194, %v4578
    %v4703 = vmul.f32 %v4196, %v4580
    %v4704 = vmul.f32 %v4198, %v4582
    %v4705 = vmul.f32 %v4200, %v4584
    %v4706 = vmul.f32 %v4202, %v4586
    %v4707 = vmul.f32 %v4204, %v4588
    %v4708 = vmul.f32 %v4206, %v4590
    %v4709 = vmul.f32 %v4208, %v4592
    %v4710 = vmul.f32 %v4210, %v4594
    %v4711 = vmul.f32 %v4212, %v4596
    %v4712 = vmul.f32 %v4214, %v4598
    %v4713 = vmul.f32 %v4216, %v4600
    %v4714 = vmul.f32 %v4218, %v4602
    %v4715 = vmul.f32 %v4220, %v4604
    %v4716 = vmul.f32 %v4222, %v4606
    %v4717 = vmul.f32 %v4224, %v4608
    %v4718 = vmul.f32 %v4226, %v4610
    %v4719 = vmul.f32 %v4228, %v4612
    %v4720 = vmul.f32 %v4230, %v4614
    %v4721 = vmul.f32 %v4232, %v4616
    %v4722 = vmul.f32 %v4234, %v4618
    %v4723 = vmul.f32 %v4236, %v4620
    %v4724 = vmul.f32 %v4238, %v4622
    %v4725 = vmul.f32 %v4240, %v4624
    %v4726 = vmul.f32 %v4242, %v4626
    %v4727 = vmul.f32 %v4244, %v4628
    %v4728 = vmul.f32 %v4246, %v4630
    %v4729 = vmul.f32 %v4248, %v4632
    %v4730 = vmul.f32 %v4250, %v4634
    %v4731 = vmul.f32 %v4252, %v4636
    %v4732 = vmul.f32 %v4254, %v4638
    %v4733 = vmul.f32 %v4256, %v4640
    %v4734 = vmul.f32 %v4258, %v4642
    %v4735 = vmul.f32 %v4260, %v4644
    %v4736 = vmul.f32 %v4262, %v4646
    %v4737 = vmul.f32 %v4264, %v4648
    %v4738 = vmul.f32 %v4266, %v4650
    %v4739 = vmul.f32 %v4268, %v4652
    %v4740 = vmul.f32 %v4270, %v4654
    %v4741 = vmul.f32 %v4272, %v4656
    %v4742 = vmul.f32 %v4274, %v4658
    %v4743 = vmul.f32 %v4276, %v4660
    %v4744 = vmul.f32 %v4278, %v4662
    %v4745 = vmul.f32 %v4280, %v4664
    %v4746 = vmul.f32 %v4282, %v4666
    %v4747 = vmul.f32 %v4284, %v4668
    %v4748 = vmul.f32 %v4286, %v4670
    %v4749 = vmul.f32 %v4288, %v4672
    %v4750 = vmul.f32 %v4290, %v4674
    %v4751 = vmul.f32 %v4292, %v4676
    %v4752 = vmul.f32 %v4294, %v4678
    %v4753 = vmul.f32 %v4296, %v4680
    %v4754 = vmul.f32 %v4298, %v4682
    %v4755 = vmul.f32 %v4300, %v4684
    %v4756 = vmul.f32 %v4302, %v4686
    %v4757 = vmul.f32 %v4304, %v4688
    %v4758 = vmul.f32 %v4306, %v4690
    %v4759 = vmul.f32 %v4308, %v4692
    %v4760 = vmul.f32 %v4310, %v4694
    %v4761 = vmul.f32 %v4312, %v4696
    %v4762 = vmul.f32 %v4314, %v4698
    %v4827 = vlaneseq
    %v4828 = vshrl.u32 %v4827, 7
    %v4829 = vsub.s32 0, %v4828
    %v4830 = vrot.slane %v4699, %v4829
    %v4831 = vlaneseq
    %v4832 = vshrl.u32 %v4831, 7
    %v4833 = vsub.s32 0, %v4832
    %v4834 = vrot.slane %v4700, %v4833
    %v4835 = vlaneseq
    %v4836 = vshrl.u32 %v4835, 7
    %v4837 = vsub.s32 0, %v4836
    %v4838 = vrot.slane %v4701, %v4837
    %v4839 = vlaneseq
    %v4840 = vshrl.u32 %v4839, 7
    %v4841 = vsub.s32 0, %v4840
    %v4842 = vrot.slane %v4702, %v4841
    %v4843 = vlaneseq
    %v4844 = vshrl.u32 %v4843, 7
    %v4845 = vsub.s32 0, %v4844
    %v4846 = vrot.slane %v4703, %v4845
    %v4847 = vlaneseq
    %v4848 = vshrl.u32 %v4847, 7
    %v4849 = vsub.s32 0, %v4848
    %v4850 = vrot.slane %v4704, %v4849
    %v4851 = vlaneseq
    %v4852 = vshrl.u32 %v4851, 7
    %v4853 = vsub.s32 0, %v4852
    %v4854 = vrot.slane %v4705, %v4853
    %v4855 = vlaneseq
    %v4856 = vshrl.u32 %v4855, 7
    %v4857 = vsub.s32 0, %v4856
    %v4858 = vrot.slane %v4706, %v4857
    %v4859 = vlaneseq
    %v4860 = vshrl.u32 %v4859, 7
    %v4861 = vsub.s32 0, %v4860
    %v4862 = vrot.slane %v4707, %v4861
    %v4863 = vlaneseq
    %v4864 = vshrl.u32 %v4863, 7
    %v4865 = vsub.s32 0, %v4864
    %v4866 = vrot.slane %v4708, %v4865
    %v4867 = vlaneseq
    %v4868 = vshrl.u32 %v4867, 7
    %v4869 = vsub.s32 0, %v4868
    %v4870 = vrot.slane %v4709, %v4869
    %v4871 = vlaneseq
    %v4872 = vshrl.u32 %v4871, 7
    %v4873 = vsub.s32 0, %v4872
    %v4874 = vrot.slane %v4710, %v4873
    %v4875 = vlaneseq
    %v4876 = vshrl.u32 %v4875, 7
    %v4877 = vsub.s32 0, %v4876
    %v4878 = vrot.slane %v4711, %v4877
    %v4879 = vlaneseq
    %v4880 = vshrl.u32 %v4879, 7
    %v4881 = vsub.s32 0, %v4880
    %v4882 = vrot.slane %v4712, %v4881
    %v4883 = vlaneseq
    %v4884 = vshrl.u32 %v4883, 7
    %v4885 = vsub.s32 0, %v4884
    %v4886 = vrot.slane %v4713, %v4885
    %v4887 = vlaneseq
    %v4888 = vshrl.u32 %v4887, 7
    %v4889 = vsub.s32 0, %v4888
    %v4890 = vrot.slane %v4714, %v4889
    %v4891 = vlaneseq
    %v4892 = vshrl.u32 %v4891, 7
    %v4893 = vsub.s32 0, %v4892
    %v4894 = vrot.slane %v4715, %v4893
    %v4895 = vlaneseq
    %v4896 = vshrl.u32 %v4895, 7
    %v4897 = vsub.s32 0, %v4896
    %v4898 = vrot.slane %v4716, %v4897
    %v4899 = vlaneseq
    %v4900 = vshrl.u32 %v4899, 7
    %v4901 = vsub.s32 0, %v4900
    %v4902 = vrot.slane %v4717, %v4901
    %v4903 = vlaneseq
    %v4904 = vshrl.u32 %v4903, 7
    %v4905 = vsub.s32 0, %v4904
    %v4906 = vrot.slane %v4718, %v4905
    %v4907 = vlaneseq
    %v4908 = vshrl.u32 %v4907, 7
    %v4909 = vsub.s32 0, %v4908
    %v4910 = vrot.slane %v4719, %v4909
    %v4911 = vlaneseq
    %v4912 = vshrl.u32 %v4911, 7
    %v4913 = vsub.s32 0, %v4912
    %v4914 = vrot.slane %v4720, %v4913
    %v4915 = vlaneseq
    %v4916 = vshrl.u32 %v4915, 7
    %v4917 = vsub.s32 0, %v4916
    %v4918 = vrot.slane %v4721, %v4917
    %v4919 = vlaneseq
    %v4920 = vshrl.u32 %v4919, 7
    %v4921 = vsub.s32 0, %v4920
    %v4922 = vrot.slane %v4722, %v4921
    %v4923 = vlaneseq
    %v4924 = vshrl.u32 %v4923, 7
    %v4925 = vsub.s32 0, %v4924
    %v4926 = vrot.slane %v4723, %v4925
    %v4927 = vlaneseq
    %v4928 = vshrl.u32 %v4927, 7
    %v4929 = vsub.s32 0, %v4928
    %v4930 = vrot.slane %v4724, %v4929
    %v4931 = vlaneseq
    %v4932 = vshrl.u32 %v4931, 7
    %v4933 = vsub.s32 0, %v4932
    %v4934 = vrot.slane %v4725, %v4933
    %v4935 = vlaneseq
    %v4936 = vshrl.u32 %v4935, 7
    %v4937 = vsub.s32 0, %v4936
    %v4938 = vrot.slane %v4726, %v4937
    %v4939 = vlaneseq
    %v4940 = vshrl.u32 %v4939, 7
    %v4941 = vsub.s32 0, %v4940
    %v4942 = vrot.slane %v4727, %v4941
    %v4943 = vlaneseq
    %v4944 = vshrl.u32 %v4943, 7
    %v4945 = vsub.s32 0, %v4944
    %v4946 = vrot.slane %v4728, %v4945
    %v4947 = vlaneseq
    %v4948 = vshrl.u32 %v4947, 7
    %v4949 = vsub.s32 0, %v4948
    %v4950 = vrot.slane %v4729, %v4949
    %v4951 = vlaneseq
    %v4952 = vshrl.u32 %v4951, 7
    %v4953 = vsub.s32 0, %v4952
    %v4954 = vrot.slane %v4730, %v4953
    %v4955 = vlaneseq
    %v4956 = vshrl.u32 %v4955, 7
    %v4957 = vsub.s32 0, %v4956
    %v4958 = vrot.slane %v4731, %v4957
    %v4959 = vlaneseq
    %v4960 = vshrl.u32 %v4959, 7
    %v4961 = vsub.s32 0, %v4960
    %v4962 = vrot.slane %v4732, %v4961
    %v4963 = vlaneseq
    %v4964 = vshrl.u32 %v4963, 7
    %v4965 = vsub.s32 0, %v4964
    %v4966 = vrot.slane %v4733, %v4965
    %v4967 = vlaneseq
    %v4968 = vshrl.u32 %v4967, 7
    %v4969 = vsub.s32 0, %v4968
    %v4970 = vrot.slane %v4734, %v4969
    %v4971 = vlaneseq
    %v4972 = vshrl.u32 %v4971, 7
    %v4973 = vsub.s32 0, %v4972
    %v4974 = vrot.slane %v4735, %v4973
    %v4975 = vlaneseq
    %v4976 = vshrl.u32 %v4975, 7
    %v4977 = vsub.s32 0, %v4976
    %v4978 = vrot.slane %v4736, %v4977
    %v4979 = vlaneseq
    %v4980 = vshrl.u32 %v4979, 7
    %v4981 = vsub.s32 0, %v4980
    %v4982 = vrot.slane %v4737, %v4981
    %v4983 = vlaneseq
    %v4984 = vshrl.u32 %v4983, 7
    %v4985 = vsub.s32 0, %v4984
    %v4986 = vrot.slane %v4738, %v4985
    %v4987 = vlaneseq
    %v4988 = vshrl.u32 %v4987, 7
    %v4989 = vsub.s32 0, %v4988
    %v4990 = vrot.slane %v4739, %v4989
    %v4991 = vlaneseq
    %v4992 = vshrl.u32 %v4991, 7
    %v4993 = vsub.s32 0, %v4992
    %v4994 = vrot.slane %v4740, %v4993
    %v4995 = vlaneseq
    %v4996 = vshrl.u32 %v4995, 7
    %v4997 = vsub.s32 0, %v4996
    %v4998 = vrot.slane %v4741, %v4997
    %v4999 = vlaneseq
    %v5000 = vshrl.u32 %v4999, 7
    %v5001 = vsub.s32 0, %v5000
    %v5002 = vrot.slane %v4742, %v5001
    %v5003 = vlaneseq
    %v5004 = vshrl.u32 %v5003, 7
    %v5005 = vsub.s32 0, %v5004
    %v5006 = vrot.slane %v4743, %v5005
    %v5007 = vlaneseq
    %v5008 = vshrl.u32 %v5007, 7
    %v5009 = vsub.s32 0, %v5008
    %v5010 = vrot.slane %v4744, %v5009
    %v5011 = vlaneseq
    %v5012 = vshrl.u32 %v5011, 7
    %v5013 = vsub.s32 0, %v5012
    %v5014 = vrot.slane %v4745, %v5013
    %v5015 = vlaneseq
    %v5016 = vshrl.u32 %v5015, 7
    %v5017 = vsub.s32 0, %v5016
    %v5018 = vrot.slane %v4746, %v5017
    %v5019 = vlaneseq
    %v5020 = vshrl.u32 %v5019, 7
    %v5021 = vsub.s32 0, %v5020
    %v5022 = vrot.slane %v4747, %v5021
    %v5023 = vlaneseq
    %v5024 = vshrl.u32 %v5023, 7
    %v5025 = vsub.s32 0, %v5024
    %v5026 = vrot.slane %v4748, %v5025
    %v5027 = vlaneseq
    %v5028 = vshrl.u32 %v5027, 7
    %v5029 = vsub.s32 0, %v5028
    %v5030 = vrot.slane %v4749, %v5029
    %v5031 = vlaneseq
    %v5032 = vshrl.u32 %v5031, 7
    %v5033 = vsub.s32 0, %v5032
    %v5034 = vrot.slane %v4750, %v5033
    %v5035 = vlaneseq
    %v5036 = vshrl.u32 %v5035, 7
    %v5037 = vsub.s32 0, %v5036
    %v5038 = vrot.slane %v4751, %v5037
    %v5039 = vlaneseq
    %v5040 = vshrl.u32 %v5039, 7
    %v5041 = vsub.s32 0, %v5040
    %v5042 = vrot.slane %v4752, %v5041
    %v5043 = vlaneseq
    %v5044 = vshrl.u32 %v5043, 7
    %v5045 = vsub.s32 0, %v5044
    %v5046 = vrot.slane %v4753, %v5045
    %v5047 = vlaneseq
    %v5048 = vshrl.u32 %v5047, 7
    %v5049 = vsub.s32 0, %v5048
    %v5050 = vrot.slane %v4754, %v5049
    %v5051 = vlaneseq
    %v5052 = vshrl.u32 %v5051, 7
    %v5053 = vsub.s32 0, %v5052
    %v5054 = vrot.slane %v4755, %v5053
    %v5055 = vlaneseq
    %v5056 = vshrl.u32 %v5055, 7
    %v5057 = vsub.s32 0, %v5056
    %v5058 = vrot.slane %v4756, %v5057
    %v5059 = vlaneseq
    %v5060 = vshrl.u32 %v5059, 7
    %v5061 = vsub.s32 0, %v5060
    %v5062 = vrot.slane %v4757, %v5061
    %v5063 = vlaneseq
    %v5064 = vshrl.u32 %v5063, 7
    %v5065 = vsub.s32 0, %v5064
    %v5066 = vrot.slane %v4758, %v5065
    %v5067 = vlaneseq
    %v5068 = vshrl.u32 %v5067, 7
    %v5069 = vsub.s32 0, %v5068
    %v5070 = vrot.slane %v4759, %v5069
    %v5071 = vlaneseq
    %v5072 = vshrl.u32 %v5071, 7
    %v5073 = vsub.s32 0, %v5072
    %v5074 = vrot.slane %v4760, %v5073
    %v5075 = vlaneseq
    %v5076 = vshrl.u32 %v5075, 7
    %v5077 = vsub.s32 0, %v5076
    %v5078 = vrot.slane %v4761, %v5077
    %v5079 = vlaneseq
    %v5080 = vshrl.u32 %v5079, 7
    %v5081 = vsub.s32 0, %v5080
    %v5082 = vrot.slane %v4762, %v5081
    %v5083 = vsel %vm2852, %v4834, %v4830
    %v5084 = vsel %vm2854, %v4838, %v5083
    %v5085 = vsel %vm2856, %v4842, %v5084
    %v5086 = vsel %vm2858, %v4846, %v5085
    %v5087 = vsel %vm2860, %v4850, %v5086
    %v5088 = vsel %vm2862, %v4854, %v5087
    %v5089 = vsel %vm2864, %v4858, %v5088
    %v5090 = vsel %vm2852, %v4866, %v4862
    %v5091 = vsel %vm2854, %v4870, %v5090
    %v5092 = vsel %vm2856, %v4874, %v5091
    %v5093 = vsel %vm2858, %v4878, %v5092
    %v5094 = vsel %vm2860, %v4882, %v5093
    %v5095 = vsel %vm2862, %v4886, %v5094
    %v5096 = vsel %vm2864, %v4890, %v5095
    %v5097 = vsel %vm2852, %v4898, %v4894
    %v5098 = vsel %vm2854, %v4902, %v5097
    %v5099 = vsel %vm2856, %v4906, %v5098
    %v5100 = vsel %vm2858, %v4910, %v5099
    %v5101 = vsel %vm2860, %v4914, %v5100
    %v5102 = vsel %vm2862, %v4918, %v5101
    %v5103 = vsel %vm2864, %v4922, %v5102
    %v5104 = vsel %vm2852, %v4930, %v4926
    %v5105 = vsel %vm2854, %v4934, %v5104
    %v5106 = vsel %vm2856, %v4938, %v5105
    %v5107 = vsel %vm2858, %v4942, %v5106
    %v5108 = vsel %vm2860, %v4946, %v5107
    %v5109 = vsel %vm2862, %v4950, %v5108
    %v5110 = vsel %vm2864, %v4954, %v5109
    %v5111 = vsel %vm2852, %v4962, %v4958
    %v5112 = vsel %vm2854, %v4966, %v5111
    %v5113 = vsel %vm2856, %v4970, %v5112
    %v5114 = vsel %vm2858, %v4974, %v5113
    %v5115 = vsel %vm2860, %v4978, %v5114
    %v5116 = vsel %vm2862, %v4982, %v5115
    %v5117 = vsel %vm2864, %v4986, %v5116
    %v5118 = vsel %vm2852, %v4994, %v4990
    %v5119 = vsel %vm2854, %v4998, %v5118
    %v5120 = vsel %vm2856, %v5002, %v5119
    %v5121 = vsel %vm2858, %v5006, %v5120
    %v5122 = vsel %vm2860, %v5010, %v5121
    %v5123 = vsel %vm2862, %v5014, %v5122
    %v5124 = vsel %vm2864, %v5018, %v5123
    %v5125 = vsel %vm2852, %v5026, %v5022
    %v5126 = vsel %vm2854, %v5030, %v5125
    %v5127 = vsel %vm2856, %v5034, %v5126
    %v5128 = vsel %vm2858, %v5038, %v5127
    %v5129 = vsel %vm2860, %v5042, %v5128
    %v5130 = vsel %vm2862, %v5046, %v5129
    %v5131 = vsel %vm2864, %v5050, %v5130
    %v5132 = vsel %vm2852, %v5058, %v5054
    %v5133 = vsel %vm2854, %v5062, %v5132
    %v5134 = vsel %vm2856, %v5066, %v5133
    %v5135 = vsel %vm2858, %v5070, %v5134
    %v5136 = vsel %vm2860, %v5074, %v5135
    %v5137 = vsel %vm2862, %v5078, %v5136
    %v5138 = vsel %vm2864, %v5082, %v5137
    %5147 = vst [vmem:[#allocation8] sm:$0xff] %v5089
    %5148 = vst [vmem:[#allocation8 + $0x8] sm:$0xff] %v5096
    %5149 = vst [vmem:[#allocation8 + $0x10] sm:$0xff] %v5103
    %5150 = vst [vmem:[#allocation8 + $0x18] sm:$0xff] %v5110
    %5151 = vst [vmem:[#allocation8 + $0x20] sm:$0xff] %v5117
    %5152 = vst [vmem:[#allocation8 + $0x28] sm:$0xff] %v5124
    %5153 = vst [vmem:[#allocation8 + $0x30] sm:$0xff] %v5131
    %5154 = vst [vmem:[#allocation8 + $0x38] sm:$0xff] %v5138
    %v5155 = vmul.f32 %v4380, %v4572
    %v5156 = vmul.f32 %v4382, %v4574
    %v5157 = vmul.f32 %v4384, %v4576
    %v5158 = vmul.f32 %v4386, %v4578
    %v5159 = vmul.f32 %v4388, %v4580
    %v5160 = vmul.f32 %v4390, %v4582
    %v5161 = vmul.f32 %v4392, %v4584
    %v5162 = vmul.f32 %v4394, %v4586
    %v5163 = vmul.f32 %v4396, %v4588
    %v5164 = vmul.f32 %v4398, %v4590
    %v5165 = vmul.f32 %v4400, %v4592
    %v5166 = vmul.f32 %v4402, %v4594
    %v5167 = vmul.f32 %v4404, %v4596
    %v5168 = vmul.f32 %v4406, %v4598
    %v5169 = vmul.f32 %v4408, %v4600
    %v5170 = vmul.f32 %v4410, %v4602
    %v5171 = vmul.f32 %v4412, %v4604
    %v5172 = vmul.f32 %v4414, %v4606
    %v5173 = vmul.f32 %v4416, %v4608
    %v5174 = vmul.f32 %v4418, %v4610
    %v5175 = vmul.f32 %v4420, %v4612
    %v5176 = vmul.f32 %v4422, %v4614
    %v5177 = vmul.f32 %v4424, %v4616
    %v5178 = vmul.f32 %v4426, %v4618
    %v5179 = vmul.f32 %v4428, %v4620
    %v5180 = vmul.f32 %v4430, %v4622
    %v5181 = vmul.f32 %v4432, %v4624
    %v5182 = vmul.f32 %v4434, %v4626
    %v5183 = vmul.f32 %v4436, %v4628
    %v5184 = vmul.f32 %v4438, %v4630
    %v5185 = vmul.f32 %v4440, %v4632
    %v5186 = vmul.f32 %v4442, %v4634
    %v5187 = vmul.f32 %v4444, %v4636
    %v5188 = vmul.f32 %v4446, %v4638
    %v5189 = vmul.f32 %v4448, %v4640
    %v5190 = vmul.f32 %v4450, %v4642
    %v5191 = vmul.f32 %v4452, %v4644
    %v5192 = vmul.f32 %v4454, %v4646
    %v5193 = vmul.f32 %v4456, %v4648
    %v5194 = vmul.f32 %v4458, %v4650
    %v5195 = vmul.f32 %v4460, %v4652
    %v5196 = vmul.f32 %v4462, %v4654
    %v5197 = vmul.f32 %v4464, %v4656
    %v5198 = vmul.f32 %v4466, %v4658
    %v5199 = vmul.f32 %v4468, %v4660
    %v5200 = vmul.f32 %v4470, %v4662
    %v5201 = vmul.f32 %v4472, %v4664
    %v5202 = vmul.f32 %v4474, %v4666
    %v5203 = vmul.f32 %v4476, %v4668
    %v5204 = vmul.f32 %v4478, %v4670
    %v5205 = vmul.f32 %v4480, %v4672
    %v5206 = vmul.f32 %v4482, %v4674
    %v5207 = vmul.f32 %v4484, %v4676
    %v5208 = vmul.f32 %v4486, %v4678
    %v5209 = vmul.f32 %v4488, %v4680
    %v5210 = vmul.f32 %v4490, %v4682
    %v5211 = vmul.f32 %v4492, %v4684
    %v5212 = vmul.f32 %v4494, %v4686
    %v5213 = vmul.f32 %v4496, %v4688
    %v5214 = vmul.f32 %v4498, %v4690
    %v5215 = vmul.f32 %v4500, %v4692
    %v5216 = vmul.f32 %v4502, %v4694
    %v5217 = vmul.f32 %v4504, %v4696
    %v5218 = vmul.f32 %v4506, %v4698
    %v5283 = vlaneseq
    %v5284 = vshrl.u32 %v5283, 7
    %v5285 = vsub.s32 0, %v5284
    %v5286 = vrot.slane %v5155, %v5285
    %v5287 = vlaneseq
    %v5288 = vshrl.u32 %v5287, 7
    %v5289 = vsub.s32 0, %v5288
    %v5290 = vrot.slane %v5156, %v5289
    %v5291 = vlaneseq
    %v5292 = vshrl.u32 %v5291, 7
    %v5293 = vsub.s32 0, %v5292
    %v5294 = vrot.slane %v5157, %v5293
    %v5295 = vlaneseq
    %v5296 = vshrl.u32 %v5295, 7
    %v5297 = vsub.s32 0, %v5296
    %v5298 = vrot.slane %v5158, %v5297
    %v5299 = vlaneseq
    %v5300 = vshrl.u32 %v5299, 7
    %v5301 = vsub.s32 0, %v5300
    %v5302 = vrot.slane %v5159, %v5301
    %v5303 = vlaneseq
    %v5304 = vshrl.u32 %v5303, 7
    %v5305 = vsub.s32 0, %v5304
    %v5306 = vrot.slane %v5160, %v5305
    %v5307 = vlaneseq
    %v5308 = vshrl.u32 %v5307, 7
    %v5309 = vsub.s32 0, %v5308
    %v5310 = vrot.slane %v5161, %v5309
    %v5311 = vlaneseq
    %v5312 = vshrl.u32 %v5311, 7
    %v5313 = vsub.s32 0, %v5312
    %v5314 = vrot.slane %v5162, %v5313
    %v5315 = vlaneseq
    %v5316 = vshrl.u32 %v5315, 7
    %v5317 = vsub.s32 0, %v5316
    %v5318 = vrot.slane %v5163, %v5317
    %v5319 = vlaneseq
    %v5320 = vshrl.u32 %v5319, 7
    %v5321 = vsub.s32 0, %v5320
    %v5322 = vrot.slane %v5164, %v5321
    %v5323 = vlaneseq
    %v5324 = vshrl.u32 %v5323, 7
    %v5325 = vsub.s32 0, %v5324
    %v5326 = vrot.slane %v5165, %v5325
    %v5327 = vlaneseq
    %v5328 = vshrl.u32 %v5327, 7
    %v5329 = vsub.s32 0, %v5328
    %v5330 = vrot.slane %v5166, %v5329
    %v5331 = vlaneseq
    %v5332 = vshrl.u32 %v5331, 7
    %v5333 = vsub.s32 0, %v5332
    %v5334 = vrot.slane %v5167, %v5333
    %v5335 = vlaneseq
    %v5336 = vshrl.u32 %v5335, 7
    %v5337 = vsub.s32 0, %v5336
    %v5338 = vrot.slane %v5168, %v5337
    %v5339 = vlaneseq
    %v5340 = vshrl.u32 %v5339, 7
    %v5341 = vsub.s32 0, %v5340
    %v5342 = vrot.slane %v5169, %v5341
    %v5343 = vlaneseq
    %v5344 = vshrl.u32 %v5343, 7
    %v5345 = vsub.s32 0, %v5344
    %v5346 = vrot.slane %v5170, %v5345
    %v5347 = vlaneseq
    %v5348 = vshrl.u32 %v5347, 7
    %v5349 = vsub.s32 0, %v5348
    %v5350 = vrot.slane %v5171, %v5349
    %v5351 = vlaneseq
    %v5352 = vshrl.u32 %v5351, 7
    %v5353 = vsub.s32 0, %v5352
    %v5354 = vrot.slane %v5172, %v5353
    %v5355 = vlaneseq
    %v5356 = vshrl.u32 %v5355, 7
    %v5357 = vsub.s32 0, %v5356
    %v5358 = vrot.slane %v5173, %v5357
    %v5359 = vlaneseq
    %v5360 = vshrl.u32 %v5359, 7
    %v5361 = vsub.s32 0, %v5360
    %v5362 = vrot.slane %v5174, %v5361
    %v5363 = vlaneseq
    %v5364 = vshrl.u32 %v5363, 7
    %v5365 = vsub.s32 0, %v5364
    %v5366 = vrot.slane %v5175, %v5365
    %v5367 = vlaneseq
    %v5368 = vshrl.u32 %v5367, 7
    %v5369 = vsub.s32 0, %v5368
    %v5370 = vrot.slane %v5176, %v5369
    %v5371 = vlaneseq
    %v5372 = vshrl.u32 %v5371, 7
    %v5373 = vsub.s32 0, %v5372
    %v5374 = vrot.slane %v5177, %v5373
    %v5375 = vlaneseq
    %v5376 = vshrl.u32 %v5375, 7
    %v5377 = vsub.s32 0, %v5376
    %v5378 = vrot.slane %v5178, %v5377
    %v5379 = vlaneseq
    %v5380 = vshrl.u32 %v5379, 7
    %v5381 = vsub.s32 0, %v5380
    %v5382 = vrot.slane %v5179, %v5381
    %v5383 = vlaneseq
    %v5384 = vshrl.u32 %v5383, 7
    %v5385 = vsub.s32 0, %v5384
    %v5386 = vrot.slane %v5180, %v5385
    %v5387 = vlaneseq
    %v5388 = vshrl.u32 %v5387, 7
    %v5389 = vsub.s32 0, %v5388
    %v5390 = vrot.slane %v5181, %v5389
    %v5391 = vlaneseq
    %v5392 = vshrl.u32 %v5391, 7
    %v5393 = vsub.s32 0, %v5392
    %v5394 = vrot.slane %v5182, %v5393
    %v5395 = vlaneseq
    %v5396 = vshrl.u32 %v5395, 7
    %v5397 = vsub.s32 0, %v5396
    %v5398 = vrot.slane %v5183, %v5397
    %v5399 = vlaneseq
    %v5400 = vshrl.u32 %v5399, 7
    %v5401 = vsub.s32 0, %v5400
    %v5402 = vrot.slane %v5184, %v5401
    %v5403 = vlaneseq
    %v5404 = vshrl.u32 %v5403, 7
    %v5405 = vsub.s32 0, %v5404
    %v5406 = vrot.slane %v5185, %v5405
    %v5407 = vlaneseq
    %v5408 = vshrl.u32 %v5407, 7
    %v5409 = vsub.s32 0, %v5408
    %v5410 = vrot.slane %v5186, %v5409
    %v5411 = vlaneseq
    %v5412 = vshrl.u32 %v5411, 7
    %v5413 = vsub.s32 0, %v5412
    %v5414 = vrot.slane %v5187, %v5413
    %v5415 = vlaneseq
    %v5416 = vshrl.u32 %v5415, 7
    %v5417 = vsub.s32 0, %v5416
    %v5418 = vrot.slane %v5188, %v5417
    %v5419 = vlaneseq
    %v5420 = vshrl.u32 %v5419, 7
    %v5421 = vsub.s32 0, %v5420
    %v5422 = vrot.slane %v5189, %v5421
    %v5423 = vlaneseq
    %v5424 = vshrl.u32 %v5423, 7
    %v5425 = vsub.s32 0, %v5424
    %v5426 = vrot.slane %v5190, %v5425
    %v5427 = vlaneseq
    %v5428 = vshrl.u32 %v5427, 7
    %v5429 = vsub.s32 0, %v5428
    %v5430 = vrot.slane %v5191, %v5429
    %v5431 = vlaneseq
    %v5432 = vshrl.u32 %v5431, 7
    %v5433 = vsub.s32 0, %v5432
    %v5434 = vrot.slane %v5192, %v5433
    %v5435 = vlaneseq
    %v5436 = vshrl.u32 %v5435, 7
    %v5437 = vsub.s32 0, %v5436
    %v5438 = vrot.slane %v5193, %v5437
    %v5439 = vlaneseq
    %v5440 = vshrl.u32 %v5439, 7
    %v5441 = vsub.s32 0, %v5440
    %v5442 = vrot.slane %v5194, %v5441
    %v5443 = vlaneseq
    %v5444 = vshrl.u32 %v5443, 7
    %v5445 = vsub.s32 0, %v5444
    %v5446 = vrot.slane %v5195, %v5445
    %v5447 = vlaneseq
    %v5448 = vshrl.u32 %v5447, 7
    %v5449 = vsub.s32 0, %v5448
    %v5450 = vrot.slane %v5196, %v5449
    %v5451 = vlaneseq
    %v5452 = vshrl.u32 %v5451, 7
    %v5453 = vsub.s32 0, %v5452
    %v5454 = vrot.slane %v5197, %v5453
    %v5455 = vlaneseq
    %v5456 = vshrl.u32 %v5455, 7
    %v5457 = vsub.s32 0, %v5456
    %v5458 = vrot.slane %v5198, %v5457
    %v5459 = vlaneseq
    %v5460 = vshrl.u32 %v5459, 7
    %v5461 = vsub.s32 0, %v5460
    %v5462 = vrot.slane %v5199, %v5461
    %v5463 = vlaneseq
    %v5464 = vshrl.u32 %v5463, 7
    %v5465 = vsub.s32 0, %v5464
    %v5466 = vrot.slane %v5200, %v5465
    %v5467 = vlaneseq
    %v5468 = vshrl.u32 %v5467, 7
    %v5469 = vsub.s32 0, %v5468
    %v5470 = vrot.slane %v5201, %v5469
    %v5471 = vlaneseq
    %v5472 = vshrl.u32 %v5471, 7
    %v5473 = vsub.s32 0, %v5472
    %v5474 = vrot.slane %v5202, %v5473
    %v5475 = vlaneseq
    %v5476 = vshrl.u32 %v5475, 7
    %v5477 = vsub.s32 0, %v5476
    %v5478 = vrot.slane %v5203, %v5477
    %v5479 = vlaneseq
    %v5480 = vshrl.u32 %v5479, 7
    %v5481 = vsub.s32 0, %v5480
    %v5482 = vrot.slane %v5204, %v5481
    %v5483 = vlaneseq
    %v5484 = vshrl.u32 %v5483, 7
    %v5485 = vsub.s32 0, %v5484
    %v5486 = vrot.slane %v5205, %v5485
    %v5487 = vlaneseq
    %v5488 = vshrl.u32 %v5487, 7
    %v5489 = vsub.s32 0, %v5488
    %v5490 = vrot.slane %v5206, %v5489
    %v5491 = vlaneseq
    %v5492 = vshrl.u32 %v5491, 7
    %v5493 = vsub.s32 0, %v5492
    %v5494 = vrot.slane %v5207, %v5493
    %v5495 = vlaneseq
    %v5496 = vshrl.u32 %v5495, 7
    %v5497 = vsub.s32 0, %v5496
    %v5498 = vrot.slane %v5208, %v5497
    %v5499 = vlaneseq
    %v5500 = vshrl.u32 %v5499, 7
    %v5501 = vsub.s32 0, %v5500
    %v5502 = vrot.slane %v5209, %v5501
    %v5503 = vlaneseq
    %v5504 = vshrl.u32 %v5503, 7
    %v5505 = vsub.s32 0, %v5504
    %v5506 = vrot.slane %v5210, %v5505
    %v5507 = vlaneseq
    %v5508 = vshrl.u32 %v5507, 7
    %v5509 = vsub.s32 0, %v5508
    %v5510 = vrot.slane %v5211, %v5509
    %v5511 = vlaneseq
    %v5512 = vshrl.u32 %v5511, 7
    %v5513 = vsub.s32 0, %v5512
    %v5514 = vrot.slane %v5212, %v5513
    %v5515 = vlaneseq
    %v5516 = vshrl.u32 %v5515, 7
    %v5517 = vsub.s32 0, %v5516
    %v5518 = vrot.slane %v5213, %v5517
    %v5519 = vlaneseq
    %v5520 = vshrl.u32 %v5519, 7
    %v5521 = vsub.s32 0, %v5520
    %v5522 = vrot.slane %v5214, %v5521
    %v5523 = vlaneseq
    %v5524 = vshrl.u32 %v5523, 7
    %v5525 = vsub.s32 0, %v5524
    %v5526 = vrot.slane %v5215, %v5525
    %v5527 = vlaneseq
    %v5528 = vshrl.u32 %v5527, 7
    %v5529 = vsub.s32 0, %v5528
    %v5530 = vrot.slane %v5216, %v5529
    %v5531 = vlaneseq
    %v5532 = vshrl.u32 %v5531, 7
    %v5533 = vsub.s32 0, %v5532
    %v5534 = vrot.slane %v5217, %v5533
    %v5535 = vlaneseq
    %v5536 = vshrl.u32 %v5535, 7
    %v5537 = vsub.s32 0, %v5536
    %v5538 = vrot.slane %v5218, %v5537
    %v5539 = vsel %vm2852, %v5290, %v5286
    %v5540 = vsel %vm2854, %v5294, %v5539
    %v5541 = vsel %vm2856, %v5298, %v5540
    %v5542 = vsel %vm2858, %v5302, %v5541
    %v5543 = vsel %vm2860, %v5306, %v5542
    %v5544 = vsel %vm2862, %v5310, %v5543
    %v5545 = vsel %vm2864, %v5314, %v5544
    %v5546 = vsel %vm2852, %v5322, %v5318
    %v5547 = vsel %vm2854, %v5326, %v5546
    %v5548 = vsel %vm2856, %v5330, %v5547
    %v5549 = vsel %vm2858, %v5334, %v5548
    %v5550 = vsel %vm2860, %v5338, %v5549
    %v5551 = vsel %vm2862, %v5342, %v5550
    %v5552 = vsel %vm2864, %v5346, %v5551
    %v5553 = vsel %vm2852, %v5354, %v5350
    %v5554 = vsel %vm2854, %v5358, %v5553
    %v5555 = vsel %vm2856, %v5362, %v5554
    %v5556 = vsel %vm2858, %v5366, %v5555
    %v5557 = vsel %vm2860, %v5370, %v5556
    %v5558 = vsel %vm2862, %v5374, %v5557
    %v5559 = vsel %vm2864, %v5378, %v5558
    %v5560 = vsel %vm2852, %v5386, %v5382
    %v5561 = vsel %vm2854, %v5390, %v5560
    %v5562 = vsel %vm2856, %v5394, %v5561
    %v5563 = vsel %vm2858, %v5398, %v5562
    %v5564 = vsel %vm2860, %v5402, %v5563
    %v5565 = vsel %vm2862, %v5406, %v5564
    %v5566 = vsel %vm2864, %v5410, %v5565
    %v5567 = vsel %vm2852, %v5418, %v5414
    %v5568 = vsel %vm2854, %v5422, %v5567
    %v5569 = vsel %vm2856, %v5426, %v5568
    %v5570 = vsel %vm2858, %v5430, %v5569
    %v5571 = vsel %vm2860, %v5434, %v5570
    %v5572 = vsel %vm2862, %v5438, %v5571
    %v5573 = vsel %vm2864, %v5442, %v5572
    %v5574 = vsel %vm2852, %v5450, %v5446
    %v5575 = vsel %vm2854, %v5454, %v5574
    %v5576 = vsel %vm2856, %v5458, %v5575
    %v5577 = vsel %vm2858, %v5462, %v5576
    %v5578 = vsel %vm2860, %v5466, %v5577
    %v5579 = vsel %vm2862, %v5470, %v5578
    %v5580 = vsel %vm2864, %v5474, %v5579
    %v5581 = vsel %vm2852, %v5482, %v5478
    %v5582 = vsel %vm2854, %v5486, %v5581
    %v5583 = vsel %vm2856, %v5490, %v5582
    %v5584 = vsel %vm2858, %v5494, %v5583
    %v5585 = vsel %vm2860, %v5498, %v5584
    %v5586 = vsel %vm2862, %v5502, %v5585
    %v5587 = vsel %vm2864, %v5506, %v5586
    %v5588 = vsel %vm2852, %v5514, %v5510
    %v5589 = vsel %vm2854, %v5518, %v5588
    %v5590 = vsel %vm2856, %v5522, %v5589
    %v5591 = vsel %vm2858, %v5526, %v5590
    %v5592 = vsel %vm2860, %v5530, %v5591
    %v5593 = vsel %vm2862, %v5534, %v5592
    %v5594 = vsel %vm2864, %v5538, %v5593
    %5603 = vst [vmem:[#allocation9] sm:$0xff] %v5545
    %5604 = vst [vmem:[#allocation9 + $0x8] sm:$0xff] %v5552
    %5605 = vst [vmem:[#allocation9 + $0x10] sm:$0xff] %v5559
    %5606 = vst [vmem:[#allocation9 + $0x18] sm:$0xff] %v5566
    %5607 = vst [vmem:[#allocation9 + $0x20] sm:$0xff] %v5573
    %5608 = vst [vmem:[#allocation9 + $0x28] sm:$0xff] %v5580
    %5609 = vst [vmem:[#allocation9 + $0x30] sm:$0xff] %v5587
    %5610 = vst [vmem:[#allocation9 + $0x38] sm:$0xff] %v5594
    %v5611 = vlog2.pop %v4507
    %v5612 = vmul.f32 %v5611, 0.6931472
    %v5613 = vlog2.pop %v4508
    %v5614 = vmul.f32 %v5613, 0.6931472
    %v5615 = vlog2.pop %v4509
    %v5616 = vmul.f32 %v5615, 0.6931472
    %v5617 = vlog2.pop %v4510
    %v5618 = vmul.f32 %v5617, 0.6931472
    %v5619 = vlog2.pop %v4511
    %v5620 = vmul.f32 %v5619, 0.6931472
    %v5621 = vlog2.pop %v4512
    %v5622 = vmul.f32 %v5621, 0.6931472
    %v5623 = vlog2.pop %v4513
    %v5624 = vmul.f32 %v5623, 0.6931472
    %v5625 = vlog2.pop %v4514
    %v5626 = vmul.f32 %v5625, 0.6931472
    %v5627 = vlog2.pop %v4515
    %v5628 = vmul.f32 %v5627, 0.6931472
    %v5629 = vlog2.pop %v4516
    %v5630 = vmul.f32 %v5629, 0.6931472
    %v5631 = vlog2.pop %v4517
    %v5632 = vmul.f32 %v5631, 0.6931472
    %v5633 = vlog2.pop %v4518
    %v5634 = vmul.f32 %v5633, 0.6931472
    %v5635 = vlog2.pop %v4519
    %v5636 = vmul.f32 %v5635, 0.6931472
    %v5637 = vlog2.pop %v4520
    %v5638 = vmul.f32 %v5637, 0.6931472
    %v5639 = vlog2.pop %v4521
    %v5640 = vmul.f32 %v5639, 0.6931472
    %v5641 = vlog2.pop %v4522
    %v5642 = vmul.f32 %v5641, 0.6931472
    %v5643 = vlog2.pop %v4523
    %v5644 = vmul.f32 %v5643, 0.6931472
    %v5645 = vlog2.pop %v4524
    %v5646 = vmul.f32 %v5645, 0.6931472
    %v5647 = vlog2.pop %v4525
    %v5648 = vmul.f32 %v5647, 0.6931472
    %v5649 = vlog2.pop %v4526
    %v5650 = vmul.f32 %v5649, 0.6931472
    %v5651 = vlog2.pop %v4527
    %v5652 = vmul.f32 %v5651, 0.6931472
    %v5653 = vlog2.pop %v4528
    %v5654 = vmul.f32 %v5653, 0.6931472
    %v5655 = vlog2.pop %v4529
    %v5656 = vmul.f32 %v5655, 0.6931472
    %v5657 = vlog2.pop %v4530
    %v5658 = vmul.f32 %v5657, 0.6931472
    %v5659 = vlog2.pop %v4531
    %v5660 = vmul.f32 %v5659, 0.6931472
    %v5661 = vlog2.pop %v4532
    %v5662 = vmul.f32 %v5661, 0.6931472
    %v5663 = vlog2.pop %v4533
    %v5664 = vmul.f32 %v5663, 0.6931472
    %v5665 = vlog2.pop %v4534
    %v5666 = vmul.f32 %v5665, 0.6931472
    %v5667 = vlog2.pop %v4535
    %v5668 = vmul.f32 %v5667, 0.6931472
    %v5669 = vlog2.pop %v4536
    %v5670 = vmul.f32 %v5669, 0.6931472
    %v5671 = vlog2.pop %v4537
    %v5672 = vmul.f32 %v5671, 0.6931472
    %v5673 = vlog2.pop %v4538
    %v5674 = vmul.f32 %v5673, 0.6931472
    %v5675 = vlog2.pop %v4539
    %v5676 = vmul.f32 %v5675, 0.6931472
    %v5677 = vlog2.pop %v4540
    %v5678 = vmul.f32 %v5677, 0.6931472
    %v5679 = vlog2.pop %v4541
    %v5680 = vmul.f32 %v5679, 0.6931472
    %v5681 = vlog2.pop %v4542
    %v5682 = vmul.f32 %v5681, 0.6931472
    %v5683 = vlog2.pop %v4543
    %v5684 = vmul.f32 %v5683, 0.6931472
    %v5685 = vlog2.pop %v4544
    %v5686 = vmul.f32 %v5685, 0.6931472
    %v5687 = vlog2.pop %v4545
    %v5688 = vmul.f32 %v5687, 0.6931472
    %v5689 = vlog2.pop %v4546
    %v5690 = vmul.f32 %v5689, 0.6931472
    %v5691 = vlog2.pop %v4547
    %v5692 = vmul.f32 %v5691, 0.6931472
    %v5693 = vlog2.pop %v4548
    %v5694 = vmul.f32 %v5693, 0.6931472
    %v5695 = vlog2.pop %v4549
    %v5696 = vmul.f32 %v5695, 0.6931472
    %v5697 = vlog2.pop %v4550
    %v5698 = vmul.f32 %v5697, 0.6931472
    %v5699 = vlog2.pop %v4551
    %v5700 = vmul.f32 %v5699, 0.6931472
    %v5701 = vlog2.pop %v4552
    %v5702 = vmul.f32 %v5701, 0.6931472
    %v5703 = vlog2.pop %v4553
    %v5704 = vmul.f32 %v5703, 0.6931472
    %v5705 = vlog2.pop %v4554
    %v5706 = vmul.f32 %v5705, 0.6931472
    %v5707 = vlog2.pop %v4555
    %v5708 = vmul.f32 %v5707, 0.6931472
    %v5709 = vlog2.pop %v4556
    %v5710 = vmul.f32 %v5709, 0.6931472
    %v5711 = vlog2.pop %v4557
    %v5712 = vmul.f32 %v5711, 0.6931472
    %v5713 = vlog2.pop %v4558
    %v5714 = vmul.f32 %v5713, 0.6931472
    %v5715 = vlog2.pop %v4559
    %v5716 = vmul.f32 %v5715, 0.6931472
    %v5717 = vlog2.pop %v4560
    %v5718 = vmul.f32 %v5717, 0.6931472
    %v5719 = vlog2.pop %v4561
    %v5720 = vmul.f32 %v5719, 0.6931472
    %v5721 = vlog2.pop %v4562
    %v5722 = vmul.f32 %v5721, 0.6931472
    %v5723 = vlog2.pop %v4563
    %v5724 = vmul.f32 %v5723, 0.6931472
    %v5725 = vlog2.pop %v4564
    %v5726 = vmul.f32 %v5725, 0.6931472
    %v5727 = vlog2.pop %v4565
    %v5728 = vmul.f32 %v5727, 0.6931472
    %v5729 = vlog2.pop %v4566
    %v5730 = vmul.f32 %v5729, 0.6931472
    %v5731 = vlog2.pop %v4567
    %v5732 = vmul.f32 %v5731, 0.6931472
    %v5733 = vlog2.pop %v4568
    %v5734 = vmul.f32 %v5733, 0.6931472
    %v5735 = vlog2.pop %v4569
    %v5736 = vmul.f32 %v5735, 0.6931472
    %v5737 = vlog2.pop %v4570
    %v5738 = vmul.f32 %v5737, 0.6931472
    %v5739 = vsub.f32 %v4123, %v5612
    %v5740 = vsub.f32 %v4124, %v5614
    %v5741 = vsub.f32 %v4125, %v5616
    %v5742 = vsub.f32 %v4126, %v5618
    %v5743 = vsub.f32 %v4127, %v5620
    %v5744 = vsub.f32 %v4128, %v5622
    %v5745 = vsub.f32 %v4129, %v5624
    %v5746 = vsub.f32 %v4130, %v5626
    %v5747 = vsub.f32 %v4131, %v5628
    %v5748 = vsub.f32 %v4132, %v5630
    %v5749 = vsub.f32 %v4133, %v5632
    %v5750 = vsub.f32 %v4134, %v5634
    %v5751 = vsub.f32 %v4135, %v5636
    %v5752 = vsub.f32 %v4136, %v5638
    %v5753 = vsub.f32 %v4137, %v5640
    %v5754 = vsub.f32 %v4138, %v5642
    %v5755 = vsub.f32 %v4139, %v5644
    %v5756 = vsub.f32 %v4140, %v5646
    %v5757 = vsub.f32 %v4141, %v5648
    %v5758 = vsub.f32 %v4142, %v5650
    %v5759 = vsub.f32 %v4143, %v5652
    %v5760 = vsub.f32 %v4144, %v5654
    %v5761 = vsub.f32 %v4145, %v5656
    %v5762 = vsub.f32 %v4146, %v5658
    %v5763 = vsub.f32 %v4147, %v5660
    %v5764 = vsub.f32 %v4148, %v5662
    %v5765 = vsub.f32 %v4149, %v5664
    %v5766 = vsub.f32 %v4150, %v5666
    %v5767 = vsub.f32 %v4151, %v5668
    %v5768 = vsub.f32 %v4152, %v5670
    %v5769 = vsub.f32 %v4153, %v5672
    %v5770 = vsub.f32 %v4154, %v5674
    %v5771 = vsub.f32 %v4155, %v5676
    %v5772 = vsub.f32 %v4156, %v5678
    %v5773 = vsub.f32 %v4157, %v5680
    %v5774 = vsub.f32 %v4158, %v5682
    %v5775 = vsub.f32 %v4159, %v5684
    %v5776 = vsub.f32 %v4160, %v5686
    %v5777 = vsub.f32 %v4161, %v5688
    %v5778 = vsub.f32 %v4162, %v5690
    %v5779 = vsub.f32 %v4163, %v5692
    %v5780 = vsub.f32 %v4164, %v5694
    %v5781 = vsub.f32 %v4165, %v5696
    %v5782 = vsub.f32 %v4166, %v5698
    %v5783 = vsub.f32 %v4167, %v5700
    %v5784 = vsub.f32 %v4168, %v5702
    %v5785 = vsub.f32 %v4169, %v5704
    %v5786 = vsub.f32 %v4170, %v5706
    %v5787 = vsub.f32 %v4171, %v5708
    %v5788 = vsub.f32 %v4172, %v5710
    %v5789 = vsub.f32 %v4173, %v5712
    %v5790 = vsub.f32 %v4174, %v5714
    %v5791 = vsub.f32 %v4175, %v5716
    %v5792 = vsub.f32 %v4176, %v5718
    %v5793 = vsub.f32 %v4177, %v5720
    %v5794 = vsub.f32 %v4178, %v5722
    %v5795 = vsub.f32 %v4179, %v5724
    %v5796 = vsub.f32 %v4180, %v5726
    %v5797 = vsub.f32 %v4181, %v5728
    %v5798 = vsub.f32 %v4182, %v5730
    %v5799 = vsub.f32 %v4183, %v5732
    %v5800 = vsub.f32 %v4184, %v5734
    %v5801 = vsub.f32 %v4185, %v5736
    %v5802 = vsub.f32 %v4186, %v5738
    %v5867 = vlaneseq
    %v5868 = vshrl.u32 %v5867, 7
    %v5869 = vsub.s32 0, %v5868
    %v5870 = vrot.slane %v5739, %v5869
    %v5871 = vlaneseq
    %v5872 = vshrl.u32 %v5871, 7
    %v5873 = vsub.s32 0, %v5872
    %v5874 = vrot.slane %v5740, %v5873
    %v5875 = vlaneseq
    %v5876 = vshrl.u32 %v5875, 7
    %v5877 = vsub.s32 0, %v5876
    %v5878 = vrot.slane %v5741, %v5877
    %v5879 = vlaneseq
    %v5880 = vshrl.u32 %v5879, 7
    %v5881 = vsub.s32 0, %v5880
    %v5882 = vrot.slane %v5742, %v5881
    %v5883 = vlaneseq
    %v5884 = vshrl.u32 %v5883, 7
    %v5885 = vsub.s32 0, %v5884
    %v5886 = vrot.slane %v5743, %v5885
    %v5887 = vlaneseq
    %v5888 = vshrl.u32 %v5887, 7
    %v5889 = vsub.s32 0, %v5888
    %v5890 = vrot.slane %v5744, %v5889
    %v5891 = vlaneseq
    %v5892 = vshrl.u32 %v5891, 7
    %v5893 = vsub.s32 0, %v5892
    %v5894 = vrot.slane %v5745, %v5893
    %v5895 = vlaneseq
    %v5896 = vshrl.u32 %v5895, 7
    %v5897 = vsub.s32 0, %v5896
    %v5898 = vrot.slane %v5746, %v5897
    %v5899 = vlaneseq
    %v5900 = vshrl.u32 %v5899, 7
    %v5901 = vsub.s32 0, %v5900
    %v5902 = vrot.slane %v5747, %v5901
    %v5903 = vlaneseq
    %v5904 = vshrl.u32 %v5903, 7
    %v5905 = vsub.s32 0, %v5904
    %v5906 = vrot.slane %v5748, %v5905
    %v5907 = vlaneseq
    %v5908 = vshrl.u32 %v5907, 7
    %v5909 = vsub.s32 0, %v5908
    %v5910 = vrot.slane %v5749, %v5909
    %v5911 = vlaneseq
    %v5912 = vshrl.u32 %v5911, 7
    %v5913 = vsub.s32 0, %v5912
    %v5914 = vrot.slane %v5750, %v5913
    %v5915 = vlaneseq
    %v5916 = vshrl.u32 %v5915, 7
    %v5917 = vsub.s32 0, %v5916
    %v5918 = vrot.slane %v5751, %v5917
    %v5919 = vlaneseq
    %v5920 = vshrl.u32 %v5919, 7
    %v5921 = vsub.s32 0, %v5920
    %v5922 = vrot.slane %v5752, %v5921
    %v5923 = vlaneseq
    %v5924 = vshrl.u32 %v5923, 7
    %v5925 = vsub.s32 0, %v5924
    %v5926 = vrot.slane %v5753, %v5925
    %v5927 = vlaneseq
    %v5928 = vshrl.u32 %v5927, 7
    %v5929 = vsub.s32 0, %v5928
    %v5930 = vrot.slane %v5754, %v5929
    %v5931 = vlaneseq
    %v5932 = vshrl.u32 %v5931, 7
    %v5933 = vsub.s32 0, %v5932
    %v5934 = vrot.slane %v5755, %v5933
    %v5935 = vlaneseq
    %v5936 = vshrl.u32 %v5935, 7
    %v5937 = vsub.s32 0, %v5936
    %v5938 = vrot.slane %v5756, %v5937
    %v5939 = vlaneseq
    %v5940 = vshrl.u32 %v5939, 7
    %v5941 = vsub.s32 0, %v5940
    %v5942 = vrot.slane %v5757, %v5941
    %v5943 = vlaneseq
    %v5944 = vshrl.u32 %v5943, 7
    %v5945 = vsub.s32 0, %v5944
    %v5946 = vrot.slane %v5758, %v5945
    %v5947 = vlaneseq
    %v5948 = vshrl.u32 %v5947, 7
    %v5949 = vsub.s32 0, %v5948
    %v5950 = vrot.slane %v5759, %v5949
    %v5951 = vlaneseq
    %v5952 = vshrl.u32 %v5951, 7
    %v5953 = vsub.s32 0, %v5952
    %v5954 = vrot.slane %v5760, %v5953
    %v5955 = vlaneseq
    %v5956 = vshrl.u32 %v5955, 7
    %v5957 = vsub.s32 0, %v5956
    %v5958 = vrot.slane %v5761, %v5957
    %v5959 = vlaneseq
    %v5960 = vshrl.u32 %v5959, 7
    %v5961 = vsub.s32 0, %v5960
    %v5962 = vrot.slane %v5762, %v5961
    %v5963 = vlaneseq
    %v5964 = vshrl.u32 %v5963, 7
    %v5965 = vsub.s32 0, %v5964
    %v5966 = vrot.slane %v5763, %v5965
    %v5967 = vlaneseq
    %v5968 = vshrl.u32 %v5967, 7
    %v5969 = vsub.s32 0, %v5968
    %v5970 = vrot.slane %v5764, %v5969
    %v5971 = vlaneseq
    %v5972 = vshrl.u32 %v5971, 7
    %v5973 = vsub.s32 0, %v5972
    %v5974 = vrot.slane %v5765, %v5973
    %v5975 = vlaneseq
    %v5976 = vshrl.u32 %v5975, 7
    %v5977 = vsub.s32 0, %v5976
    %v5978 = vrot.slane %v5766, %v5977
    %v5979 = vlaneseq
    %v5980 = vshrl.u32 %v5979, 7
    %v5981 = vsub.s32 0, %v5980
    %v5982 = vrot.slane %v5767, %v5981
    %v5983 = vlaneseq
    %v5984 = vshrl.u32 %v5983, 7
    %v5985 = vsub.s32 0, %v5984
    %v5986 = vrot.slane %v5768, %v5985
    %v5987 = vlaneseq
    %v5988 = vshrl.u32 %v5987, 7
    %v5989 = vsub.s32 0, %v5988
    %v5990 = vrot.slane %v5769, %v5989
    %v5991 = vlaneseq
    %v5992 = vshrl.u32 %v5991, 7
    %v5993 = vsub.s32 0, %v5992
    %v5994 = vrot.slane %v5770, %v5993
    %v5995 = vlaneseq
    %v5996 = vshrl.u32 %v5995, 7
    %v5997 = vsub.s32 0, %v5996
    %v5998 = vrot.slane %v5771, %v5997
    %v5999 = vlaneseq
    %v6000 = vshrl.u32 %v5999, 7
    %v6001 = vsub.s32 0, %v6000
    %v6002 = vrot.slane %v5772, %v6001
    %v6003 = vlaneseq
    %v6004 = vshrl.u32 %v6003, 7
    %v6005 = vsub.s32 0, %v6004
    %v6006 = vrot.slane %v5773, %v6005
    %v6007 = vlaneseq
    %v6008 = vshrl.u32 %v6007, 7
    %v6009 = vsub.s32 0, %v6008
    %v6010 = vrot.slane %v5774, %v6009
    %v6011 = vlaneseq
    %v6012 = vshrl.u32 %v6011, 7
    %v6013 = vsub.s32 0, %v6012
    %v6014 = vrot.slane %v5775, %v6013
    %v6015 = vlaneseq
    %v6016 = vshrl.u32 %v6015, 7
    %v6017 = vsub.s32 0, %v6016
    %v6018 = vrot.slane %v5776, %v6017
    %v6019 = vlaneseq
    %v6020 = vshrl.u32 %v6019, 7
    %v6021 = vsub.s32 0, %v6020
    %v6022 = vrot.slane %v5777, %v6021
    %v6023 = vlaneseq
    %v6024 = vshrl.u32 %v6023, 7
    %v6025 = vsub.s32 0, %v6024
    %v6026 = vrot.slane %v5778, %v6025
    %v6027 = vlaneseq
    %v6028 = vshrl.u32 %v6027, 7
    %v6029 = vsub.s32 0, %v6028
    %v6030 = vrot.slane %v5779, %v6029
    %v6031 = vlaneseq
    %v6032 = vshrl.u32 %v6031, 7
    %v6033 = vsub.s32 0, %v6032
    %v6034 = vrot.slane %v5780, %v6033
    %v6035 = vlaneseq
    %v6036 = vshrl.u32 %v6035, 7
    %v6037 = vsub.s32 0, %v6036
    %v6038 = vrot.slane %v5781, %v6037
    %v6039 = vlaneseq
    %v6040 = vshrl.u32 %v6039, 7
    %v6041 = vsub.s32 0, %v6040
    %v6042 = vrot.slane %v5782, %v6041
    %v6043 = vlaneseq
    %v6044 = vshrl.u32 %v6043, 7
    %v6045 = vsub.s32 0, %v6044
    %v6046 = vrot.slane %v5783, %v6045
    %v6047 = vlaneseq
    %v6048 = vshrl.u32 %v6047, 7
    %v6049 = vsub.s32 0, %v6048
    %v6050 = vrot.slane %v5784, %v6049
    %v6051 = vlaneseq
    %v6052 = vshrl.u32 %v6051, 7
    %v6053 = vsub.s32 0, %v6052
    %v6054 = vrot.slane %v5785, %v6053
    %v6055 = vlaneseq
    %v6056 = vshrl.u32 %v6055, 7
    %v6057 = vsub.s32 0, %v6056
    %v6058 = vrot.slane %v5786, %v6057
    %v6059 = vlaneseq
    %v6060 = vshrl.u32 %v6059, 7
    %v6061 = vsub.s32 0, %v6060
    %v6062 = vrot.slane %v5787, %v6061
    %v6063 = vlaneseq
    %v6064 = vshrl.u32 %v6063, 7
    %v6065 = vsub.s32 0, %v6064
    %v6066 = vrot.slane %v5788, %v6065
    %v6067 = vlaneseq
    %v6068 = vshrl.u32 %v6067, 7
    %v6069 = vsub.s32 0, %v6068
    %v6070 = vrot.slane %v5789, %v6069
    %v6071 = vlaneseq
    %v6072 = vshrl.u32 %v6071, 7
    %v6073 = vsub.s32 0, %v6072
    %v6074 = vrot.slane %v5790, %v6073
    %v6075 = vlaneseq
    %v6076 = vshrl.u32 %v6075, 7
    %v6077 = vsub.s32 0, %v6076
    %v6078 = vrot.slane %v5791, %v6077
    %v6079 = vlaneseq
    %v6080 = vshrl.u32 %v6079, 7
    %v6081 = vsub.s32 0, %v6080
    %v6082 = vrot.slane %v5792, %v6081
    %v6083 = vlaneseq
    %v6084 = vshrl.u32 %v6083, 7
    %v6085 = vsub.s32 0, %v6084
    %v6086 = vrot.slane %v5793, %v6085
    %v6087 = vlaneseq
    %v6088 = vshrl.u32 %v6087, 7
    %v6089 = vsub.s32 0, %v6088
    %v6090 = vrot.slane %v5794, %v6089
    %v6091 = vlaneseq
    %v6092 = vshrl.u32 %v6091, 7
    %v6093 = vsub.s32 0, %v6092
    %v6094 = vrot.slane %v5795, %v6093
    %v6095 = vlaneseq
    %v6096 = vshrl.u32 %v6095, 7
    %v6097 = vsub.s32 0, %v6096
    %v6098 = vrot.slane %v5796, %v6097
    %v6099 = vlaneseq
    %v6100 = vshrl.u32 %v6099, 7
    %v6101 = vsub.s32 0, %v6100
    %v6102 = vrot.slane %v5797, %v6101
    %v6103 = vlaneseq
    %v6104 = vshrl.u32 %v6103, 7
    %v6105 = vsub.s32 0, %v6104
    %v6106 = vrot.slane %v5798, %v6105
    %v6107 = vlaneseq
    %v6108 = vshrl.u32 %v6107, 7
    %v6109 = vsub.s32 0, %v6108
    %v6110 = vrot.slane %v5799, %v6109
    %v6111 = vlaneseq
    %v6112 = vshrl.u32 %v6111, 7
    %v6113 = vsub.s32 0, %v6112
    %v6114 = vrot.slane %v5800, %v6113
    %v6115 = vlaneseq
    %v6116 = vshrl.u32 %v6115, 7
    %v6117 = vsub.s32 0, %v6116
    %v6118 = vrot.slane %v5801, %v6117
    %v6119 = vlaneseq
    %v6120 = vshrl.u32 %v6119, 7
    %v6121 = vsub.s32 0, %v6120
    %v6122 = vrot.slane %v5802, %v6121
    %v6123 = vsel %vm2852, %v5874, %v5870
    %v6124 = vsel %vm2854, %v5878, %v6123
    %v6125 = vsel %vm2856, %v5882, %v6124
    %v6126 = vsel %vm2858, %v5886, %v6125
    %v6127 = vsel %vm2860, %v5890, %v6126
    %v6128 = vsel %vm2862, %v5894, %v6127
    %v6129 = vsel %vm2864, %v5898, %v6128
    %v6130 = vsel %vm2852, %v5906, %v5902
    %v6131 = vsel %vm2854, %v5910, %v6130
    %v6132 = vsel %vm2856, %v5914, %v6131
    %v6133 = vsel %vm2858, %v5918, %v6132
    %v6134 = vsel %vm2860, %v5922, %v6133
    %v6135 = vsel %vm2862, %v5926, %v6134
    %v6136 = vsel %vm2864, %v5930, %v6135
    %v6137 = vsel %vm2852, %v5938, %v5934
    %v6138 = vsel %vm2854, %v5942, %v6137
    %v6139 = vsel %vm2856, %v5946, %v6138
    %v6140 = vsel %vm2858, %v5950, %v6139
    %v6141 = vsel %vm2860, %v5954, %v6140
    %v6142 = vsel %vm2862, %v5958, %v6141
    %v6143 = vsel %vm2864, %v5962, %v6142
    %v6144 = vsel %vm2852, %v5970, %v5966
    %v6145 = vsel %vm2854, %v5974, %v6144
    %v6146 = vsel %vm2856, %v5978, %v6145
    %v6147 = vsel %vm2858, %v5982, %v6146
    %v6148 = vsel %vm2860, %v5986, %v6147
    %v6149 = vsel %vm2862, %v5990, %v6148
    %v6150 = vsel %vm2864, %v5994, %v6149
    %v6151 = vsel %vm2852, %v6002, %v5998
    %v6152 = vsel %vm2854, %v6006, %v6151
    %v6153 = vsel %vm2856, %v6010, %v6152
    %v6154 = vsel %vm2858, %v6014, %v6153
    %v6155 = vsel %vm2860, %v6018, %v6154
    %v6156 = vsel %vm2862, %v6022, %v6155
    %v6157 = vsel %vm2864, %v6026, %v6156
    %v6158 = vsel %vm2852, %v6034, %v6030
    %v6159 = vsel %vm2854, %v6038, %v6158
    %v6160 = vsel %vm2856, %v6042, %v6159
    %v6161 = vsel %vm2858, %v6046, %v6160
    %v6162 = vsel %vm2860, %v6050, %v6161
    %v6163 = vsel %vm2862, %v6054, %v6162
    %v6164 = vsel %vm2864, %v6058, %v6163
    %v6165 = vsel %vm2852, %v6066, %v6062
    %v6166 = vsel %vm2854, %v6070, %v6165
    %v6167 = vsel %vm2856, %v6074, %v6166
    %v6168 = vsel %vm2858, %v6078, %v6167
    %v6169 = vsel %vm2860, %v6082, %v6168
    %v6170 = vsel %vm2862, %v6086, %v6169
    %v6171 = vsel %vm2864, %v6090, %v6170
    %v6172 = vsel %vm2852, %v6098, %v6094
    %v6173 = vsel %vm2854, %v6102, %v6172
    %v6174 = vsel %vm2856, %v6106, %v6173
    %v6175 = vsel %vm2858, %v6110, %v6174
    %v6176 = vsel %vm2860, %v6114, %v6175
    %v6177 = vsel %vm2862, %v6118, %v6176
    %v6178 = vsel %vm2864, %v6122, %v6177
    %6187 = vst [vmem:[#allocation5] sm:$0xff] %v6129
    %6188 = vst [vmem:[#allocation5 + $0x8] sm:$0xff] %v6136
    %6189 = vst [vmem:[#allocation5 + $0x10] sm:$0xff] %v6143
    %6190 = vst [vmem:[#allocation5 + $0x18] sm:$0xff] %v6150
    %6191 = vst [vmem:[#allocation5 + $0x20] sm:$0xff] %v6157
    %6192 = vst [vmem:[#allocation5 + $0x28] sm:$0xff] %v6164
    %6193 = vst [vmem:[#allocation5 + $0x30] sm:$0xff] %v6171
    %6194 = vst [vmem:[#allocation5 + $0x38] sm:$0xff] %v6178
    %v6195 = vsub.f32 %v4315, %v5612
    %v6196 = vsub.f32 %v4316, %v5614
    %v6197 = vsub.f32 %v4317, %v5616
    %v6198 = vsub.f32 %v4318, %v5618
    %v6199 = vsub.f32 %v4319, %v5620
    %v6200 = vsub.f32 %v4320, %v5622
    %v6201 = vsub.f32 %v4321, %v5624
    %v6202 = vsub.f32 %v4322, %v5626
    %v6203 = vsub.f32 %v4323, %v5628
    %v6204 = vsub.f32 %v4324, %v5630
    %v6205 = vsub.f32 %v4325, %v5632
    %v6206 = vsub.f32 %v4326, %v5634
    %v6207 = vsub.f32 %v4327, %v5636
    %v6208 = vsub.f32 %v4328, %v5638
    %v6209 = vsub.f32 %v4329, %v5640
    %v6210 = vsub.f32 %v4330, %v5642
    %v6211 = vsub.f32 %v4331, %v5644
    %v6212 = vsub.f32 %v4332, %v5646
    %v6213 = vsub.f32 %v4333, %v5648
    %v6214 = vsub.f32 %v4334, %v5650
    %v6215 = vsub.f32 %v4335, %v5652
    %v6216 = vsub.f32 %v4336, %v5654
    %v6217 = vsub.f32 %v4337, %v5656
    %v6218 = vsub.f32 %v4338, %v5658
    %v6219 = vsub.f32 %v4339, %v5660
    %v6220 = vsub.f32 %v4340, %v5662
    %v6221 = vsub.f32 %v4341, %v5664
    %v6222 = vsub.f32 %v4342, %v5666
    %v6223 = vsub.f32 %v4343, %v5668
    %v6224 = vsub.f32 %v4344, %v5670
    %v6225 = vsub.f32 %v4345, %v5672
    %v6226 = vsub.f32 %v4346, %v5674
    %v6227 = vsub.f32 %v4347, %v5676
    %v6228 = vsub.f32 %v4348, %v5678
    %v6229 = vsub.f32 %v4349, %v5680
    %v6230 = vsub.f32 %v4350, %v5682
    %v6231 = vsub.f32 %v4351, %v5684
    %v6232 = vsub.f32 %v4352, %v5686
    %v6233 = vsub.f32 %v4353, %v5688
    %v6234 = vsub.f32 %v4354, %v5690
    %v6235 = vsub.f32 %v4355, %v5692
    %v6236 = vsub.f32 %v4356, %v5694
    %v6237 = vsub.f32 %v4357, %v5696
    %v6238 = vsub.f32 %v4358, %v5698
    %v6239 = vsub.f32 %v4359, %v5700
    %v6240 = vsub.f32 %v4360, %v5702
    %v6241 = vsub.f32 %v4361, %v5704
    %v6242 = vsub.f32 %v4362, %v5706
    %v6243 = vsub.f32 %v4363, %v5708
    %v6244 = vsub.f32 %v4364, %v5710
    %v6245 = vsub.f32 %v4365, %v5712
    %v6246 = vsub.f32 %v4366, %v5714
    %v6247 = vsub.f32 %v4367, %v5716
    %v6248 = vsub.f32 %v4368, %v5718
    %v6249 = vsub.f32 %v4369, %v5720
    %v6250 = vsub.f32 %v4370, %v5722
    %v6251 = vsub.f32 %v4371, %v5724
    %v6252 = vsub.f32 %v4372, %v5726
    %v6253 = vsub.f32 %v4373, %v5728
    %v6254 = vsub.f32 %v4374, %v5730
    %v6255 = vsub.f32 %v4375, %v5732
    %v6256 = vsub.f32 %v4376, %v5734
    %v6257 = vsub.f32 %v4377, %v5736
    %v6258 = vsub.f32 %v4378, %v5738
    %v6323 = vlaneseq
    %v6324 = vshrl.u32 %v6323, 7
    %v6325 = vsub.s32 0, %v6324
    %v6326 = vrot.slane %v6195, %v6325
    %v6327 = vlaneseq
    %v6328 = vshrl.u32 %v6327, 7
    %v6329 = vsub.s32 0, %v6328
    %v6330 = vrot.slane %v6196, %v6329
    %v6331 = vlaneseq
    %v6332 = vshrl.u32 %v6331, 7
    %v6333 = vsub.s32 0, %v6332
    %v6334 = vrot.slane %v6197, %v6333
    %v6335 = vlaneseq
    %v6336 = vshrl.u32 %v6335, 7
    %v6337 = vsub.s32 0, %v6336
    %v6338 = vrot.slane %v6198, %v6337
    %v6339 = vlaneseq
    %v6340 = vshrl.u32 %v6339, 7
    %v6341 = vsub.s32 0, %v6340
    %v6342 = vrot.slane %v6199, %v6341
    %v6343 = vlaneseq
    %v6344 = vshrl.u32 %v6343, 7
    %v6345 = vsub.s32 0, %v6344
    %v6346 = vrot.slane %v6200, %v6345
    %v6347 = vlaneseq
    %v6348 = vshrl.u32 %v6347, 7
    %v6349 = vsub.s32 0, %v6348
    %v6350 = vrot.slane %v6201, %v6349
    %v6351 = vlaneseq
    %v6352 = vshrl.u32 %v6351, 7
    %v6353 = vsub.s32 0, %v6352
    %v6354 = vrot.slane %v6202, %v6353
    %v6355 = vlaneseq
    %v6356 = vshrl.u32 %v6355, 7
    %v6357 = vsub.s32 0, %v6356
    %v6358 = vrot.slane %v6203, %v6357
    %v6359 = vlaneseq
    %v6360 = vshrl.u32 %v6359, 7
    %v6361 = vsub.s32 0, %v6360
    %v6362 = vrot.slane %v6204, %v6361
    %v6363 = vlaneseq
    %v6364 = vshrl.u32 %v6363, 7
    %v6365 = vsub.s32 0, %v6364
    %v6366 = vrot.slane %v6205, %v6365
    %v6367 = vlaneseq
    %v6368 = vshrl.u32 %v6367, 7
    %v6369 = vsub.s32 0, %v6368
    %v6370 = vrot.slane %v6206, %v6369
    %v6371 = vlaneseq
    %v6372 = vshrl.u32 %v6371, 7
    %v6373 = vsub.s32 0, %v6372
    %v6374 = vrot.slane %v6207, %v6373
    %v6375 = vlaneseq
    %v6376 = vshrl.u32 %v6375, 7
    %v6377 = vsub.s32 0, %v6376
    %v6378 = vrot.slane %v6208, %v6377
    %v6379 = vlaneseq
    %v6380 = vshrl.u32 %v6379, 7
    %v6381 = vsub.s32 0, %v6380
    %v6382 = vrot.slane %v6209, %v6381
    %v6383 = vlaneseq
    %v6384 = vshrl.u32 %v6383, 7
    %v6385 = vsub.s32 0, %v6384
    %v6386 = vrot.slane %v6210, %v6385
    %v6387 = vlaneseq
    %v6388 = vshrl.u32 %v6387, 7
    %v6389 = vsub.s32 0, %v6388
    %v6390 = vrot.slane %v6211, %v6389
    %v6391 = vlaneseq
    %v6392 = vshrl.u32 %v6391, 7
    %v6393 = vsub.s32 0, %v6392
    %v6394 = vrot.slane %v6212, %v6393
    %v6395 = vlaneseq
    %v6396 = vshrl.u32 %v6395, 7
    %v6397 = vsub.s32 0, %v6396
    %v6398 = vrot.slane %v6213, %v6397
    %v6399 = vlaneseq
    %v6400 = vshrl.u32 %v6399, 7
    %v6401 = vsub.s32 0, %v6400
    %v6402 = vrot.slane %v6214, %v6401
    %v6403 = vlaneseq
    %v6404 = vshrl.u32 %v6403, 7
    %v6405 = vsub.s32 0, %v6404
    %v6406 = vrot.slane %v6215, %v6405
    %v6407 = vlaneseq
    %v6408 = vshrl.u32 %v6407, 7
    %v6409 = vsub.s32 0, %v6408
    %v6410 = vrot.slane %v6216, %v6409
    %v6411 = vlaneseq
    %v6412 = vshrl.u32 %v6411, 7
    %v6413 = vsub.s32 0, %v6412
    %v6414 = vrot.slane %v6217, %v6413
    %v6415 = vlaneseq
    %v6416 = vshrl.u32 %v6415, 7
    %v6417 = vsub.s32 0, %v6416
    %v6418 = vrot.slane %v6218, %v6417
    %v6419 = vlaneseq
    %v6420 = vshrl.u32 %v6419, 7
    %v6421 = vsub.s32 0, %v6420
    %v6422 = vrot.slane %v6219, %v6421
    %v6423 = vlaneseq
    %v6424 = vshrl.u32 %v6423, 7
    %v6425 = vsub.s32 0, %v6424
    %v6426 = vrot.slane %v6220, %v6425
    %v6427 = vlaneseq
    %v6428 = vshrl.u32 %v6427, 7
    %v6429 = vsub.s32 0, %v6428
    %v6430 = vrot.slane %v6221, %v6429
    %v6431 = vlaneseq
    %v6432 = vshrl.u32 %v6431, 7
    %v6433 = vsub.s32 0, %v6432
    %v6434 = vrot.slane %v6222, %v6433
    %v6435 = vlaneseq
    %v6436 = vshrl.u32 %v6435, 7
    %v6437 = vsub.s32 0, %v6436
    %v6438 = vrot.slane %v6223, %v6437
    %v6439 = vlaneseq
    %v6440 = vshrl.u32 %v6439, 7
    %v6441 = vsub.s32 0, %v6440
    %v6442 = vrot.slane %v6224, %v6441
    %v6443 = vlaneseq
    %v6444 = vshrl.u32 %v6443, 7
    %v6445 = vsub.s32 0, %v6444
    %v6446 = vrot.slane %v6225, %v6445
    %v6447 = vlaneseq
    %v6448 = vshrl.u32 %v6447, 7
    %v6449 = vsub.s32 0, %v6448
    %v6450 = vrot.slane %v6226, %v6449
    %v6451 = vlaneseq
    %v6452 = vshrl.u32 %v6451, 7
    %v6453 = vsub.s32 0, %v6452
    %v6454 = vrot.slane %v6227, %v6453
    %v6455 = vlaneseq
    %v6456 = vshrl.u32 %v6455, 7
    %v6457 = vsub.s32 0, %v6456
    %v6458 = vrot.slane %v6228, %v6457
    %v6459 = vlaneseq
    %v6460 = vshrl.u32 %v6459, 7
    %v6461 = vsub.s32 0, %v6460
    %v6462 = vrot.slane %v6229, %v6461
    %v6463 = vlaneseq
    %v6464 = vshrl.u32 %v6463, 7
    %v6465 = vsub.s32 0, %v6464
    %v6466 = vrot.slane %v6230, %v6465
    %v6467 = vlaneseq
    %v6468 = vshrl.u32 %v6467, 7
    %v6469 = vsub.s32 0, %v6468
    %v6470 = vrot.slane %v6231, %v6469
    %v6471 = vlaneseq
    %v6472 = vshrl.u32 %v6471, 7
    %v6473 = vsub.s32 0, %v6472
    %v6474 = vrot.slane %v6232, %v6473
    %v6475 = vlaneseq
    %v6476 = vshrl.u32 %v6475, 7
    %v6477 = vsub.s32 0, %v6476
    %v6478 = vrot.slane %v6233, %v6477
    %v6479 = vlaneseq
    %v6480 = vshrl.u32 %v6479, 7
    %v6481 = vsub.s32 0, %v6480
    %v6482 = vrot.slane %v6234, %v6481
    %v6483 = vlaneseq
    %v6484 = vshrl.u32 %v6483, 7
    %v6485 = vsub.s32 0, %v6484
    %v6486 = vrot.slane %v6235, %v6485
    %v6487 = vlaneseq
    %v6488 = vshrl.u32 %v6487, 7
    %v6489 = vsub.s32 0, %v6488
    %v6490 = vrot.slane %v6236, %v6489
    %v6491 = vlaneseq
    %v6492 = vshrl.u32 %v6491, 7
    %v6493 = vsub.s32 0, %v6492
    %v6494 = vrot.slane %v6237, %v6493
    %v6495 = vlaneseq
    %v6496 = vshrl.u32 %v6495, 7
    %v6497 = vsub.s32 0, %v6496
    %v6498 = vrot.slane %v6238, %v6497
    %v6499 = vlaneseq
    %v6500 = vshrl.u32 %v6499, 7
    %v6501 = vsub.s32 0, %v6500
    %v6502 = vrot.slane %v6239, %v6501
    %v6503 = vlaneseq
    %v6504 = vshrl.u32 %v6503, 7
    %v6505 = vsub.s32 0, %v6504
    %v6506 = vrot.slane %v6240, %v6505
    %v6507 = vlaneseq
    %v6508 = vshrl.u32 %v6507, 7
    %v6509 = vsub.s32 0, %v6508
    %v6510 = vrot.slane %v6241, %v6509
    %v6511 = vlaneseq
    %v6512 = vshrl.u32 %v6511, 7
    %v6513 = vsub.s32 0, %v6512
    %v6514 = vrot.slane %v6242, %v6513
    %v6515 = vlaneseq
    %v6516 = vshrl.u32 %v6515, 7
    %v6517 = vsub.s32 0, %v6516
    %v6518 = vrot.slane %v6243, %v6517
    %v6519 = vlaneseq
    %v6520 = vshrl.u32 %v6519, 7
    %v6521 = vsub.s32 0, %v6520
    %v6522 = vrot.slane %v6244, %v6521
    %v6523 = vlaneseq
    %v6524 = vshrl.u32 %v6523, 7
    %v6525 = vsub.s32 0, %v6524
    %v6526 = vrot.slane %v6245, %v6525
    %v6527 = vlaneseq
    %v6528 = vshrl.u32 %v6527, 7
    %v6529 = vsub.s32 0, %v6528
    %v6530 = vrot.slane %v6246, %v6529
    %v6531 = vlaneseq
    %v6532 = vshrl.u32 %v6531, 7
    %v6533 = vsub.s32 0, %v6532
    %v6534 = vrot.slane %v6247, %v6533
    %v6535 = vlaneseq
    %v6536 = vshrl.u32 %v6535, 7
    %v6537 = vsub.s32 0, %v6536
    %v6538 = vrot.slane %v6248, %v6537
    %v6539 = vlaneseq
    %v6540 = vshrl.u32 %v6539, 7
    %v6541 = vsub.s32 0, %v6540
    %v6542 = vrot.slane %v6249, %v6541
    %v6543 = vlaneseq
    %v6544 = vshrl.u32 %v6543, 7
    %v6545 = vsub.s32 0, %v6544
    %v6546 = vrot.slane %v6250, %v6545
    %v6547 = vlaneseq
    %v6548 = vshrl.u32 %v6547, 7
    %v6549 = vsub.s32 0, %v6548
    %v6550 = vrot.slane %v6251, %v6549
    %v6551 = vlaneseq
    %v6552 = vshrl.u32 %v6551, 7
    %v6553 = vsub.s32 0, %v6552
    %v6554 = vrot.slane %v6252, %v6553
    %v6555 = vlaneseq
    %v6556 = vshrl.u32 %v6555, 7
    %v6557 = vsub.s32 0, %v6556
    %v6558 = vrot.slane %v6253, %v6557
    %v6559 = vlaneseq
    %v6560 = vshrl.u32 %v6559, 7
    %v6561 = vsub.s32 0, %v6560
    %v6562 = vrot.slane %v6254, %v6561
    %v6563 = vlaneseq
    %v6564 = vshrl.u32 %v6563, 7
    %v6565 = vsub.s32 0, %v6564
    %v6566 = vrot.slane %v6255, %v6565
    %v6567 = vlaneseq
    %v6568 = vshrl.u32 %v6567, 7
    %v6569 = vsub.s32 0, %v6568
    %v6570 = vrot.slane %v6256, %v6569
    %v6571 = vlaneseq
    %v6572 = vshrl.u32 %v6571, 7
    %v6573 = vsub.s32 0, %v6572
    %v6574 = vrot.slane %v6257, %v6573
    %v6575 = vlaneseq
    %v6576 = vshrl.u32 %v6575, 7
    %v6577 = vsub.s32 0, %v6576
    %v6578 = vrot.slane %v6258, %v6577
    %v6579 = vsel %vm2852, %v6330, %v6326
    %v6580 = vsel %vm2854, %v6334, %v6579
    %v6581 = vsel %vm2856, %v6338, %v6580
    %v6582 = vsel %vm2858, %v6342, %v6581
    %v6583 = vsel %vm2860, %v6346, %v6582
    %v6584 = vsel %vm2862, %v6350, %v6583
    %v6585 = vsel %vm2864, %v6354, %v6584
    %v6586 = vsel %vm2852, %v6362, %v6358
    %v6587 = vsel %vm2854, %v6366, %v6586
    %v6588 = vsel %vm2856, %v6370, %v6587
    %v6589 = vsel %vm2858, %v6374, %v6588
    %v6590 = vsel %vm2860, %v6378, %v6589
    %v6591 = vsel %vm2862, %v6382, %v6590
    %v6592 = vsel %vm2864, %v6386, %v6591
    %v6593 = vsel %vm2852, %v6394, %v6390
    %v6594 = vsel %vm2854, %v6398, %v6593
    %v6595 = vsel %vm2856, %v6402, %v6594
    %v6596 = vsel %vm2858, %v6406, %v6595
    %v6597 = vsel %vm2860, %v6410, %v6596
    %v6598 = vsel %vm2862, %v6414, %v6597
    %v6599 = vsel %vm2864, %v6418, %v6598
    %v6600 = vsel %vm2852, %v6426, %v6422
    %v6601 = vsel %vm2854, %v6430, %v6600
    %v6602 = vsel %vm2856, %v6434, %v6601
    %v6603 = vsel %vm2858, %v6438, %v6602
    %v6604 = vsel %vm2860, %v6442, %v6603
    %v6605 = vsel %vm2862, %v6446, %v6604
    %v6606 = vsel %vm2864, %v6450, %v6605
    %v6607 = vsel %vm2852, %v6458, %v6454
    %v6608 = vsel %vm2854, %v6462, %v6607
    %v6609 = vsel %vm2856, %v6466, %v6608
    %v6610 = vsel %vm2858, %v6470, %v6609
    %v6611 = vsel %vm2860, %v6474, %v6610
    %v6612 = vsel %vm2862, %v6478, %v6611
    %v6613 = vsel %vm2864, %v6482, %v6612
    %v6614 = vsel %vm2852, %v6490, %v6486
    %v6615 = vsel %vm2854, %v6494, %v6614
    %v6616 = vsel %vm2856, %v6498, %v6615
    %v6617 = vsel %vm2858, %v6502, %v6616
    %v6618 = vsel %vm2860, %v6506, %v6617
    %v6619 = vsel %vm2862, %v6510, %v6618
    %v6620 = vsel %vm2864, %v6514, %v6619
    %v6621 = vsel %vm2852, %v6522, %v6518
    %v6622 = vsel %vm2854, %v6526, %v6621
    %v6623 = vsel %vm2856, %v6530, %v6622
    %v6624 = vsel %vm2858, %v6534, %v6623
    %v6625 = vsel %vm2860, %v6538, %v6624
    %v6626 = vsel %vm2862, %v6542, %v6625
    %v6627 = vsel %vm2864, %v6546, %v6626
    %v6628 = vsel %vm2852, %v6554, %v6550
    %v6629 = vsel %vm2854, %v6558, %v6628
    %v6630 = vsel %vm2856, %v6562, %v6629
    %v6631 = vsel %vm2858, %v6566, %v6630
    %v6632 = vsel %vm2860, %v6570, %v6631
    %v6633 = vsel %vm2862, %v6574, %v6632
    %v6634 = vsel %vm2864, %v6578, %v6633
    %6643 = vst [vmem:[#allocation6] sm:$0xff] %v6585
    %6644 = vst [vmem:[#allocation6 + $0x8] sm:$0xff] %v6592
    %6645 = vst [vmem:[#allocation6 + $0x10] sm:$0xff] %v6599
    %6646 = vst [vmem:[#allocation6 + $0x18] sm:$0xff] %v6606
    %6647 = vst [vmem:[#allocation6 + $0x20] sm:$0xff] %v6613
    %6648 = vst [vmem:[#allocation6 + $0x28] sm:$0xff] %v6620
    %6649 = vst [vmem:[#allocation6 + $0x30] sm:$0xff] %v6627
    %6650 = vst [vmem:[#allocation6 + $0x38] sm:$0xff] %v6634
    // Predicated region
    $region38: #{tpu_custom_call.1} parent=1 // pred_check
      _
    $region39: #{tpu_custom_call.1} parent=1 // pred_check_branch
      %6652 = sbr.rel (0) target = $region41
    $region40: #{tpu_custom_call.1} parent=1 // pred_region
      %s6654 = ssub.s32 1024, 1024
      %6655 = vsyncadd [#allocation3], %s6654
      %s6656 = sshll.u32 [#allocation5], 4
      %s6657 = int_to_ptr.vmem [resolvable:$true] %s6656
      %6662 = dma.vmem_to_hbm [thread:$0]  %s6657, 1024, %s8, [#allocation3], 128, 128, 8
    $region41: #{tpu_custom_call.1} parent=1 // pred_fallthru
      _
    // Predicated region
    $region42: #{tpu_custom_call.1} parent=1 // pred_check
      _
    $region43: #{tpu_custom_call.1} parent=1 // pred_check_branch
      %6664 = sbr.rel (0) target = $region45
    $region44: #{tpu_custom_call.1} parent=1 // pred_region
      %s6666 = ssub.s32 1024, 1024
      %6667 = vsyncadd [#allocation7], %s6666
      %s6668 = sshll.u32 [#allocation6], 4
      %s6669 = int_to_ptr.vmem [resolvable:$true] %s6668
      %6674 = dma.vmem_to_hbm [thread:$0]  %s6669, 1024, %s9, [#allocation7], 128, 128, 8
    $region45: #{tpu_custom_call.1} parent=1 // pred_fallthru
      _
    // Predicated region
    $region46: #{tpu_custom_call.1} parent=1 // pred_check
      _
    $region47: #{tpu_custom_call.1} parent=1 // pred_check_branch
      %6676 = sbr.rel (0) target = $region49
    $region48: #{tpu_custom_call.1} parent=1 // pred_region
      %s6678 = ssub.s32 1024, 1024
      %6679 = vsyncadd [#allocation7], %s6678
      %s6680 = sshll.u32 [#allocation8], 4
      %s6681 = int_to_ptr.vmem [resolvable:$true] %s6680
      %6686 = dma.vmem_to_hbm [thread:$0]  %s6681, 1024, %s10, [#allocation7], 128, 128, 8
    $region49: #{tpu_custom_call.1} parent=1 // pred_fallthru
      _
    // Predicated region
    $region50: #{tpu_custom_call.1} parent=1 // pred_check
      _
    $region51: #{tpu_custom_call.1} parent=1 // pred_check_branch
      %6688 = sbr.rel (0) target = $region53
    $region52: #{tpu_custom_call.1} parent=1 // pred_region
      %s6690 = ssub.s32 1024, 1024
      %6691 = vsyncadd [#allocation10], %s6690
      %s6692 = sshll.u32 [#allocation9], 4
      %s6693 = int_to_ptr.vmem [resolvable:$true] %s6692
      %6698 = dma.vmem_to_hbm [thread:$0]  %s6693, 1024, %s11, [#allocation10], 128, 128, 8
    $region53: #{tpu_custom_call.1} parent=1 // pred_fallthru
      _
    // Predicated region
    $region54: #{tpu_custom_call.1} parent=1 // pred_check
      _
    $region55: #{tpu_custom_call.1} parent=1 // pred_check_branch
      %6700 = sbr.rel (0) target = $region57
    $region56: #{tpu_custom_call.1} parent=1 // pred_region
      %6701 = dma.done [#allocation3], 1024
    $region57: #{tpu_custom_call.1} parent=1 // pred_fallthru
      _
    // Predicated region
    $region58: #{tpu_custom_call.1} parent=1 // pred_check
      _
    $region59: #{tpu_custom_call.1} parent=1 // pred_check_branch
      %6703 = sbr.rel (0) target = $region61
    $region60: #{tpu_custom_call.1} parent=1 // pred_region
      %6704 = dma.done [#allocation7], 1024
    $region61: #{tpu_custom_call.1} parent=1 // pred_fallthru
      _
    // Predicated region
    $region62: #{tpu_custom_call.1} parent=1 // pred_check
      _
    $region63: #{tpu_custom_call.1} parent=1 // pred_check_branch
      %6706 = sbr.rel (0) target = $region65
    $region64: #{tpu_custom_call.1} parent=1 // pred_region
      %6707 = dma.done [#allocation7], 1024
    $region65: #{tpu_custom_call.1} parent=1 // pred_fallthru
      _
    // Predicated region
    $region66: #{tpu_custom_call.1} parent=1 // pred_check
      _
    $region67: #{tpu_custom_call.1} parent=1 // pred_check_branch
      %6709 = sbr.rel (0) target = $region69
    $region68: #{tpu_custom_call.1} parent=1 // pred_region
      %6710 = dma.done [#allocation10], 1024
    $region69: #{tpu_custom_call.1} parent=1 // pred_fallthru
      _
    %6711 = vsyncpa [#allocation3], 1
    %6712 = vsyncpa [#allocation7], 1
    %6713 = vsyncpa [#allocation10], 1
    %6714 = vsyncpa [#allocation4], 1

</llo_original>
